<compile_context>
chip_gen: v7x
topology: tpu7x:2x2x1
jax: 0.10.0
libtpu: 0.0.40
codegen_flags: <defaults>
</compile_context>

<pallas_src>
import functools

import jax
import jax.numpy as jnp
from jax.experimental import pallas as pl
from jax.experimental.pallas import tpu as pltpu

EPS = 0.8          # nn.BatchNorm1d(out_feat, 0.8) -> eps = 0.8
NEG_SLOPE = 0.2    # LeakyReLU(0.2)
LANE = 128         # pad output features to a multiple of this (lane-dense vst)
HIDDEN = (128, 256, 512, 1024)
TILED_BATCH_THRESHOLD = 512              # use the batch-tiled grid at/above this B
BATCH_TILE_CANDIDATES = (256, 128, 64, 32, 16, 8)


def _prod(shape):
    p = 1
    for d in shape:
        p *= int(d)
    return p


def _leaky_relu(x):
    # slope < 1  =>  LeakyReLU(x) == max(x, slope*x): one mul + one max (VPU).
    return jnp.maximum(x, NEG_SLOPE * x)


def _matmul(x, w_ref):
    # MXU-native path: bf16 inputs, f32 accumulation.  astype is a no-op when
    # x is already bf16 (the epilogues below hand activations over as bf16).
    return jnp.dot(x.astype(jnp.bfloat16), w_ref[...],
                   preferred_element_type=jnp.float32)


# ---------------------------------------------------------------------------
# Fused single-block kernel (small / medium batch; full batch resident in VMEM)
# ---------------------------------------------------------------------------
def _fused_generator_kernel(
    z_ref, w1_ref, b1_ref,
    w2_ref, g2_ref, be2_ref,
    w3_ref, g3_ref, be3_ref,
    w4_ref, g4_ref, be4_ref,
    w5_ref, b5_ref,
    out_ref,
):
    def bn_leaky(x, g_ref, be_ref):
        # Training-mode full-batch stats (biased variance), folded into one FMA:
        #   scale = gamma * rsqrt(E[x^2] - mu^2 + eps);  shift = beta - mu*scale
        mu = jnp.mean(x, axis=0, keepdims=True)
        ex2 = jnp.mean(x * x, axis=0, keepdims=True)
        var = ex2 - mu * mu
        scale = g_ref[...] * jax.lax.rsqrt(var + EPS)
        shift = be_ref[...] - mu * scale
        # Hand the next layer a bf16 activation (cast fused into the epilogue).
        return _leaky_relu(x * scale + shift).astype(jnp.bfloat16)

    h = _leaky_relu(_matmul(z_ref[...], w1_ref) + b1_ref[...]).astype(jnp.bfloat16)
    h = bn_leaky(_matmul(h, w2_ref), g2_ref, be2_ref)   # b2 dropped: cancels in BN
    h = bn_leaky(_matmul(h, w3_ref), g3_ref, be3_ref)   # b3 dropped
    h = bn_leaky(_matmul(h, w4_ref), g4_ref, be4_ref)   # b4 dropped
    out_ref[...] = jnp.tanh(_matmul(h, w5_ref) + b5_ref[...])


# ---------------------------------------------------------------------------
# Batch-tiled kernels (large batch): weights VMEM-resident, activation tiles
# stream; BN stats accumulated in f32 across the "arbitrary" batch-tile axis.
# ---------------------------------------------------------------------------
def _stage1_kernel(z_ref, w1_ref, b1_ref, w2_ref, s_ref, sum_ref, sq_ref):
    # Linear1 + bias + LeakyReLU, then Linear2 (bias-free: cancels in BN2).
    @pl.when(pl.program_id(0) == 0)
    def _():
        sum_ref[...] = jnp.zeros_like(sum_ref)
        sq_ref[...] = jnp.zeros_like(sq_ref)

    h = _leaky_relu(_matmul(z_ref[...], w1_ref) + b1_ref[...]).astype(jnp.bfloat16)
    s = _matmul(h, w2_ref)
    s_ref[...] = s
    sum_ref[...] += jnp.sum(s, axis=0, keepdims=True)
    sq_ref[...] += jnp.sum(s * s, axis=0, keepdims=True)


def _mid_stage_kernel(batch, sum_in_ref, sq_in_ref, g_ref, be_ref, x_ref, w_ref,
                      s_ref, sum_ref, sq_ref):
    # BN(prev layer) + LeakyReLU + next Linear (bias-free), plus stats for the
    # next BN layer.
    @pl.when(pl.program_id(0) == 0)
    def _():
        sum_ref[...] = jnp.zeros_like(sum_ref)
        sq_ref[...] = jnp.zeros_like(sq_ref)

    inv_b = 1.0 / batch
    mu = sum_in_ref[...] * inv_b
    var = sq_in_ref[...] * inv_b - mu * mu
    scale = g_ref[...] * jax.lax.rsqrt(var + EPS)
    shift = be_ref[...] - mu * scale
    h = _leaky_relu(x_ref[...] * scale + shift).astype(jnp.bfloat16)
    s = _matmul(h, w_ref)
    s_ref[...] = s
    sum_ref[...] += jnp.sum(s, axis=0, keepdims=True)
    sq_ref[...] += jnp.sum(s * s, axis=0, keepdims=True)


def _final_stage_kernel(batch, sum_in_ref, sq_in_ref, g_ref, be_ref, x_ref,
                        w_ref, b_ref, out_ref):
    # BN4 + LeakyReLU + Linear5 + bias + tanh, lane-dense padded store.
    inv_b = 1.0 / batch
    mu = sum_in_ref[...] * inv_b
    var = sq_in_ref[...] * inv_b - mu * mu
    scale = g_ref[...] * jax.lax.rsqrt(var + EPS)
    shift = be_ref[...] - mu * scale
    h = _leaky_relu(x_ref[...] * scale + shift).astype(jnp.bfloat16)
    out_ref[...] = jnp.tanh(_matmul(h, w_ref) + b_ref[...])


# ---------------------------------------------------------------------------
# Parameter init / one-time preparation
# ---------------------------------------------------------------------------
def init_params(key, latent_dim, img_shape, dtype=jnp.float32):
    """PyTorch-equivalent parameters, stored as (in, out).  Used by the f32
    reference; run prepare_params() once to get the kernel-ready pytree."""
    out_dim = _prod(img_shape)
    dims = [latent_dim, *HIDDEN, out_dim]
    params = {}
    keys = jax.random.split(key, 2 * (len(dims) - 1))
    for i in range(len(dims) - 1):
        fan_in, fan_out = dims[i], dims[i + 1]
        bound = 1.0 / float(fan_in) ** 0.5
        params[f"w{i + 1}"] = jax.random.uniform(
            keys[2 * i], (fan_in, fan_out), dtype, -bound, bound)
        params[f"b{i + 1}"] = jax.random.uniform(
            keys[2 * i + 1], (1, fan_out), dtype, -bound, bound)
    # BatchNorm affine params (PyTorch default init: weight=1, bias=0)
    for i, f in [(2, 256), (3, 512), (4, 1024)]:
        params[f"g{i}"] = jnp.ones((1, f), dtype)
        params[f"be{i}"] = jnp.zeros((1, f), dtype)
    return params, out_dim


def prepare_params(params, img_shape):
    """One-time conversion to the kernel-ready pytree.  Call once and reuse.

    * Weights pre-cast to bf16 (MXU-native, halves weight DMA bytes per call).
    * w5/b5 pre-padded so the output store is lane-dense (multiple of 128).
    * b2/b3/b4 intentionally dropped: a per-feature constant added before
      BatchNorm cancels exactly in the mean subtraction.
    """
    out_dim = _prod(img_shape)
    out_pad = -(-out_dim // LANE) * LANE
    bf16, f32 = jnp.bfloat16, jnp.float32
    w5, b5 = params["w5"], params["b5"]
    if out_pad != out_dim:
        pad = out_pad - out_dim
        w5 = jnp.pad(w5, ((0, 0), (0, pad)))
        b5 = jnp.pad(b5, ((0, 0), (0, pad)))
    return {
        "w1": params["w1"].astype(bf16), "b1": params["b1"].astype(f32),
        "w2": params["w2"].astype(bf16),
        "g2": params["g2"].astype(f32), "be2": params["be2"].astype(f32),
        "w3": params["w3"].astype(bf16),
        "g3": params["g3"].astype(f32), "be3": params["be3"].astype(f32),
        "w4": params["w4"].astype(bf16),
        "g4": params["g4"].astype(f32), "be4": params["be4"].astype(f32),
        "w5": w5.astype(bf16), "b5": b5.astype(f32),
    }


# ---------------------------------------------------------------------------
# Forward wrappers
# ---------------------------------------------------------------------------
def _forward_single_block(z, p, out_pad):
    B, latent = z.shape
    args = (
        z,
        p["w1"], p["b1"],
        p["w2"], p["g2"], p["be2"],
        p["w3"], p["g3"], p["be3"],
        p["w4"], p["g4"], p["be4"],
        p["w5"], p["b5"],
    )
    dims = [latent, *HIDDEN, out_pad]
    flops = 2 * B * sum(dims[i] * dims[i + 1] for i in range(len(dims) - 1))
    transcendentals = B * out_pad + sum(HIDDEN[1:])          # tanh + BN rsqrt
    bytes_accessed = (sum(int(a.size) * a.dtype.itemsize for a in args)
                      + B * out_pad * 4)

    vmem = pl.BlockSpec(memory_space=pltpu.MemorySpace.VMEM)
    return pl.pallas_call(
        _fused_generator_kernel,
        out_shape=jax.ShapeDtypeStruct((B, out_pad), jnp.float32),
        in_specs=[vmem] * len(args),
        out_specs=vmem,
        compiler_params=pltpu.CompilerParams(vmem_limit_bytes=32 << 20),
        cost_estimate=pl.CostEstimate(flops=flops,
                                      transcendentals=transcendentals,
                                      bytes_accessed=bytes_accessed),
    )(*args)


def _forward_batch_tiled(z, p, out_pad, tm):
    B, latent = z.shape
    nb = B // tm
    f32 = jnp.float32

    def res_spec(shape):
        # Full-array block with a constant index_map: stays VMEM-resident.
        return pl.BlockSpec(tuple(shape), lambda i: (0, 0))

    def tile_spec(feat):
        return pl.BlockSpec((tm, feat), lambda i: (i, 0))

    arb = pltpu.CompilerParams(dimension_semantics=("arbitrary",))
    par = pltpu.CompilerParams(dimension_semantics=("parallel",))

    # Stage 1: Linear1 + LeakyReLU + Linear2 (bias-free) + BN2 stats.
    s2, sum2, sq2 = pl.pallas_call(
        _stage1_kernel,
        grid=(nb,),
        out_shape=(jax.ShapeDtypeStruct((B, 256), f32),
                   jax.ShapeDtypeStruct((1, 256), f32),
                   jax.ShapeDtypeStruct((1, 256), f32)),
        in_specs=[tile_spec(latent), res_spec(p["w1"].shape),
                  res_spec(p["b1"].shape), res_spec(p["w2"].shape)],
        out_specs=(tile_spec(256), res_spec((1, 256)), res_spec((1, 256))),
        compiler_params=arb,
    )(z, p["w1"], p["b1"], p["w2"])

    mid = functools.partial(_mid_stage_kernel, B)

    # Stage 2: BN2 + LeakyReLU + Linear3 + BN3 stats.
    s3, sum3, sq3 = pl.pallas_call(
        mid,
        grid=(nb,),
        out_shape=(jax.ShapeDtypeStruct((B, 512), f32),
                   jax.ShapeDtypeStruct((1, 512), f32),
                   jax.ShapeDtypeStruct((1, 512), f32)),
        in_specs=[res_spec((1, 256)), res_spec((1, 256)),
                  res_spec(p["g2"].shape), res_spec(p["be2"].shape),
                  tile_spec(256), res_spec(p["w3"].shape)],
        out_specs=(tile_spec(512), res_spec((1, 512)), res_spec((1, 512))),
        compiler_params=arb,
    )(sum2, sq2, p["g2"], p["be2"], s2, p["w3"])

    # Stage 3: BN3 + LeakyReLU + Linear4 + BN4 stats.
    s4, sum4, sq4 = pl.pallas_call(
        mid,
        grid=(nb,),
        out_shape=(jax.ShapeDtypeStruct((B, 1024), f32),
                   jax.ShapeDtypeStruct((1, 1024), f32),
                   jax.ShapeDtypeStruct((1, 1024), f32)),
        in_specs=[res_spec((1, 512)), res_spec((1, 512)),
                  res_spec(p["g3"].shape), res_spec(p["be3"].shape),
                  tile_spec(512), res_spec(p["w4"].shape)],
        out_specs=(tile_spec(1024), res_spec((1, 1024)), res_spec((1, 1024))),
        compiler_params=arb,
    )(sum3, sq3, p["g3"], p["be3"], s3, p["w4"])

    # Stage 4: BN4 + LeakyReLU + Linear5 + tanh.  No accumulator -> batch axis
    # is "parallel" so v7x's two TensorCores split the biggest GEMM.
    out = pl.pallas_call(
        functools.partial(_final_stage_kernel, B),
        grid=(nb,),
        out_shape=jax.ShapeDtypeStruct((B, out_pad), f32),
        in_specs=[res_spec((1, 1024)), res_spec((1, 1024)),
                  res_spec(p["g4"].shape), res_spec(p["be4"].shape),
                  tile_spec(1024), res_spec(p["w5"].shape),
                  res_spec(p["b5"].shape)],
        out_specs=tile_spec(out_pad),
        compiler_params=par,
    )(sum4, sq4, p["g4"], p["be4"], s4, p["w5"], p["b5"])
    return out


def generator_forward(z, prepared_params, img_shape):
    """Forward pass.  `prepared_params` must come from prepare_params()."""
    B = z.shape[0]
    out_dim = _prod(img_shape)
    out_pad = prepared_params["w5"].shape[1]

    tm = None
    if B >= TILED_BATCH_THRESHOLD:
        for cand in BATCH_TILE_CANDIDATES:
            if B % cand == 0:
                tm = cand
                break

    if tm is None:
        flat = _forward_single_block(z, prepared_params, out_pad)
    else:
        flat = _forward_batch_tiled(z, prepared_params, out_pad, tm)

    # TODO(synk): at very large B return the padded (B, out_pad) / bf16 buffer
    # and slice lazily in the consumer to avoid an extra full-output copy.
    return flat[:, :out_dim].reshape((B,) + tuple(img_shape))


# ---------------------------------------------------------------------------
# Pure-JAX reference (exact PyTorch forward semantics; mxu_dtype=bfloat16
# mimics the kernel's MXU input precision)
# ---------------------------------------------------------------------------
def generator_reference(z, params, img_shape, mxu_dtype=jnp.float32):
    def lin(x, w, b):
        return jnp.dot(x.astype(mxu_dtype), w.astype(mxu_dtype),
                       preferred_element_type=jnp.float32) + b

    def bn(x, g, be):
        mu = x.mean(0, keepdims=True)
        var = ((x - mu) ** 2).mean(0, keepdims=True)
        return (x - mu) / jnp.sqrt(var + EPS) * g + be

    def lrelu(x):
        return jnp.where(x > 0, x, NEG_SLOPE * x)

    h = lrelu(lin(z, params["w1"], params["b1"]))
    h = lrelu(bn(lin(h, params["w2"], params["b2"]), params["g2"], params["be2"]))
    h = lrelu(bn(lin(h, params["w3"], params["b3"]), params["g3"], params["be3"]))
    h = lrelu(bn(lin(h, params["w4"], params["b4"]), params["g4"], params["be4"]))
    out = jnp.tanh(lin(h, params["w5"], params["b5"]))
    return out.reshape((z.shape[0],) + tuple(img_shape))


if __name__ == "__main__":
    latent_dim = 16
    img_shape = (1, 8, 8)   # (C, H, W); prod=64, padded to 128 lanes
    key = jax.random.PRNGKey(0)
    k_params, k_z1, k_z2 = jax.random.split(key, 3)

    params, _ = init_params(k_params, latent_dim, img_shape)
    prepped = prepare_params(params, img_shape)   # one-time bf16 cast + pad

    fwd = jax.jit(functools.partial(generator_forward, img_shape=img_shape))

    # --- Small batch: fused single-block kernel ---------------------------
    z_small = jax.random.normal(k_z1, (8, latent_dim), jnp.float32)
    img_small = fwd(z_small, prepped)
    jax.block_until_ready(img_small)
    assert img_small.shape == (8,) + img_shape, img_small.shape

    ref_bf16 = generator_reference(z_small, params, img_shape,
                                   mxu_dtype=jnp.bfloat16)
    err_bf16 = float(jnp.max(jnp.abs(img_small - ref_bf16)))
    assert err_bf16 < 5e-3, err_bf16
    ref_f32 = generator_reference(z_small, params, img_shape,
                                  mxu_dtype=jnp.float32)
    err_f32 = float(jnp.max(jnp.abs(img_small - ref_f32)))
    assert err_f32 < 1e-1, err_f32

    # --- Larger batch: batch-tiled grid path (resident weights, streamed
    #     activation tiles, two-stage BN stats) -----------------------------
    z_big = jax.random.normal(k_z2, (512, latent_dim), jnp.float32)
    img_big = fwd(z_big, prepped)
    jax.block_until_ready(img_big)
    assert img_big.shape == (512,) + img_shape, img_big.shape

    ref_big = generator_reference(z_big, params, img_shape,
                                  mxu_dtype=jnp.bfloat16)
    err_big = float(jnp.max(jnp.abs(img_big - ref_big)))
    assert err_big < 1e-2, err_big   # max over 64x more elements than above

    print("KERNEL_OK")
</pallas_src>

<mosaic_0001>
module attributes {stable_mosaic.version = 11 : i64} {
  func.func @_fused_generator_kernel(%arg0: memref<8x16xf32, #tpu.memory_space<vmem>>, %arg1: memref<16x128xbf16, #tpu.memory_space<vmem>>, %arg2: memref<1x128xf32, #tpu.memory_space<vmem>>, %arg3: memref<128x256xbf16, #tpu.memory_space<vmem>>, %arg4: memref<1x256xf32, #tpu.memory_space<vmem>>, %arg5: memref<1x256xf32, #tpu.memory_space<vmem>>, %arg6: memref<256x512xbf16, #tpu.memory_space<vmem>>, %arg7: memref<1x512xf32, #tpu.memory_space<vmem>>, %arg8: memref<1x512xf32, #tpu.memory_space<vmem>>, %arg9: memref<512x1024xbf16, #tpu.memory_space<vmem>>, %arg10: memref<1x1024xf32, #tpu.memory_space<vmem>>, %arg11: memref<1x1024xf32, #tpu.memory_space<vmem>>, %arg12: memref<1024x128xbf16, #tpu.memory_space<vmem>>, %arg13: memref<1x128xf32, #tpu.memory_space<vmem>>, %arg14: memref<8x128xf32, #tpu.memory_space<vmem>>) attributes {dimension_semantics = [], scalar_prefetch = 0 : i64, scratch_operands = 0 : i64, tpu.core_type = #tpu.core_type<tc>} {
    %c0 = arith.constant 0 : index
    %c0_0 = arith.constant 0 : index
    %0 = vector.load %arg0[%c0, %c0_0] : memref<8x16xf32, #tpu.memory_space<vmem>>, vector<8x16xf32>
    %1 = arith.truncf %0 : vector<8x16xf32> to vector<8x16xbf16>
    %c0_1 = arith.constant 0 : index
    %c0_2 = arith.constant 0 : index
    %2 = vector.load %arg1[%c0_1, %c0_2] : memref<16x128xbf16, #tpu.memory_space<vmem>>, vector<16x128xbf16>
    %cst = arith.constant dense<0.000000e+00> : vector<8x128xf32>
    %3 = tpu.matmul %1, %2, %cst {dimension_numbers = #tpu.dot_dimension_numbers<[1], [0], [0], [1], [0, 0, 1, 1], [], []>} : vector<8x16xbf16>, vector<16x128xbf16>, vector<8x128xf32> -> vector<8x128xf32>
    %c0_3 = arith.constant 0 : index
    %c0_4 = arith.constant 0 : index
    %4 = vector.load %arg2[%c0_3, %c0_4] : memref<1x128xf32, #tpu.memory_space<vmem>>, vector<1x128xf32>
    %5 = vector.broadcast %4 : vector<1x128xf32> to vector<8x128xf32>
    %6 = arith.addf %3, %5 : vector<8x128xf32>
    %cst_5 = arith.constant 2.000000e-01 : f32
    %7 = vector.broadcast %cst_5 : f32 to vector<8x128xf32>
    %8 = arith.mulf %7, %6 : vector<8x128xf32>
    %9 = arith.maximumf %6, %8 : vector<8x128xf32>
    %10 = arith.truncf %9 : vector<8x128xf32> to vector<8x128xbf16>
    %c0_6 = arith.constant 0 : index
    %c0_7 = arith.constant 0 : index
    %11 = vector.load %arg3[%c0_6, %c0_7] : memref<128x256xbf16, #tpu.memory_space<vmem>>, vector<128x256xbf16>
    %cst_8 = arith.constant dense<0.000000e+00> : vector<8x256xf32>
    %12 = tpu.matmul %10, %11, %cst_8 {dimension_numbers = #tpu.dot_dimension_numbers<[1], [0], [0], [1], [0, 0, 1, 1], [], []>} : vector<8x128xbf16>, vector<128x256xbf16>, vector<8x256xf32> -> vector<8x256xf32>
    %cst_9 = arith.constant dense<0.000000e+00> : vector<256xf32>
    %13 = vector.multi_reduction <add>, %12, %cst_9 [0] : vector<8x256xf32> to vector<256xf32>
    %14 = vector.shape_cast %13 : vector<256xf32> to vector<1x256xf32>
    %cst_10 = arith.constant 8.000000e+00 : f32
    %15 = vector.broadcast %cst_10 : f32 to vector<1x256xf32>
    %16 = arith.divf %14, %15 : vector<1x256xf32>
    %17 = arith.mulf %12, %12 : vector<8x256xf32>
    %cst_11 = arith.constant dense<0.000000e+00> : vector<256xf32>
    %18 = vector.multi_reduction <add>, %17, %cst_11 [0] : vector<8x256xf32> to vector<256xf32>
    %19 = vector.shape_cast %18 : vector<256xf32> to vector<1x256xf32>
    %cst_12 = arith.constant 8.000000e+00 : f32
    %20 = vector.broadcast %cst_12 : f32 to vector<1x256xf32>
    %21 = arith.divf %19, %20 : vector<1x256xf32>
    %22 = arith.mulf %16, %16 : vector<1x256xf32>
    %23 = arith.subf %21, %22 : vector<1x256xf32>
    %c0_13 = arith.constant 0 : index
    %c0_14 = arith.constant 0 : index
    %24 = vector.load %arg4[%c0_13, %c0_14] : memref<1x256xf32, #tpu.memory_space<vmem>>, vector<1x256xf32>
    %cst_15 = arith.constant 8.000000e-01 : f32
    %25 = vector.broadcast %cst_15 : f32 to vector<1x256xf32>
    %26 = arith.addf %23, %25 : vector<1x256xf32>
    %27 = math.rsqrt %26 : vector<1x256xf32>
    %28 = arith.mulf %24, %27 : vector<1x256xf32>
    %c0_16 = arith.constant 0 : index
    %c0_17 = arith.constant 0 : index
    %29 = vector.load %arg5[%c0_16, %c0_17] : memref<1x256xf32, #tpu.memory_space<vmem>>, vector<1x256xf32>
    %30 = arith.mulf %16, %28 : vector<1x256xf32>
    %31 = arith.subf %29, %30 : vector<1x256xf32>
    %32 = vector.broadcast %28 : vector<1x256xf32> to vector<8x256xf32>
    %33 = arith.mulf %12, %32 : vector<8x256xf32>
    %34 = vector.broadcast %31 : vector<1x256xf32> to vector<8x256xf32>
    %35 = arith.addf %33, %34 : vector<8x256xf32>
    %cst_18 = arith.constant 2.000000e-01 : f32
    %36 = vector.broadcast %cst_18 : f32 to vector<8x256xf32>
    %37 = arith.mulf %36, %35 : vector<8x256xf32>
    %38 = arith.maximumf %35, %37 : vector<8x256xf32>
    %39 = arith.truncf %38 : vector<8x256xf32> to vector<8x256xbf16>
    %c0_19 = arith.constant 0 : index
    %c0_20 = arith.constant 0 : index
    %40 = vector.load %arg6[%c0_19, %c0_20] : memref<256x512xbf16, #tpu.memory_space<vmem>>, vector<256x512xbf16>
    %cst_21 = arith.constant dense<0.000000e+00> : vector<8x512xf32>
    %41 = tpu.matmul %39, %40, %cst_21 {dimension_numbers = #tpu.dot_dimension_numbers<[1], [0], [0], [1], [0, 0, 1, 1], [], []>} : vector<8x256xbf16>, vector<256x512xbf16>, vector<8x512xf32> -> vector<8x512xf32>
    %cst_22 = arith.constant dense<0.000000e+00> : vector<512xf32>
    %42 = vector.multi_reduction <add>, %41, %cst_22 [0] : vector<8x512xf32> to vector<512xf32>
    %43 = vector.shape_cast %42 : vector<512xf32> to vector<1x512xf32>
    %cst_23 = arith.constant 8.000000e+00 : f32
    %44 = vector.broadcast %cst_23 : f32 to vector<1x512xf32>
    %45 = arith.divf %43, %44 : vector<1x512xf32>
    %46 = arith.mulf %41, %41 : vector<8x512xf32>
    %cst_24 = arith.constant dense<0.000000e+00> : vector<512xf32>
    %47 = vector.multi_reduction <add>, %46, %cst_24 [0] : vector<8x512xf32> to vector<512xf32>
    %48 = vector.shape_cast %47 : vector<512xf32> to vector<1x512xf32>
    %cst_25 = arith.constant 8.000000e+00 : f32
    %49 = vector.broadcast %cst_25 : f32 to vector<1x512xf32>
    %50 = arith.divf %48, %49 : vector<1x512xf32>
    %51 = arith.mulf %45, %45 : vector<1x512xf32>
    %52 = arith.subf %50, %51 : vector<1x512xf32>
    %c0_26 = arith.constant 0 : index
    %c0_27 = arith.constant 0 : index
    %53 = vector.load %arg7[%c0_26, %c0_27] : memref<1x512xf32, #tpu.memory_space<vmem>>, vector<1x512xf32>
    %cst_28 = arith.constant 8.000000e-01 : f32
    %54 = vector.broadcast %cst_28 : f32 to vector<1x512xf32>
    %55 = arith.addf %52, %54 : vector<1x512xf32>
    %56 = math.rsqrt %55 : vector<1x512xf32>
    %57 = arith.mulf %53, %56 : vector<1x512xf32>
    %c0_29 = arith.constant 0 : index
    %c0_30 = arith.constant 0 : index
    %58 = vector.load %arg8[%c0_29, %c0_30] : memref<1x512xf32, #tpu.memory_space<vmem>>, vector<1x512xf32>
    %59 = arith.mulf %45, %57 : vector<1x512xf32>
    %60 = arith.subf %58, %59 : vector<1x512xf32>
    %61 = vector.broadcast %57 : vector<1x512xf32> to vector<8x512xf32>
    %62 = arith.mulf %41, %61 : vector<8x512xf32>
    %63 = vector.broadcast %60 : vector<1x512xf32> to vector<8x512xf32>
    %64 = arith.addf %62, %63 : vector<8x512xf32>
    %cst_31 = arith.constant 2.000000e-01 : f32
    %65 = vector.broadcast %cst_31 : f32 to vector<8x512xf32>
    %66 = arith.mulf %65, %64 : vector<8x512xf32>
    %67 = arith.maximumf %64, %66 : vector<8x512xf32>
    %68 = arith.truncf %67 : vector<8x512xf32> to vector<8x512xbf16>
    %c0_32 = arith.constant 0 : index
    %c0_33 = arith.constant 0 : index
    %69 = vector.load %arg9[%c0_32, %c0_33] : memref<512x1024xbf16, #tpu.memory_space<vmem>>, vector<512x1024xbf16>
    %cst_34 = arith.constant dense<0.000000e+00> : vector<8x1024xf32>
    %70 = tpu.matmul %68, %69, %cst_34 {dimension_numbers = #tpu.dot_dimension_numbers<[1], [0], [0], [1], [0, 0, 1, 1], [], []>} : vector<8x512xbf16>, vector<512x1024xbf16>, vector<8x1024xf32> -> vector<8x1024xf32>
    %cst_35 = arith.constant dense<0.000000e+00> : vector<1024xf32>
    %71 = vector.multi_reduction <add>, %70, %cst_35 [0] : vector<8x1024xf32> to vector<1024xf32>
    %72 = vector.shape_cast %71 : vector<1024xf32> to vector<1x1024xf32>
    %cst_36 = arith.constant 8.000000e+00 : f32
    %73 = vector.broadcast %cst_36 : f32 to vector<1x1024xf32>
    %74 = arith.divf %72, %73 : vector<1x1024xf32>
    %75 = arith.mulf %70, %70 : vector<8x1024xf32>
    %cst_37 = arith.constant dense<0.000000e+00> : vector<1024xf32>
    %76 = vector.multi_reduction <add>, %75, %cst_37 [0] : vector<8x1024xf32> to vector<1024xf32>
    %77 = vector.shape_cast %76 : vector<1024xf32> to vector<1x1024xf32>
    %cst_38 = arith.constant 8.000000e+00 : f32
    %78 = vector.broadcast %cst_38 : f32 to vector<1x1024xf32>
    %79 = arith.divf %77, %78 : vector<1x1024xf32>
    %80 = arith.mulf %74, %74 : vector<1x1024xf32>
    %81 = arith.subf %79, %80 : vector<1x1024xf32>
    %c0_39 = arith.constant 0 : index
    %c0_40 = arith.constant 0 : index
    %82 = vector.load %arg10[%c0_39, %c0_40] : memref<1x1024xf32, #tpu.memory_space<vmem>>, vector<1x1024xf32>
    %cst_41 = arith.constant 8.000000e-01 : f32
    %83 = vector.broadcast %cst_41 : f32 to vector<1x1024xf32>
    %84 = arith.addf %81, %83 : vector<1x1024xf32>
    %85 = math.rsqrt %84 : vector<1x1024xf32>
    %86 = arith.mulf %82, %85 : vector<1x1024xf32>
    %c0_42 = arith.constant 0 : index
    %c0_43 = arith.constant 0 : index
    %87 = vector.load %arg11[%c0_42, %c0_43] : memref<1x1024xf32, #tpu.memory_space<vmem>>, vector<1x1024xf32>
    %88 = arith.mulf %74, %86 : vector<1x1024xf32>
    %89 = arith.subf %87, %88 : vector<1x1024xf32>
    %90 = vector.broadcast %86 : vector<1x1024xf32> to vector<8x1024xf32>
    %91 = arith.mulf %70, %90 : vector<8x1024xf32>
    %92 = vector.broadcast %89 : vector<1x1024xf32> to vector<8x1024xf32>
    %93 = arith.addf %91, %92 : vector<8x1024xf32>
    %cst_44 = arith.constant 2.000000e-01 : f32
    %94 = vector.broadcast %cst_44 : f32 to vector<8x1024xf32>
    %95 = arith.mulf %94, %93 : vector<8x1024xf32>
    %96 = arith.maximumf %93, %95 : vector<8x1024xf32>
    %97 = arith.truncf %96 : vector<8x1024xf32> to vector<8x1024xbf16>
    %c0_45 = arith.constant 0 : index
    %c0_46 = arith.constant 0 : index
    %98 = vector.load %arg12[%c0_45, %c0_46] : memref<1024x128xbf16, #tpu.memory_space<vmem>>, vector<1024x128xbf16>
    %cst_47 = arith.constant dense<0.000000e+00> : vector<8x128xf32>
    %99 = tpu.matmul %97, %98, %cst_47 {dimension_numbers = #tpu.dot_dimension_numbers<[1], [0], [0], [1], [0, 0, 1, 1], [], []>} : vector<8x1024xbf16>, vector<1024x128xbf16>, vector<8x128xf32> -> vector<8x128xf32>
    %c0_48 = arith.constant 0 : index
    %c0_49 = arith.constant 0 : index
    %100 = vector.load %arg13[%c0_48, %c0_49] : memref<1x128xf32, #tpu.memory_space<vmem>>, vector<1x128xf32>
    %101 = vector.broadcast %100 : vector<1x128xf32> to vector<8x128xf32>
    %102 = arith.addf %99, %101 : vector<8x128xf32>
    %103 = math.tanh %102 : vector<8x128xf32>
    %c0_50 = arith.constant 0 : index
    %c0_51 = arith.constant 0 : index
    %104 = vector.load %arg14[%c0_50, %c0_51] : memref<8x128xf32, #tpu.memory_space<vmem>>, vector<8x128xf32>
    tpu.vector_store %arg14[%c0_50, %c0_51], %103 {strides = array<i32>} : memref<8x128xf32, #tpu.memory_space<vmem>>, vector<8x128xf32>,
    return
  }
}

</mosaic_0001>

<llo_original>
// kernel: generator_forward.1
$region0: #{generator_forward.1}
  #allocation0 [shape = 'u32[]', space=smem, size = 0x4, offset = 0x4, fixed_abs, tag = 'smem constant byte address 0x4 - core index']
  #allocation1 [shape = 'u32[144,128]{1,0:T(1,128)}', space=vmem, size = 0x12000, scoped, tag = 'internal scratch']
  %s0 = inlined_call_operand.hbm [shape: f32[8,16], index: 0, kind: input, shape index: {}]
  %s1 = inlined_call_operand.vmem [shape: bf16[16,128], index: 1, kind: input, shape index: {}]
  %s2 = inlined_call_operand.hbm [shape: f32[1,128], index: 2, kind: input, shape index: {}]
  %s3 = inlined_call_operand.hbm [shape: bf16[128,256], index: 3, kind: input, shape index: {}]
  %s4 = inlined_call_operand.vmem [shape: f32[1,256], index: 4, kind: input, shape index: {}]
  %s5 = inlined_call_operand.hbm [shape: f32[1,256], index: 5, kind: input, shape index: {}]
  %s6 = inlined_call_operand.hbm [shape: bf16[256,512], index: 6, kind: input, shape index: {}]
  %s7 = inlined_call_operand.vmem [shape: f32[1,512], index: 7, kind: input, shape index: {}]
  %s8 = inlined_call_operand.hbm [shape: f32[1,512], index: 8, kind: input, shape index: {}]
  %s9 = inlined_call_operand.hbm [shape: bf16[512,1024], index: 9, kind: input, shape index: {}]
  %s10 = inlined_call_operand.vmem [shape: f32[1,1024], index: 10, kind: input, shape index: {}]
  %s11 = inlined_call_operand.hbm [shape: f32[1,1024], index: 11, kind: input, shape index: {}]
  %s12 = inlined_call_operand.hbm [shape: bf16[1024,128], index: 12, kind: input, shape index: {}]
  %s13 = inlined_call_operand.hbm [shape: f32[1,128], index: 13, kind: input, shape index: {}]
  %s14 = inlined_call_operand.vmem [shape: f32[8,128], index: 14, kind: output, shape index: {}]
  %s15 = sld [smem:[#allocation0]]
  $region106: #{generator_forward.1} parent=0
    _
  %s17 = ssub.s32 1, %s15
  %s18 = scalar_select 0, %s17, %s15
  $region1: #{generator_forward.1} parent=0
    #allocation2 [shape = 'u8[4096]{0}', space=vmem, size = 0x1000, scoped, tag = 'input window, operand 0, single buffered']
    #allocation3 [shape = 's32[1]{0}', space=sflag, size = 0x4, scoped, tag = 'scoped memory for generator_forward.1']
    #allocation4 [shape = 'u8[512]{0}', space=vmem, size = 0x400, scoped, tag = 'input window, operand 2, single buffered']
    #allocation5 [shape = 's32[1]{0}', space=sflag, size = 0x4, scoped, tag = 'scoped memory for generator_forward.1']
    #allocation6 [shape = 'u8[65536]{0}', space=vmem, size = 0x10000, scoped, tag = 'input window, operand 3, single buffered']
    #allocation7 [shape = 'u8[1024]{0}', space=vmem, size = 0x400, scoped, tag = 'input window, operand 5, single buffered']
    #allocation8 [shape = 's32[1]{0}', space=sflag, size = 0x4, scoped, tag = 'scoped memory for generator_forward.1']
    #allocation9 [shape = 'u8[262144]{0}', space=vmem, size = 0x40000, scoped, tag = 'input window, operand 6, single buffered']
    #allocation10 [shape = 'u8[2048]{0}', space=vmem, size = 0x800, scoped, tag = 'input window, operand 8, single buffered']
    #allocation11 [shape = 's32[1]{0}', space=sflag, size = 0x4, scoped, tag = 'scoped memory for generator_forward.1']
    #allocation12 [shape = 'u8[1048576]{0}', space=vmem, size = 0x100000, scoped, tag = 'input window, operand 9, single buffered']
    #allocation13 [shape = 'u8[4096]{0}', space=vmem, size = 0x1000, scoped, tag = 'input window, operand 11, single buffered']
    #allocation14 [shape = 's32[1]{0}', space=sflag, size = 0x4, scoped, tag = 'scoped memory for generator_forward.1']
    #allocation15 [shape = 'u8[262144]{0}', space=vmem, size = 0x40000, scoped, tag = 'input window, operand 12, single buffered']
    #allocation16 [shape = 'u8[512]{0}', space=vmem, size = 0x400, scoped, tag = 'input window, operand 13, single buffered']
    #allocation17 [shape = 's32[1]{0}', space=sflag, size = 0x4, scoped, tag = 'scoped memory for generator_forward.1']
    %19 = vsyncpa [#allocation3], 0
    %20 = vsyncpa [#allocation5], 0
    %21 = vsyncpa [#allocation8], 0
    %22 = vsyncpa [#allocation11], 0
    %23 = vsyncpa [#allocation14], 0
    %24 = vsyncpa [#allocation17], 0
    // Predicated region
    $region2: #{generator_forward.1} parent=1 // pred_check
      _
    $region3: #{generator_forward.1} parent=1 // pred_check_branch
      %26 = sbr.rel (0) target = $region5
    $region4: #{generator_forward.1} parent=1 // pred_region
      %s28 = ssub.s32 128, 128
      %29 = vsyncadd [#allocation3], %s28
      %s31 = sshll.u32 [#allocation2], 4
      %s32 = int_to_ptr.vmem [resolvable:$true] %s31
      %34 = dma.hbm_to_vmem [thread:$0]  %s0, 128, %s32, [#allocation3]
    $region5: #{generator_forward.1} parent=1 // pred_fallthru
      _
    // Predicated region
    $region6: #{generator_forward.1} parent=1 // pred_check
      _
    $region7: #{generator_forward.1} parent=1 // pred_check_branch
      %36 = sbr.rel (0) target = $region9
    $region8: #{generator_forward.1} parent=1 // pred_region
      _
    $region9: #{generator_forward.1} parent=1 // pred_fallthru
      _
    // Predicated region
    $region10: #{generator_forward.1} parent=1 // pred_check
      _
    $region11: #{generator_forward.1} parent=1 // pred_check_branch
      %38 = sbr.rel (0) target = $region13
    $region12: #{generator_forward.1} parent=1 // pred_region
      %s40 = ssub.s32 16, 16
      %41 = vsyncadd [#allocation5], %s40
      %s43 = sshll.u32 [#allocation4], 4
      %s44 = int_to_ptr.vmem [resolvable:$true] %s43
      %46 = dma.hbm_to_vmem [thread:$0]  %s2, 16, %s44, [#allocation5]
    $region13: #{generator_forward.1} parent=1 // pred_fallthru
      _
    // Predicated region
    $region14: #{generator_forward.1} parent=1 // pred_check
      _
    $region15: #{generator_forward.1} parent=1 // pred_check_branch
      %48 = sbr.rel (0) target = $region17
    $region16: #{generator_forward.1} parent=1 // pred_region
      %s50 = ssub.s32 2048, 2048
      %51 = vsyncadd [#allocation5], %s50
      %s52 = sshll.u32 [#allocation6], 4
      %s53 = int_to_ptr.vmem [resolvable:$true] %s52
      %58 = dma.hbm_to_vmem [thread:$0]  %s3, 2048, %s53, [#allocation5], 128, 128, 8
    $region17: #{generator_forward.1} parent=1 // pred_fallthru
      _
    // Predicated region
    $region18: #{generator_forward.1} parent=1 // pred_check
      _
    $region19: #{generator_forward.1} parent=1 // pred_check_branch
      %60 = sbr.rel (0) target = $region21
    $region20: #{generator_forward.1} parent=1 // pred_region
      _
    $region21: #{generator_forward.1} parent=1 // pred_fallthru
      _
    // Predicated region
    $region22: #{generator_forward.1} parent=1 // pred_check
      _
    $region23: #{generator_forward.1} parent=1 // pred_check_branch
      %62 = sbr.rel (0) target = $region25
    $region24: #{generator_forward.1} parent=1 // pred_region
      %s64 = ssub.s32 32, 32
      %65 = vsyncadd [#allocation8], %s64
      %s67 = sshll.u32 [#allocation7], 4
      %s68 = int_to_ptr.vmem [resolvable:$true] %s67
      %70 = dma.hbm_to_vmem [thread:$0]  %s5, 32, %s68, [#allocation8]
    $region25: #{generator_forward.1} parent=1 // pred_fallthru
      _
    // Predicated region
    $region26: #{generator_forward.1} parent=1 // pred_check
      _
    $region27: #{generator_forward.1} parent=1 // pred_check_branch
      %72 = sbr.rel (0) target = $region29
    $region28: #{generator_forward.1} parent=1 // pred_region
      %s74 = ssub.s32 8192, 8192
      %75 = vsyncadd [#allocation8], %s74
      %s76 = sshll.u32 [#allocation9], 4
      %s77 = int_to_ptr.vmem [resolvable:$true] %s76
      %82 = dma.hbm_to_vmem [thread:$0]  %s6, 8192, %s77, [#allocation8], 256, 256, 16
    $region29: #{generator_forward.1} parent=1 // pred_fallthru
      _
    // Predicated region
    $region30: #{generator_forward.1} parent=1 // pred_check
      _
    $region31: #{generator_forward.1} parent=1 // pred_check_branch
      %84 = sbr.rel (0) target = $region33
    $region32: #{generator_forward.1} parent=1 // pred_region
      _
    $region33: #{generator_forward.1} parent=1 // pred_fallthru
      _
    // Predicated region
    $region34: #{generator_forward.1} parent=1 // pred_check
      _
    $region35: #{generator_forward.1} parent=1 // pred_check_branch
      %86 = sbr.rel (0) target = $region37
    $region36: #{generator_forward.1} parent=1 // pred_region
      %s88 = ssub.s32 64, 64
      %89 = vsyncadd [#allocation11], %s88
      %s91 = sshll.u32 [#allocation10], 4
      %s92 = int_to_ptr.vmem [resolvable:$true] %s91
      %94 = dma.hbm_to_vmem [thread:$0]  %s8, 64, %s92, [#allocation11]
    $region37: #{generator_forward.1} parent=1 // pred_fallthru
      _
    // Predicated region
    $region38: #{generator_forward.1} parent=1 // pred_check
      _
    $region39: #{generator_forward.1} parent=1 // pred_check_branch
      %96 = sbr.rel (0) target = $region41
    $region40: #{generator_forward.1} parent=1 // pred_region
      %s98 = ssub.s32 32768, 32768
      %99 = vsyncadd [#allocation11], %s98
      %s100 = sshll.u32 [#allocation12], 4
      %s101 = int_to_ptr.vmem [resolvable:$true] %s100
      %106 = dma.hbm_to_vmem [thread:$0]  %s9, 32768, %s101, [#allocation11], 512, 512, 32
    $region41: #{generator_forward.1} parent=1 // pred_fallthru
      _
    // Predicated region
    $region42: #{generator_forward.1} parent=1 // pred_check
      _
    $region43: #{generator_forward.1} parent=1 // pred_check_branch
      %108 = sbr.rel (0) target = $region45
    $region44: #{generator_forward.1} parent=1 // pred_region
      _
    $region45: #{generator_forward.1} parent=1 // pred_fallthru
      _
    // Predicated region
    $region46: #{generator_forward.1} parent=1 // pred_check
      _
    $region47: #{generator_forward.1} parent=1 // pred_check_branch
      %110 = sbr.rel (0) target = $region49
    $region48: #{generator_forward.1} parent=1 // pred_region
      %s112 = ssub.s32 128, 128
      %113 = vsyncadd [#allocation14], %s112
      %s115 = sshll.u32 [#allocation13], 4
      %s116 = int_to_ptr.vmem [resolvable:$true] %s115
      %118 = dma.hbm_to_vmem [thread:$0]  %s11, 128, %s116, [#allocation14]
    $region49: #{generator_forward.1} parent=1 // pred_fallthru
      _
    // Predicated region
    $region50: #{generator_forward.1} parent=1 // pred_check
      _
    $region51: #{generator_forward.1} parent=1 // pred_check_branch
      %120 = sbr.rel (0) target = $region53
    $region52: #{generator_forward.1} parent=1 // pred_region
      %s122 = ssub.s32 8192, 8192
      %123 = vsyncadd [#allocation14], %s122
      %s124 = sshll.u32 [#allocation15], 4
      %s125 = int_to_ptr.vmem [resolvable:$true] %s124
      %130 = dma.hbm_to_vmem [thread:$0]  %s12, 8192, %s125, [#allocation14], 64, 64, 4
    $region53: #{generator_forward.1} parent=1 // pred_fallthru
      _
    // Predicated region
    $region54: #{generator_forward.1} parent=1 // pred_check
      _
    $region55: #{generator_forward.1} parent=1 // pred_check_branch
      %132 = sbr.rel (0) target = $region57
    $region56: #{generator_forward.1} parent=1 // pred_region
      %s134 = ssub.s32 16, 16
      %135 = vsyncadd [#allocation17], %s134
      %s137 = sshll.u32 [#allocation16], 4
      %s138 = int_to_ptr.vmem [resolvable:$true] %s137
      %140 = dma.hbm_to_vmem [thread:$0]  %s13, 16, %s138, [#allocation17]
    $region57: #{generator_forward.1} parent=1 // pred_fallthru
      _
    // Predicated region
    $region58: #{generator_forward.1} parent=1 // pred_check
      _
    $region59: #{generator_forward.1} parent=1 // pred_check_branch
      %142 = sbr.rel (0) target = $region61
    $region60: #{generator_forward.1} parent=1 // pred_region
      %143 = dma.done [#allocation3], 128
    $region61: #{generator_forward.1} parent=1 // pred_fallthru
      _
    // Predicated region
    $region62: #{generator_forward.1} parent=1 // pred_check
      _
    $region63: #{generator_forward.1} parent=1 // pred_check_branch
      %145 = sbr.rel (0) target = $region65
    $region64: #{generator_forward.1} parent=1 // pred_region
      %146 = dma.done [#allocation5], 16
    $region65: #{generator_forward.1} parent=1 // pred_fallthru
      _
    // Predicated region
    $region66: #{generator_forward.1} parent=1 // pred_check
      _
    $region67: #{generator_forward.1} parent=1 // pred_check_branch
      %148 = sbr.rel (0) target = $region69
    $region68: #{generator_forward.1} parent=1 // pred_region
      %149 = dma.done [#allocation5], 2048
    $region69: #{generator_forward.1} parent=1 // pred_fallthru
      _
    // Predicated region
    $region70: #{generator_forward.1} parent=1 // pred_check
      _
    $region71: #{generator_forward.1} parent=1 // pred_check_branch
      %151 = sbr.rel (0) target = $region73
    $region72: #{generator_forward.1} parent=1 // pred_region
      %152 = dma.done [#allocation8], 32
    $region73: #{generator_forward.1} parent=1 // pred_fallthru
      _
    // Predicated region
    $region74: #{generator_forward.1} parent=1 // pred_check
      _
    $region75: #{generator_forward.1} parent=1 // pred_check_branch
      %154 = sbr.rel (0) target = $region77
    $region76: #{generator_forward.1} parent=1 // pred_region
      %155 = dma.done [#allocation8], 8192
    $region77: #{generator_forward.1} parent=1 // pred_fallthru
      _
    // Predicated region
    $region78: #{generator_forward.1} parent=1 // pred_check
      _
    $region79: #{generator_forward.1} parent=1 // pred_check_branch
      %157 = sbr.rel (0) target = $region81
    $region80: #{generator_forward.1} parent=1 // pred_region
      %158 = dma.done [#allocation11], 64
    $region81: #{generator_forward.1} parent=1 // pred_fallthru
      _
    // Predicated region
    $region82: #{generator_forward.1} parent=1 // pred_check
      _
    $region83: #{generator_forward.1} parent=1 // pred_check_branch
      %160 = sbr.rel (0) target = $region85
    $region84: #{generator_forward.1} parent=1 // pred_region
      %161 = dma.done [#allocation11], 32768
    $region85: #{generator_forward.1} parent=1 // pred_fallthru
      _
    // Predicated region
    $region86: #{generator_forward.1} parent=1 // pred_check
      _
    $region87: #{generator_forward.1} parent=1 // pred_check_branch
      %163 = sbr.rel (0) target = $region89
    $region88: #{generator_forward.1} parent=1 // pred_region
      %164 = dma.done [#allocation14], 128
    $region89: #{generator_forward.1} parent=1 // pred_fallthru
      _
    // Predicated region
    $region90: #{generator_forward.1} parent=1 // pred_check
      _
    $region91: #{generator_forward.1} parent=1 // pred_check_branch
      %166 = sbr.rel (0) target = $region93
    $region92: #{generator_forward.1} parent=1 // pred_region
      %167 = dma.done [#allocation14], 8192
    $region93: #{generator_forward.1} parent=1 // pred_fallthru
      _
    // Predicated region
    $region94: #{generator_forward.1} parent=1 // pred_check
      _
    $region95: #{generator_forward.1} parent=1 // pred_check_branch
      %169 = sbr.rel (0) target = $region97
    $region96: #{generator_forward.1} parent=1 // pred_region
      %170 = dma.done [#allocation17], 16
    $region97: #{generator_forward.1} parent=1 // pred_fallthru
      _
    %v172 = vld [vmem:[#allocation2] sm:$0xff]
    %v173 = vpack.c.bf16 %v172, %v172
    %v174 = vld [vmem:[%s1] sm:$0xf]
    %v175 = vld [vmem:[%s1 + $0x4] sm:$0xf]
    %v176 = vld [vmem:[#allocation4] sm:$0x1]
    %v178 = vlaneseq
    %v179 = vshrl.u32 %v178, 7
    %v180 = vsub.s32 0, %v179
    %v181 = vrot.slane %v176, %v180
    %v185 = vunpack.c.l.b16 %v174
    %v186 = vunpack.c.l.b16 %v175
    %v187 = vpack.c.b16 %v186, %v185
    %vm189 = vcmask 130048
    %v191 = vsel %vm189, %v173, 0
    %193 = vmatprep.subr.bf16.mxu0 0
    %194 = vmatpush1.bf16.msra.mxu0 %v187
    %195 = vmatprep.subr.bf16.mxu0 0
    %196 = vmatpush1.bf16.msra.mxu0 0
    %197 = vmatprep.subr.bf16.mxu0 0
    %198 = vmatpush1.bf16.msra.mxu0 0
    %199 = vmatprep.subr.bf16.mxu0 0
    %200 = vmatpush1.bf16.msra.mxu0 0
    %201 = vmatprep.subr.bf16.mxu0 0
    %202 = vmatpush1.bf16.msra.mxu0 0
    %203 = vmatprep.subr.bf16.mxu0 0
    %204 = vmatpush1.bf16.msra.mxu0 0
    %205 = vmatprep.subr.bf16.mxu0 0
    %206 = vmatpush1.bf16.msra.mxu0 0
    %207 = vmatprep.subr.bf16.mxu0 0
    %208 = vmatpush1.bf16.msra.mxu0 0
    %209 = vmatprep.subr.bf16.mxu0 0
    %210 = vmatpush1.bf16.msra.mxu0 0
    %211 = vmatprep.subr.bf16.mxu0 0
    %212 = vmatpush1.bf16.msra.mxu0 0
    %213 = vmatprep.subr.bf16.mxu0 0
    %214 = vmatpush1.bf16.msra.mxu0 0
    %215 = vmatprep.subr.bf16.mxu0 0
    %216 = vmatpush1.bf16.msra.mxu0 0
    %217 = vmatprep.subr.bf16.mxu0 0
    %218 = vmatpush1.bf16.msra.mxu0 0
    %219 = vmatprep.subr.bf16.mxu0 0
    %220 = vmatpush1.bf16.msra.mxu0 0
    %221 = vmatprep.subr.bf16.mxu0 0
    %222 = vmatpush1.bf16.msra.mxu0 0
    %223 = vmatprep.subr.bf16.mxu0 0
    %224 = vmatpush1.bf16.msra.mxu0 0
    %225 = vmatprep.mubr.bf16.mxu0 0
    %226 = vmatmul.mubr.bf16.gmra.mrb[0].mxu0 %v191
    %v227 = vpop.f32.mrb[0].mxu0
    %v228 = vadd.f32 %v181, %v227
    %v229 = vpop.f32.mrb[0].mxu0
    %v230 = vpop.f32.mrb[0].mxu0
    %v231 = vpop.f32.mrb[0].mxu0
    %232 = vdwg.mxu0
    %v233 = vmul.f32 %v228, 0.2
    %v234 = vmax.f32 %v228, %v233
    %v235 = vpack.c.bf16 %v234, %v234
    %v236 = vld [vmem:[#allocation6] sm:$0xff]
    %v237 = vld [vmem:[#allocation6 + $0x8] sm:$0xff]
    %v238 = vld [vmem:[#allocation6 + $0x10] sm:$0xff]
    %v239 = vld [vmem:[#allocation6 + $0x18] sm:$0xff]
    %v240 = vld [vmem:[#allocation6 + $0x20] sm:$0xff]
    %v241 = vld [vmem:[#allocation6 + $0x28] sm:$0xff]
    %v242 = vld [vmem:[#allocation6 + $0x30] sm:$0xff]
    %v243 = vld [vmem:[#allocation6 + $0x38] sm:$0xff]
    %v244 = vld [vmem:[#allocation6 + $0x40] sm:$0xff]
    %v245 = vld [vmem:[#allocation6 + $0x48] sm:$0xff]
    %v246 = vld [vmem:[#allocation6 + $0x50] sm:$0xff]
    %v247 = vld [vmem:[#allocation6 + $0x58] sm:$0xff]
    %v248 = vld [vmem:[#allocation6 + $0x60] sm:$0xff]
    %v249 = vld [vmem:[#allocation6 + $0x68] sm:$0xff]
    %v250 = vld [vmem:[#allocation6 + $0x70] sm:$0xff]
    %v251 = vld [vmem:[#allocation6 + $0x78] sm:$0xff]
    %v268 = vunpack.c.l.b16 %v236
    %v269 = vunpack.c.h.b16 %v236
    %v270 = vunpack.c.l.b16 %v237
    %v271 = vunpack.c.h.b16 %v237
    %v272 = vunpack.c.l.b16 %v238
    %v273 = vunpack.c.h.b16 %v238
    %v274 = vunpack.c.l.b16 %v239
    %v275 = vunpack.c.h.b16 %v239
    %v276 = vunpack.c.l.b16 %v240
    %v277 = vunpack.c.h.b16 %v240
    %v278 = vunpack.c.l.b16 %v241
    %v279 = vunpack.c.h.b16 %v241
    %v280 = vunpack.c.l.b16 %v242
    %v281 = vunpack.c.h.b16 %v242
    %v282 = vunpack.c.l.b16 %v243
    %v283 = vunpack.c.h.b16 %v243
    %v284 = vunpack.c.l.b16 %v244
    %v285 = vunpack.c.h.b16 %v244
    %v286 = vunpack.c.l.b16 %v245
    %v287 = vunpack.c.h.b16 %v245
    %v288 = vunpack.c.l.b16 %v246
    %v289 = vunpack.c.h.b16 %v246
    %v290 = vunpack.c.l.b16 %v247
    %v291 = vunpack.c.h.b16 %v247
    %v292 = vunpack.c.l.b16 %v248
    %v293 = vunpack.c.h.b16 %v248
    %v294 = vunpack.c.l.b16 %v249
    %v295 = vunpack.c.h.b16 %v249
    %v296 = vunpack.c.l.b16 %v250
    %v297 = vunpack.c.h.b16 %v250
    %v298 = vunpack.c.l.b16 %v251
    %v299 = vunpack.c.h.b16 %v251
    %v300 = vpack.c.b16 %v270, %v268
    %v301 = vpack.c.b16 %v271, %v269
    %v302 = vpack.c.b16 %v274, %v272
    %v303 = vpack.c.b16 %v275, %v273
    %v304 = vpack.c.b16 %v278, %v276
    %v305 = vpack.c.b16 %v279, %v277
    %v306 = vpack.c.b16 %v282, %v280
    %v307 = vpack.c.b16 %v283, %v281
    %v308 = vpack.c.b16 %v286, %v284
    %v309 = vpack.c.b16 %v287, %v285
    %v310 = vpack.c.b16 %v290, %v288
    %v311 = vpack.c.b16 %v291, %v289
    %v312 = vpack.c.b16 %v294, %v292
    %v313 = vpack.c.b16 %v295, %v293
    %v314 = vpack.c.b16 %v298, %v296
    %v315 = vpack.c.b16 %v299, %v297
    %332 = vmatprep.subr.bf16.mxu0 %v301
    %333 = vmatpush1.bf16.msra.mxu0 %v300
    %334 = vmatprep.subr.bf16.mxu0 %v303
    %335 = vmatpush1.bf16.msra.mxu0 %v302
    %336 = vmatprep.subr.bf16.mxu0 %v305
    %337 = vmatpush1.bf16.msra.mxu0 %v304
    %338 = vmatprep.subr.bf16.mxu0 %v307
    %339 = vmatpush1.bf16.msra.mxu0 %v306
    %340 = vmatprep.subr.bf16.mxu0 %v309
    %341 = vmatpush1.bf16.msra.mxu0 %v308
    %342 = vmatprep.subr.bf16.mxu0 %v311
    %343 = vmatpush1.bf16.msra.mxu0 %v310
    %344 = vmatprep.subr.bf16.mxu0 %v313
    %345 = vmatpush1.bf16.msra.mxu0 %v312
    %346 = vmatprep.subr.bf16.mxu0 %v315
    %347 = vmatpush1.bf16.msra.mxu0 %v314
    %348 = vmatprep.subr.bf16.mxu0 0
    %349 = vmatpush1.bf16.msra.mxu0 0
    %350 = vmatprep.subr.bf16.mxu0 0
    %351 = vmatpush1.bf16.msra.mxu0 0
    %352 = vmatprep.subr.bf16.mxu0 0
    %353 = vmatpush1.bf16.msra.mxu0 0
    %354 = vmatprep.subr.bf16.mxu0 0
    %355 = vmatpush1.bf16.msra.mxu0 0
    %356 = vmatprep.subr.bf16.mxu0 0
    %357 = vmatpush1.bf16.msra.mxu0 0
    %358 = vmatprep.subr.bf16.mxu0 0
    %359 = vmatpush1.bf16.msra.mxu0 0
    %360 = vmatprep.subr.bf16.mxu0 0
    %361 = vmatpush1.bf16.msra.mxu0 0
    %362 = vmatprep.subr.bf16.mxu0 0
    %363 = vmatpush1.bf16.msra.mxu0 0
    %364 = vmatprep.mubr.bf16.mxu0 0
    %365 = vmatmul.mubr.bf16.gmra.mrb[0].mxu0 %v235
    %v366 = vpop.f32.mrb[0].mxu0
    %v367 = vadd.f32 0.0, %v366
    %v368 = vpop.f32.mrb[0].mxu0
    %v369 = vadd.f32 0.0, %v368
    %v370 = vpop.f32.mrb[0].mxu0
    %v371 = vpop.f32.mrb[0].mxu0
    %372 = vdwg.mxu0
    %v373 = vrot.slane %v367, 4
    %v374 = vadd.f32 %v367, %v373
    %v375 = vrot.slane %v374, 2
    %v376 = vadd.f32 %v374, %v375
    %v377 = vrot.slane %v376, 1
    %v378 = vadd.f32 %v376, %v377
    %v379 = vrot.slane %v369, 4
    %v380 = vadd.f32 %v369, %v379
    %v381 = vrot.slane %v380, 2
    %v382 = vadd.f32 %v380, %v381
    %v383 = vrot.slane %v382, 1
    %v384 = vadd.f32 %v382, %v383
    %v385 = vrcp.pop 8.0
    %v386 = vmul.f32 %v378, %v385
    %v387 = vmul.f32 %v384, %v385
    %v388 = vmul.f32 %v367, %v367
    %v389 = vmul.f32 %v369, %v369
    %v390 = vrot.slane %v388, 4
    %v391 = vadd.f32 %v388, %v390
    %v392 = vrot.slane %v391, 2
    %v393 = vadd.f32 %v391, %v392
    %v394 = vrot.slane %v393, 1
    %v395 = vadd.f32 %v393, %v394
    %v396 = vrot.slane %v389, 4
    %v397 = vadd.f32 %v389, %v396
    %v398 = vrot.slane %v397, 2
    %v399 = vadd.f32 %v397, %v398
    %v400 = vrot.slane %v399, 1
    %v401 = vadd.f32 %v399, %v400
    %v402 = vmul.f32 %v395, %v385
    %v403 = vmul.f32 %v401, %v385
    %v404 = vmul.f32 %v386, %v386
    %v405 = vmul.f32 %v387, %v387
    %v406 = vsub.f32 %v402, %v404
    %v407 = vsub.f32 %v403, %v405
    %v408 = vld [vmem:[%s4] sm:$0x3]
    %v409 = vadd.f32 %v406, 0.8
    %v410 = vadd.f32 %v407, 0.8
    %v411 = vrsqrt.pop %v409
    %v412 = vrsqrt.pop %v410
    %v415 = vcombine.low %v411, %v412
    %v417 = vunpack.c.l.s4 1966171168
    %v418 = vunpack.c.0.s8 %v417
    %v419 = vlaneseq
    %v420 = vshrl.u32 %v419, 7
    %v421 = vsub.s32 %v418, %v420
    %v422 = vrot.slane %v415, %v421
    %v424 = vunpack.c.l.s4 1966171168
    %v425 = vunpack.c.0.s8 %v424
    %v426 = vlaneseq
    %v427 = vshrl.u32 %v426, 7
    %v428 = vsub.s32 %v425, %v427
    %v429 = vrot.slane %v422, %v428
    %v431 = vmul.f32 %v408, %v429
    %v432 = vld [vmem:[#allocation7] sm:$0x3]
    %v434 = vlaneseq
    %v435 = vshrl.u32 %v434, 7
    %v436 = vsub.s32 0, %v435
    %v437 = vrot.slane %v431, %v436
    %v438 = vlaneseq
    %v439 = vshrl.u32 %v438, 7
    %v440 = vsub.s32 1, %v439
    %v441 = vrot.slane %v431, %v440
    %v444 = vmul.f32 %v386, %v437
    %v445 = vmul.f32 %v387, %v441
    %v448 = vcombine.low %v444, %v445
    %v450 = vunpack.c.l.s4 1966171168
    %v451 = vunpack.c.0.s8 %v450
    %v452 = vlaneseq
    %v453 = vshrl.u32 %v452, 7
    %v454 = vsub.s32 %v451, %v453
    %v455 = vrot.slane %v448, %v454
    %v457 = vunpack.c.l.s4 1966171168
    %v458 = vunpack.c.0.s8 %v457
    %v459 = vlaneseq
    %v460 = vshrl.u32 %v459, 7
    %v461 = vsub.s32 %v458, %v460
    %v462 = vrot.slane %v455, %v461
    %v464 = vsub.f32 %v432, %v462
    %v465 = vmul.f32 %v367, %v437
    %v466 = vmul.f32 %v369, %v441
    %v468 = vlaneseq
    %v469 = vshrl.u32 %v468, 7
    %v470 = vsub.s32 0, %v469
    %v471 = vrot.slane %v464, %v470
    %v472 = vlaneseq
    %v473 = vshrl.u32 %v472, 7
    %v474 = vsub.s32 1, %v473
    %v475 = vrot.slane %v464, %v474
    %v478 = vadd.f32 %v465, %v471
    %v479 = vadd.f32 %v466, %v475
    %v480 = vmul.f32 %v478, 0.2
    %v481 = vmul.f32 %v479, 0.2
    %v482 = vmax.f32 %v478, %v480
    %v483 = vmax.f32 %v479, %v481
    %v484 = vpack.c.bf16 %v482, %v482
    %v485 = vpack.c.bf16 %v483, %v483
    %v486 = vld [vmem:[#allocation9] sm:$0xff]
    %v487 = vld [vmem:[#allocation9 + $0x8] sm:$0xff]
    %v488 = vld [vmem:[#allocation9 + $0x10] sm:$0xff]
    %v489 = vld [vmem:[#allocation9 + $0x18] sm:$0xff]
    %v490 = vld [vmem:[#allocation9 + $0x20] sm:$0xff]
    %v491 = vld [vmem:[#allocation9 + $0x28] sm:$0xff]
    %v492 = vld [vmem:[#allocation9 + $0x30] sm:$0xff]
    %v493 = vld [vmem:[#allocation9 + $0x38] sm:$0xff]
    %v494 = vld [vmem:[#allocation9 + $0x40] sm:$0xff]
    %v495 = vld [vmem:[#allocation9 + $0x48] sm:$0xff]
    %v496 = vld [vmem:[#allocation9 + $0x50] sm:$0xff]
    %v497 = vld [vmem:[#allocation9 + $0x58] sm:$0xff]
    %v498 = vld [vmem:[#allocation9 + $0x60] sm:$0xff]
    %v499 = vld [vmem:[#allocation9 + $0x68] sm:$0xff]
    %v500 = vld [vmem:[#allocation9 + $0x70] sm:$0xff]
    %v501 = vld [vmem:[#allocation9 + $0x78] sm:$0xff]
    %v502 = vld [vmem:[#allocation9 + $0x80] sm:$0xff]
    %v503 = vld [vmem:[#allocation9 + $0x88] sm:$0xff]
    %v504 = vld [vmem:[#allocation9 + $0x90] sm:$0xff]
    %v505 = vld [vmem:[#allocation9 + $0x98] sm:$0xff]
    %v506 = vld [vmem:[#allocation9 + $0xa0] sm:$0xff]
    %v507 = vld [vmem:[#allocation9 + $0xa8] sm:$0xff]
    %v508 = vld [vmem:[#allocation9 + $0xb0] sm:$0xff]
    %v509 = vld [vmem:[#allocation9 + $0xb8] sm:$0xff]
    %v510 = vld [vmem:[#allocation9 + $0xc0] sm:$0xff]
    %v511 = vld [vmem:[#allocation9 + $0xc8] sm:$0xff]
    %v512 = vld [vmem:[#allocation9 + $0xd0] sm:$0xff]
    %v513 = vld [vmem:[#allocation9 + $0xd8] sm:$0xff]
    %v514 = vld [vmem:[#allocation9 + $0xe0] sm:$0xff]
    %v515 = vld [vmem:[#allocation9 + $0xe8] sm:$0xff]
    %v516 = vld [vmem:[#allocation9 + $0xf0] sm:$0xff]
    %v517 = vld [vmem:[#allocation9 + $0xf8] sm:$0xff]
    %v518 = vld [vmem:[#allocation9 + $0x100] sm:$0xff]
    %v519 = vld [vmem:[#allocation9 + $0x108] sm:$0xff]
    %v520 = vld [vmem:[#allocation9 + $0x110] sm:$0xff]
    %v521 = vld [vmem:[#allocation9 + $0x118] sm:$0xff]
    %v522 = vld [vmem:[#allocation9 + $0x120] sm:$0xff]
    %v523 = vld [vmem:[#allocation9 + $0x128] sm:$0xff]
    %v524 = vld [vmem:[#allocation9 + $0x130] sm:$0xff]
    %v525 = vld [vmem:[#allocation9 + $0x138] sm:$0xff]
    %v526 = vld [vmem:[#allocation9 + $0x140] sm:$0xff]
    %v527 = vld [vmem:[#allocation9 + $0x148] sm:$0xff]
    %v528 = vld [vmem:[#allocation9 + $0x150] sm:$0xff]
    %v529 = vld [vmem:[#allocation9 + $0x158] sm:$0xff]
    %v530 = vld [vmem:[#allocation9 + $0x160] sm:$0xff]
    %v531 = vld [vmem:[#allocation9 + $0x168] sm:$0xff]
    %v532 = vld [vmem:[#allocation9 + $0x170] sm:$0xff]
    %v533 = vld [vmem:[#allocation9 + $0x178] sm:$0xff]
    %v534 = vld [vmem:[#allocation9 + $0x180] sm:$0xff]
    %v535 = vld [vmem:[#allocation9 + $0x188] sm:$0xff]
    %v536 = vld [vmem:[#allocation9 + $0x190] sm:$0xff]
    %v537 = vld [vmem:[#allocation9 + $0x198] sm:$0xff]
    %v538 = vld [vmem:[#allocation9 + $0x1a0] sm:$0xff]
    %v539 = vld [vmem:[#allocation9 + $0x1a8] sm:$0xff]
    %v540 = vld [vmem:[#allocation9 + $0x1b0] sm:$0xff]
    %v541 = vld [vmem:[#allocation9 + $0x1b8] sm:$0xff]
    %v542 = vld [vmem:[#allocation9 + $0x1c0] sm:$0xff]
    %v543 = vld [vmem:[#allocation9 + $0x1c8] sm:$0xff]
    %v544 = vld [vmem:[#allocation9 + $0x1d0] sm:$0xff]
    %v545 = vld [vmem:[#allocation9 + $0x1d8] sm:$0xff]
    %v546 = vld [vmem:[#allocation9 + $0x1e0] sm:$0xff]
    %v547 = vld [vmem:[#allocation9 + $0x1e8] sm:$0xff]
    %v548 = vld [vmem:[#allocation9 + $0x1f0] sm:$0xff]
    %v549 = vld [vmem:[#allocation9 + $0x1f8] sm:$0xff]
    %v614 = vunpack.c.l.b16 %v486
    %v615 = vunpack.c.h.b16 %v486
    %v616 = vunpack.c.l.b16 %v487
    %v617 = vunpack.c.h.b16 %v487
    %v618 = vunpack.c.l.b16 %v488
    %v619 = vunpack.c.h.b16 %v488
    %v620 = vunpack.c.l.b16 %v489
    %v621 = vunpack.c.h.b16 %v489
    %v622 = vunpack.c.l.b16 %v490
    %v623 = vunpack.c.h.b16 %v490
    %v624 = vunpack.c.l.b16 %v491
    %v625 = vunpack.c.h.b16 %v491
    %v626 = vunpack.c.l.b16 %v492
    %v627 = vunpack.c.h.b16 %v492
    %v628 = vunpack.c.l.b16 %v493
    %v629 = vunpack.c.h.b16 %v493
    %v630 = vunpack.c.l.b16 %v494
    %v631 = vunpack.c.h.b16 %v494
    %v632 = vunpack.c.l.b16 %v495
    %v633 = vunpack.c.h.b16 %v495
    %v634 = vunpack.c.l.b16 %v496
    %v635 = vunpack.c.h.b16 %v496
    %v636 = vunpack.c.l.b16 %v497
    %v637 = vunpack.c.h.b16 %v497
    %v638 = vunpack.c.l.b16 %v498
    %v639 = vunpack.c.h.b16 %v498
    %v640 = vunpack.c.l.b16 %v499
    %v641 = vunpack.c.h.b16 %v499
    %v642 = vunpack.c.l.b16 %v500
    %v643 = vunpack.c.h.b16 %v500
    %v644 = vunpack.c.l.b16 %v501
    %v645 = vunpack.c.h.b16 %v501
    %v646 = vunpack.c.l.b16 %v502
    %v647 = vunpack.c.h.b16 %v502
    %v648 = vunpack.c.l.b16 %v503
    %v649 = vunpack.c.h.b16 %v503
    %v650 = vunpack.c.l.b16 %v504
    %v651 = vunpack.c.h.b16 %v504
    %v652 = vunpack.c.l.b16 %v505
    %v653 = vunpack.c.h.b16 %v505
    %v654 = vunpack.c.l.b16 %v506
    %v655 = vunpack.c.h.b16 %v506
    %v656 = vunpack.c.l.b16 %v507
    %v657 = vunpack.c.h.b16 %v507
    %v658 = vunpack.c.l.b16 %v508
    %v659 = vunpack.c.h.b16 %v508
    %v660 = vunpack.c.l.b16 %v509
    %v661 = vunpack.c.h.b16 %v509
    %v662 = vunpack.c.l.b16 %v510
    %v663 = vunpack.c.h.b16 %v510
    %v664 = vunpack.c.l.b16 %v511
    %v665 = vunpack.c.h.b16 %v511
    %v666 = vunpack.c.l.b16 %v512
    %v667 = vunpack.c.h.b16 %v512
    %v668 = vunpack.c.l.b16 %v513
    %v669 = vunpack.c.h.b16 %v513
    %v670 = vunpack.c.l.b16 %v514
    %v671 = vunpack.c.h.b16 %v514
    %v672 = vunpack.c.l.b16 %v515
    %v673 = vunpack.c.h.b16 %v515
    %v674 = vunpack.c.l.b16 %v516
    %v675 = vunpack.c.h.b16 %v516
    %v676 = vunpack.c.l.b16 %v517
    %v677 = vunpack.c.h.b16 %v517
    %v678 = vunpack.c.l.b16 %v518
    %v679 = vunpack.c.h.b16 %v518
    %v680 = vunpack.c.l.b16 %v519
    %v681 = vunpack.c.h.b16 %v519
    %v682 = vunpack.c.l.b16 %v520
    %v683 = vunpack.c.h.b16 %v520
    %v684 = vunpack.c.l.b16 %v521
    %v685 = vunpack.c.h.b16 %v521
    %v686 = vunpack.c.l.b16 %v522
    %v687 = vunpack.c.h.b16 %v522
    %v688 = vunpack.c.l.b16 %v523
    %v689 = vunpack.c.h.b16 %v523
    %v690 = vunpack.c.l.b16 %v524
    %v691 = vunpack.c.h.b16 %v524
    %v692 = vunpack.c.l.b16 %v525
    %v693 = vunpack.c.h.b16 %v525
    %v694 = vunpack.c.l.b16 %v526
    %v695 = vunpack.c.h.b16 %v526
    %v696 = vunpack.c.l.b16 %v527
    %v697 = vunpack.c.h.b16 %v527
    %v698 = vunpack.c.l.b16 %v528
    %v699 = vunpack.c.h.b16 %v528
    %v700 = vunpack.c.l.b16 %v529
    %v701 = vunpack.c.h.b16 %v529
    %v702 = vunpack.c.l.b16 %v530
    %v703 = vunpack.c.h.b16 %v530
    %v704 = vunpack.c.l.b16 %v531
    %v705 = vunpack.c.h.b16 %v531
    %v706 = vunpack.c.l.b16 %v532
    %v707 = vunpack.c.h.b16 %v532
    %v708 = vunpack.c.l.b16 %v533
    %v709 = vunpack.c.h.b16 %v533
    %v710 = vunpack.c.l.b16 %v534
    %v711 = vunpack.c.h.b16 %v534
    %v712 = vunpack.c.l.b16 %v535
    %v713 = vunpack.c.h.b16 %v535
    %v714 = vunpack.c.l.b16 %v536
    %v715 = vunpack.c.h.b16 %v536
    %v716 = vunpack.c.l.b16 %v537
    %v717 = vunpack.c.h.b16 %v537
    %v718 = vunpack.c.l.b16 %v538
    %v719 = vunpack.c.h.b16 %v538
    %v720 = vunpack.c.l.b16 %v539
    %v721 = vunpack.c.h.b16 %v539
    %v722 = vunpack.c.l.b16 %v540
    %v723 = vunpack.c.h.b16 %v540
    %v724 = vunpack.c.l.b16 %v541
    %v725 = vunpack.c.h.b16 %v541
    %v726 = vunpack.c.l.b16 %v542
    %v727 = vunpack.c.h.b16 %v542
    %v728 = vunpack.c.l.b16 %v543
    %v729 = vunpack.c.h.b16 %v543
    %v730 = vunpack.c.l.b16 %v544
    %v731 = vunpack.c.h.b16 %v544
    %v732 = vunpack.c.l.b16 %v545
    %v733 = vunpack.c.h.b16 %v545
    %v734 = vunpack.c.l.b16 %v546
    %v735 = vunpack.c.h.b16 %v546
    %v736 = vunpack.c.l.b16 %v547
    %v737 = vunpack.c.h.b16 %v547
    %v738 = vunpack.c.l.b16 %v548
    %v739 = vunpack.c.h.b16 %v548
    %v740 = vunpack.c.l.b16 %v549
    %v741 = vunpack.c.h.b16 %v549
    %v742 = vpack.c.b16 %v618, %v614
    %v743 = vpack.c.b16 %v619, %v615
    %v744 = vpack.c.b16 %v620, %v616
    %v745 = vpack.c.b16 %v621, %v617
    %v746 = vpack.c.b16 %v626, %v622
    %v747 = vpack.c.b16 %v627, %v623
    %v748 = vpack.c.b16 %v628, %v624
    %v749 = vpack.c.b16 %v629, %v625
    %v750 = vpack.c.b16 %v634, %v630
    %v751 = vpack.c.b16 %v635, %v631
    %v752 = vpack.c.b16 %v636, %v632
    %v753 = vpack.c.b16 %v637, %v633
    %v754 = vpack.c.b16 %v642, %v638
    %v755 = vpack.c.b16 %v643, %v639
    %v756 = vpack.c.b16 %v644, %v640
    %v757 = vpack.c.b16 %v645, %v641
    %v758 = vpack.c.b16 %v650, %v646
    %v759 = vpack.c.b16 %v651, %v647
    %v760 = vpack.c.b16 %v652, %v648
    %v761 = vpack.c.b16 %v653, %v649
    %v762 = vpack.c.b16 %v658, %v654
    %v763 = vpack.c.b16 %v659, %v655
    %v764 = vpack.c.b16 %v660, %v656
    %v765 = vpack.c.b16 %v661, %v657
    %v766 = vpack.c.b16 %v666, %v662
    %v767 = vpack.c.b16 %v667, %v663
    %v768 = vpack.c.b16 %v668, %v664
    %v769 = vpack.c.b16 %v669, %v665
    %v770 = vpack.c.b16 %v674, %v670
    %v771 = vpack.c.b16 %v675, %v671
    %v772 = vpack.c.b16 %v676, %v672
    %v773 = vpack.c.b16 %v677, %v673
    %v774 = vpack.c.b16 %v682, %v678
    %v775 = vpack.c.b16 %v683, %v679
    %v776 = vpack.c.b16 %v684, %v680
    %v777 = vpack.c.b16 %v685, %v681
    %v778 = vpack.c.b16 %v690, %v686
    %v779 = vpack.c.b16 %v691, %v687
    %v780 = vpack.c.b16 %v692, %v688
    %v781 = vpack.c.b16 %v693, %v689
    %v782 = vpack.c.b16 %v698, %v694
    %v783 = vpack.c.b16 %v699, %v695
    %v784 = vpack.c.b16 %v700, %v696
    %v785 = vpack.c.b16 %v701, %v697
    %v786 = vpack.c.b16 %v706, %v702
    %v787 = vpack.c.b16 %v707, %v703
    %v788 = vpack.c.b16 %v708, %v704
    %v789 = vpack.c.b16 %v709, %v705
    %v790 = vpack.c.b16 %v714, %v710
    %v791 = vpack.c.b16 %v715, %v711
    %v792 = vpack.c.b16 %v716, %v712
    %v793 = vpack.c.b16 %v717, %v713
    %v794 = vpack.c.b16 %v722, %v718
    %v795 = vpack.c.b16 %v723, %v719
    %v796 = vpack.c.b16 %v724, %v720
    %v797 = vpack.c.b16 %v725, %v721
    %v798 = vpack.c.b16 %v730, %v726
    %v799 = vpack.c.b16 %v731, %v727
    %v800 = vpack.c.b16 %v732, %v728
    %v801 = vpack.c.b16 %v733, %v729
    %v802 = vpack.c.b16 %v738, %v734
    %v803 = vpack.c.b16 %v739, %v735
    %v804 = vpack.c.b16 %v740, %v736
    %v805 = vpack.c.b16 %v741, %v737
    %870 = vmatprep.subr.bf16.mxu0 %v743
    %871 = vmatpush1.bf16.msra.mxu0 %v742
    %872 = vmatprep.subr.bf16.mxu0 %v747
    %873 = vmatpush1.bf16.msra.mxu0 %v746
    %874 = vmatprep.subr.bf16.mxu0 %v751
    %875 = vmatpush1.bf16.msra.mxu0 %v750
    %876 = vmatprep.subr.bf16.mxu0 %v755
    %877 = vmatpush1.bf16.msra.mxu0 %v754
    %878 = vmatprep.subr.bf16.mxu0 %v759
    %879 = vmatpush1.bf16.msra.mxu0 %v758
    %880 = vmatprep.subr.bf16.mxu0 %v763
    %881 = vmatpush1.bf16.msra.mxu0 %v762
    %882 = vmatprep.subr.bf16.mxu0 %v767
    %883 = vmatpush1.bf16.msra.mxu0 %v766
    %884 = vmatprep.subr.bf16.mxu0 %v771
    %885 = vmatpush1.bf16.msra.mxu0 %v770
    %886 = vmatprep.subr.bf16.mxu0 %v775
    %887 = vmatpush1.bf16.msra.mxu0 %v774
    %888 = vmatprep.subr.bf16.mxu0 %v779
    %889 = vmatpush1.bf16.msra.mxu0 %v778
    %890 = vmatprep.subr.bf16.mxu0 %v783
    %891 = vmatpush1.bf16.msra.mxu0 %v782
    %892 = vmatprep.subr.bf16.mxu0 %v787
    %893 = vmatpush1.bf16.msra.mxu0 %v786
    %894 = vmatprep.subr.bf16.mxu0 %v791
    %895 = vmatpush1.bf16.msra.mxu0 %v790
    %896 = vmatprep.subr.bf16.mxu0 %v795
    %897 = vmatpush1.bf16.msra.mxu0 %v794
    %898 = vmatprep.subr.bf16.mxu0 %v799
    %899 = vmatpush1.bf16.msra.mxu0 %v798
    %900 = vmatprep.subr.bf16.mxu0 %v803
    %901 = vmatpush1.bf16.msra.mxu0 %v802
    %902 = vmatprep.mubr.bf16.mxu0 %v485
    %903 = vmatmul.mubr.bf16.gmra.mrb[0].mxu0 %v484
    %v904 = vpop.f32.mrb[0].mxu0
    %v905 = vadd.f32 0.0, %v904
    %v906 = vpop.f32.mrb[0].mxu0
    %v907 = vadd.f32 0.0, %v906
    %v908 = vpop.f32.mrb[0].mxu0
    %v909 = vpop.f32.mrb[0].mxu0
    %910 = vdwg.mxu0
    %911 = vmatprep.subr.bf16.mxu0 %v745
    %912 = vmatpush1.bf16.msra.mxu0 %v744
    %913 = vmatprep.subr.bf16.mxu0 %v749
    %914 = vmatpush1.bf16.msra.mxu0 %v748
    %915 = vmatprep.subr.bf16.mxu0 %v753
    %916 = vmatpush1.bf16.msra.mxu0 %v752
    %917 = vmatprep.subr.bf16.mxu0 %v757
    %918 = vmatpush1.bf16.msra.mxu0 %v756
    %919 = vmatprep.subr.bf16.mxu0 %v761
    %920 = vmatpush1.bf16.msra.mxu0 %v760
    %921 = vmatprep.subr.bf16.mxu0 %v765
    %922 = vmatpush1.bf16.msra.mxu0 %v764
    %923 = vmatprep.subr.bf16.mxu0 %v769
    %924 = vmatpush1.bf16.msra.mxu0 %v768
    %925 = vmatprep.subr.bf16.mxu0 %v773
    %926 = vmatpush1.bf16.msra.mxu0 %v772
    %927 = vmatprep.subr.bf16.mxu0 %v777
    %928 = vmatpush1.bf16.msra.mxu0 %v776
    %929 = vmatprep.subr.bf16.mxu0 %v781
    %930 = vmatpush1.bf16.msra.mxu0 %v780
    %931 = vmatprep.subr.bf16.mxu0 %v785
    %932 = vmatpush1.bf16.msra.mxu0 %v784
    %933 = vmatprep.subr.bf16.mxu0 %v789
    %934 = vmatpush1.bf16.msra.mxu0 %v788
    %935 = vmatprep.subr.bf16.mxu0 %v793
    %936 = vmatpush1.bf16.msra.mxu0 %v792
    %937 = vmatprep.subr.bf16.mxu0 %v797
    %938 = vmatpush1.bf16.msra.mxu0 %v796
    %939 = vmatprep.subr.bf16.mxu0 %v801
    %940 = vmatpush1.bf16.msra.mxu0 %v800
    %941 = vmatprep.subr.bf16.mxu0 %v805
    %942 = vmatpush1.bf16.msra.mxu0 %v804
    %943 = vmatprep.mubr.bf16.mxu0 %v485
    %944 = vmatmul.mubr.bf16.gmra.mrb[0].mxu0 %v484
    %v945 = vpop.f32.mrb[0].mxu0
    %v946 = vadd.f32 0.0, %v945
    %v947 = vpop.f32.mrb[0].mxu0
    %v948 = vadd.f32 0.0, %v947
    %v949 = vpop.f32.mrb[0].mxu0
    %v950 = vpop.f32.mrb[0].mxu0
    %951 = vdwg.mxu0
    %v952 = vrot.slane %v905, 4
    %v953 = vadd.f32 %v905, %v952
    %v954 = vrot.slane %v953, 2
    %v955 = vadd.f32 %v953, %v954
    %v956 = vrot.slane %v955, 1
    %v957 = vadd.f32 %v955, %v956
    %v958 = vrot.slane %v907, 4
    %v959 = vadd.f32 %v907, %v958
    %v960 = vrot.slane %v959, 2
    %v961 = vadd.f32 %v959, %v960
    %v962 = vrot.slane %v961, 1
    %v963 = vadd.f32 %v961, %v962
    %v964 = vrot.slane %v946, 4
    %v965 = vadd.f32 %v946, %v964
    %v966 = vrot.slane %v965, 2
    %v967 = vadd.f32 %v965, %v966
    %v968 = vrot.slane %v967, 1
    %v969 = vadd.f32 %v967, %v968
    %v970 = vrot.slane %v948, 4
    %v971 = vadd.f32 %v948, %v970
    %v972 = vrot.slane %v971, 2
    %v973 = vadd.f32 %v971, %v972
    %v974 = vrot.slane %v973, 1
    %v975 = vadd.f32 %v973, %v974
    %v976 = vmul.f32 %v957, %v385
    %v977 = vmul.f32 %v963, %v385
    %v978 = vmul.f32 %v969, %v385
    %v979 = vmul.f32 %v975, %v385
    %v980 = vmul.f32 %v905, %v905
    %v981 = vmul.f32 %v907, %v907
    %v982 = vmul.f32 %v946, %v946
    %v983 = vmul.f32 %v948, %v948
    %v984 = vrot.slane %v980, 4
    %v985 = vadd.f32 %v980, %v984
    %v986 = vrot.slane %v985, 2
    %v987 = vadd.f32 %v985, %v986
    %v988 = vrot.slane %v987, 1
    %v989 = vadd.f32 %v987, %v988
    %v990 = vrot.slane %v981, 4
    %v991 = vadd.f32 %v981, %v990
    %v992 = vrot.slane %v991, 2
    %v993 = vadd.f32 %v991, %v992
    %v994 = vrot.slane %v993, 1
    %v995 = vadd.f32 %v993, %v994
    %v996 = vrot.slane %v982, 4
    %v997 = vadd.f32 %v982, %v996
    %v998 = vrot.slane %v997, 2
    %v999 = vadd.f32 %v997, %v998
    %v1000 = vrot.slane %v999, 1
    %v1001 = vadd.f32 %v999, %v1000
    %v1002 = vrot.slane %v983, 4
    %v1003 = vadd.f32 %v983, %v1002
    %v1004 = vrot.slane %v1003, 2
    %v1005 = vadd.f32 %v1003, %v1004
    %v1006 = vrot.slane %v1005, 1
    %v1007 = vadd.f32 %v1005, %v1006
    %v1008 = vmul.f32 %v989, %v385
    %v1009 = vmul.f32 %v995, %v385
    %v1010 = vmul.f32 %v1001, %v385
    %v1011 = vmul.f32 %v1007, %v385
    %v1012 = vmul.f32 %v976, %v976
    %v1013 = vmul.f32 %v977, %v977
    %v1014 = vmul.f32 %v978, %v978
    %v1015 = vmul.f32 %v979, %v979
    %v1016 = vsub.f32 %v1008, %v1012
    %v1017 = vsub.f32 %v1009, %v1013
    %v1018 = vsub.f32 %v1010, %v1014
    %v1019 = vsub.f32 %v1011, %v1015
    %v1020 = vld [vmem:[%s7] sm:$0xf]
    %v1021 = vadd.f32 %v1016, 0.8
    %v1022 = vadd.f32 %v1017, 0.8
    %v1023 = vadd.f32 %v1018, 0.8
    %v1024 = vadd.f32 %v1019, 0.8
    %v1025 = vrsqrt.pop %v1021
    %v1026 = vrsqrt.pop %v1022
    %v1027 = vrsqrt.pop %v1023
    %v1028 = vrsqrt.pop %v1024
    %v1033 = vcombine.low %v1025, %v1026
    %v1034 = vcombine.low %v1027, %v1028
    %v1036 = vunpack.c.l.s4 1966171168
    %v1037 = vunpack.c.0.s8 %v1036
    %v1038 = vlaneseq
    %v1039 = vshrl.u32 %v1038, 7
    %v1040 = vsub.s32 %v1037, %v1039
    %v1041 = vrot.slane %v1033, %v1040
    %v1043 = vunpack.c.l.s4 1966171168
    %v1044 = vunpack.c.0.s8 %v1043
    %v1045 = vlaneseq
    %v1046 = vshrl.u32 %v1045, 7
    %v1047 = vsub.s32 %v1044, %v1046
    %v1048 = vrot.slane %v1034, %v1047
    %v1049 = vcombine.low %v1041, %v1048
    %v1051 = vunpack.c.l.s4 1966171168
    %v1052 = vunpack.c.0.s8 %v1051
    %v1053 = vlaneseq
    %v1054 = vshrl.u32 %v1053, 7
    %v1055 = vsub.s32 %v1052, %v1054
    %v1056 = vrot.slane %v1049, %v1055
    %v1058 = vmul.f32 %v1020, %v1056
    %v1059 = vld [vmem:[#allocation10] sm:$0xf]
    %v1061 = vlaneseq
    %v1062 = vshrl.u32 %v1061, 7
    %v1063 = vsub.s32 0, %v1062
    %v1064 = vrot.slane %v1058, %v1063
    %v1065 = vlaneseq
    %v1066 = vshrl.u32 %v1065, 7
    %v1067 = vsub.s32 1, %v1066
    %v1068 = vrot.slane %v1058, %v1067
    %v1069 = vlaneseq
    %v1070 = vshrl.u32 %v1069, 7
    %v1071 = vsub.s32 2, %v1070
    %v1072 = vrot.slane %v1058, %v1071
    %v1073 = vlaneseq
    %v1074 = vshrl.u32 %v1073, 7
    %v1075 = vsub.s32 3, %v1074
    %v1076 = vrot.slane %v1058, %v1075
    %v1081 = vmul.f32 %v976, %v1064
    %v1082 = vmul.f32 %v977, %v1068
    %v1083 = vmul.f32 %v978, %v1072
    %v1084 = vmul.f32 %v979, %v1076
    %v1089 = vcombine.low %v1081, %v1082
    %v1090 = vcombine.low %v1083, %v1084
    %v1092 = vunpack.c.l.s4 1966171168
    %v1093 = vunpack.c.0.s8 %v1092
    %v1094 = vlaneseq
    %v1095 = vshrl.u32 %v1094, 7
    %v1096 = vsub.s32 %v1093, %v1095
    %v1097 = vrot.slane %v1089, %v1096
    %v1099 = vunpack.c.l.s4 1966171168
    %v1100 = vunpack.c.0.s8 %v1099
    %v1101 = vlaneseq
    %v1102 = vshrl.u32 %v1101, 7
    %v1103 = vsub.s32 %v1100, %v1102
    %v1104 = vrot.slane %v1090, %v1103
    %v1105 = vcombine.low %v1097, %v1104
    %v1107 = vunpack.c.l.s4 1966171168
    %v1108 = vunpack.c.0.s8 %v1107
    %v1109 = vlaneseq
    %v1110 = vshrl.u32 %v1109, 7
    %v1111 = vsub.s32 %v1108, %v1110
    %v1112 = vrot.slane %v1105, %v1111
    %v1114 = vsub.f32 %v1059, %v1112
    %v1115 = vmul.f32 %v905, %v1064
    %v1116 = vmul.f32 %v907, %v1068
    %v1117 = vmul.f32 %v946, %v1072
    %v1118 = vmul.f32 %v948, %v1076
    %v1120 = vlaneseq
    %v1121 = vshrl.u32 %v1120, 7
    %v1122 = vsub.s32 0, %v1121
    %v1123 = vrot.slane %v1114, %v1122
    %v1124 = vlaneseq
    %v1125 = vshrl.u32 %v1124, 7
    %v1126 = vsub.s32 1, %v1125
    %v1127 = vrot.slane %v1114, %v1126
    %v1128 = vlaneseq
    %v1129 = vshrl.u32 %v1128, 7
    %v1130 = vsub.s32 2, %v1129
    %v1131 = vrot.slane %v1114, %v1130
    %v1132 = vlaneseq
    %v1133 = vshrl.u32 %v1132, 7
    %v1134 = vsub.s32 3, %v1133
    %v1135 = vrot.slane %v1114, %v1134
    %v1140 = vadd.f32 %v1115, %v1123
    %v1141 = vadd.f32 %v1116, %v1127
    %v1142 = vadd.f32 %v1117, %v1131
    %v1143 = vadd.f32 %v1118, %v1135
    %v1144 = vmul.f32 %v1140, 0.2
    %v1145 = vmul.f32 %v1141, 0.2
    %v1146 = vmul.f32 %v1142, 0.2
    %v1147 = vmul.f32 %v1143, 0.2
    %v1148 = vmax.f32 %v1140, %v1144
    %v1149 = vmax.f32 %v1141, %v1145
    %v1150 = vmax.f32 %v1142, %v1146
    %v1151 = vmax.f32 %v1143, %v1147
    %v1152 = vpack.c.bf16 %v1148, %v1148
    %v1153 = vpack.c.bf16 %v1149, %v1149
    %v1154 = vpack.c.bf16 %v1150, %v1150
    %v1155 = vpack.c.bf16 %v1151, %v1151
    %v1156 = vld [vmem:[#allocation12] sm:$0xff]
    %v1157 = vld [vmem:[#allocation12 + $0x8] sm:$0xff]
    %v1158 = vld [vmem:[#allocation12 + $0x10] sm:$0xff]
    %v1159 = vld [vmem:[#allocation12 + $0x18] sm:$0xff]
    %v1160 = vld [vmem:[#allocation12 + $0x20] sm:$0xff]
    %v1161 = vld [vmem:[#allocation12 + $0x28] sm:$0xff]
    %v1162 = vld [vmem:[#allocation12 + $0x30] sm:$0xff]
    %v1163 = vld [vmem:[#allocation12 + $0x38] sm:$0xff]
    %v1164 = vld [vmem:[#allocation12 + $0x40] sm:$0xff]
    %v1165 = vld [vmem:[#allocation12 + $0x48] sm:$0xff]
    %v1166 = vld [vmem:[#allocation12 + $0x50] sm:$0xff]
    %v1167 = vld [vmem:[#allocation12 + $0x58] sm:$0xff]
    %v1168 = vld [vmem:[#allocation12 + $0x60] sm:$0xff]
    %v1169 = vld [vmem:[#allocation12 + $0x68] sm:$0xff]
    %v1170 = vld [vmem:[#allocation12 + $0x70] sm:$0xff]
    %v1171 = vld [vmem:[#allocation12 + $0x78] sm:$0xff]
    %v1172 = vld [vmem:[#allocation12 + $0x80] sm:$0xff]
    %v1173 = vld [vmem:[#allocation12 + $0x88] sm:$0xff]
    %v1174 = vld [vmem:[#allocation12 + $0x90] sm:$0xff]
    %v1175 = vld [vmem:[#allocation12 + $0x98] sm:$0xff]
    %v1176 = vld [vmem:[#allocation12 + $0xa0] sm:$0xff]
    %v1177 = vld [vmem:[#allocation12 + $0xa8] sm:$0xff]
    %v1178 = vld [vmem:[#allocation12 + $0xb0] sm:$0xff]
    %v1179 = vld [vmem:[#allocation12 + $0xb8] sm:$0xff]
    %v1180 = vld [vmem:[#allocation12 + $0xc0] sm:$0xff]
    %v1181 = vld [vmem:[#allocation12 + $0xc8] sm:$0xff]
    %v1182 = vld [vmem:[#allocation12 + $0xd0] sm:$0xff]
    %v1183 = vld [vmem:[#allocation12 + $0xd8] sm:$0xff]
    %v1184 = vld [vmem:[#allocation12 + $0xe0] sm:$0xff]
    %v1185 = vld [vmem:[#allocation12 + $0xe8] sm:$0xff]
    %v1186 = vld [vmem:[#allocation12 + $0xf0] sm:$0xff]
    %v1187 = vld [vmem:[#allocation12 + $0xf8] sm:$0xff]
    %v1188 = vld [vmem:[#allocation12 + $0x100] sm:$0xff]
    %v1189 = vld [vmem:[#allocation12 + $0x108] sm:$0xff]
    %v1190 = vld [vmem:[#allocation12 + $0x110] sm:$0xff]
    %v1191 = vld [vmem:[#allocation12 + $0x118] sm:$0xff]
    %v1192 = vld [vmem:[#allocation12 + $0x120] sm:$0xff]
    %v1193 = vld [vmem:[#allocation12 + $0x128] sm:$0xff]
    %v1194 = vld [vmem:[#allocation12 + $0x130] sm:$0xff]
    %v1195 = vld [vmem:[#allocation12 + $0x138] sm:$0xff]
    %v1196 = vld [vmem:[#allocation12 + $0x140] sm:$0xff]
    %v1197 = vld [vmem:[#allocation12 + $0x148] sm:$0xff]
    %v1198 = vld [vmem:[#allocation12 + $0x150] sm:$0xff]
    %v1199 = vld [vmem:[#allocation12 + $0x158] sm:$0xff]
    %v1200 = vld [vmem:[#allocation12 + $0x160] sm:$0xff]
    %v1201 = vld [vmem:[#allocation12 + $0x168] sm:$0xff]
    %v1202 = vld [vmem:[#allocation12 + $0x170] sm:$0xff]
    %v1203 = vld [vmem:[#allocation12 + $0x178] sm:$0xff]
    %v1204 = vld [vmem:[#allocation12 + $0x180] sm:$0xff]
    %v1205 = vld [vmem:[#allocation12 + $0x188] sm:$0xff]
    %v1206 = vld [vmem:[#allocation12 + $0x190] sm:$0xff]
    %v1207 = vld [vmem:[#allocation12 + $0x198] sm:$0xff]
    %v1208 = vld [vmem:[#allocation12 + $0x1a0] sm:$0xff]
    %v1209 = vld [vmem:[#allocation12 + $0x1a8] sm:$0xff]
    %v1210 = vld [vmem:[#allocation12 + $0x1b0] sm:$0xff]
    %v1211 = vld [vmem:[#allocation12 + $0x1b8] sm:$0xff]
    %v1212 = vld [vmem:[#allocation12 + $0x1c0] sm:$0xff]
    %v1213 = vld [vmem:[#allocation12 + $0x1c8] sm:$0xff]
    %v1214 = vld [vmem:[#allocation12 + $0x1d0] sm:$0xff]
    %v1215 = vld [vmem:[#allocation12 + $0x1d8] sm:$0xff]
    %v1216 = vld [vmem:[#allocation12 + $0x1e0] sm:$0xff]
    %v1217 = vld [vmem:[#allocation12 + $0x1e8] sm:$0xff]
    %v1218 = vld [vmem:[#allocation12 + $0x1f0] sm:$0xff]
    %v1219 = vld [vmem:[#allocation12 + $0x1f8] sm:$0xff]
    %v1220 = vld [vmem:[#allocation12 + $0x200] sm:$0xff]
    %v1221 = vld [vmem:[#allocation12 + $0x208] sm:$0xff]
    %v1222 = vld [vmem:[#allocation12 + $0x210] sm:$0xff]
    %v1223 = vld [vmem:[#allocation12 + $0x218] sm:$0xff]
    %v1224 = vld [vmem:[#allocation12 + $0x220] sm:$0xff]
    %v1225 = vld [vmem:[#allocation12 + $0x228] sm:$0xff]
    %v1226 = vld [vmem:[#allocation12 + $0x230] sm:$0xff]
    %v1227 = vld [vmem:[#allocation12 + $0x238] sm:$0xff]
    %v1228 = vld [vmem:[#allocation12 + $0x240] sm:$0xff]
    %v1229 = vld [vmem:[#allocation12 + $0x248] sm:$0xff]
    %v1230 = vld [vmem:[#allocation12 + $0x250] sm:$0xff]
    %v1231 = vld [vmem:[#allocation12 + $0x258] sm:$0xff]
    %v1232 = vld [vmem:[#allocation12 + $0x260] sm:$0xff]
    %v1233 = vld [vmem:[#allocation12 + $0x268] sm:$0xff]
    %v1234 = vld [vmem:[#allocation12 + $0x270] sm:$0xff]
    %v1235 = vld [vmem:[#allocation12 + $0x278] sm:$0xff]
    %v1236 = vld [vmem:[#allocation12 + $0x280] sm:$0xff]
    %v1237 = vld [vmem:[#allocation12 + $0x288] sm:$0xff]
    %v1238 = vld [vmem:[#allocation12 + $0x290] sm:$0xff]
    %v1239 = vld [vmem:[#allocation12 + $0x298] sm:$0xff]
    %v1240 = vld [vmem:[#allocation12 + $0x2a0] sm:$0xff]
    %v1241 = vld [vmem:[#allocation12 + $0x2a8] sm:$0xff]
    %v1242 = vld [vmem:[#allocation12 + $0x2b0] sm:$0xff]
    %v1243 = vld [vmem:[#allocation12 + $0x2b8] sm:$0xff]
    %v1244 = vld [vmem:[#allocation12 + $0x2c0] sm:$0xff]
    %v1245 = vld [vmem:[#allocation12 + $0x2c8] sm:$0xff]
    %v1246 = vld [vmem:[#allocation12 + $0x2d0] sm:$0xff]
    %v1247 = vld [vmem:[#allocation12 + $0x2d8] sm:$0xff]
    %v1248 = vld [vmem:[#allocation12 + $0x2e0] sm:$0xff]
    %v1249 = vld [vmem:[#allocation12 + $0x2e8] sm:$0xff]
    %v1250 = vld [vmem:[#allocation12 + $0x2f0] sm:$0xff]
    %v1251 = vld [vmem:[#allocation12 + $0x2f8] sm:$0xff]
    %v1252 = vld [vmem:[#allocation12 + $0x300] sm:$0xff]
    %v1253 = vld [vmem:[#allocation12 + $0x308] sm:$0xff]
    %v1254 = vld [vmem:[#allocation12 + $0x310] sm:$0xff]
    %v1255 = vld [vmem:[#allocation12 + $0x318] sm:$0xff]
    %v1256 = vld [vmem:[#allocation12 + $0x320] sm:$0xff]
    %v1257 = vld [vmem:[#allocation12 + $0x328] sm:$0xff]
    %v1258 = vld [vmem:[#allocation12 + $0x330] sm:$0xff]
    %v1259 = vld [vmem:[#allocation12 + $0x338] sm:$0xff]
    %v1260 = vld [vmem:[#allocation12 + $0x340] sm:$0xff]
    %v1261 = vld [vmem:[#allocation12 + $0x348] sm:$0xff]
    %v1262 = vld [vmem:[#allocation12 + $0x350] sm:$0xff]
    %v1263 = vld [vmem:[#allocation12 + $0x358] sm:$0xff]
    %v1264 = vld [vmem:[#allocation12 + $0x360] sm:$0xff]
    %v1265 = vld [vmem:[#allocation12 + $0x368] sm:$0xff]
    %v1266 = vld [vmem:[#allocation12 + $0x370] sm:$0xff]
    %v1267 = vld [vmem:[#allocation12 + $0x378] sm:$0xff]
    %v1268 = vld [vmem:[#allocation12 + $0x380] sm:$0xff]
    %v1269 = vld [vmem:[#allocation12 + $0x388] sm:$0xff]
    %v1270 = vld [vmem:[#allocation12 + $0x390] sm:$0xff]
    %v1271 = vld [vmem:[#allocation12 + $0x398] sm:$0xff]
    %v1272 = vld [vmem:[#allocation12 + $0x3a0] sm:$0xff]
    %v1273 = vld [vmem:[#allocation12 + $0x3a8] sm:$0xff]
    %v1274 = vld [vmem:[#allocation12 + $0x3b0] sm:$0xff]
    %v1275 = vld [vmem:[#allocation12 + $0x3b8] sm:$0xff]
    %v1276 = vld [vmem:[#allocation12 + $0x3c0] sm:$0xff]
    %v1277 = vld [vmem:[#allocation12 + $0x3c8] sm:$0xff]
    %v1278 = vld [vmem:[#allocation12 + $0x3d0] sm:$0xff]
    %v1279 = vld [vmem:[#allocation12 + $0x3d8] sm:$0xff]
    %v1280 = vld [vmem:[#allocation12 + $0x3e0] sm:$0xff]
    %v1281 = vld [vmem:[#allocation12 + $0x3e8] sm:$0xff]
    %v1282 = vld [vmem:[#allocation12 + $0x3f0] sm:$0xff]
    %v1283 = vld [vmem:[#allocation12 + $0x3f8] sm:$0xff]
    %v1284 = vld [vmem:[#allocation12 + $0x400] sm:$0xff]
    %v1285 = vld [vmem:[#allocation12 + $0x408] sm:$0xff]
    %v1286 = vld [vmem:[#allocation12 + $0x410] sm:$0xff]
    %v1287 = vld [vmem:[#allocation12 + $0x418] sm:$0xff]
    %v1288 = vld [vmem:[#allocation12 + $0x420] sm:$0xff]
    %v1289 = vld [vmem:[#allocation12 + $0x428] sm:$0xff]
    %v1290 = vld [vmem:[#allocation12 + $0x430] sm:$0xff]
    %v1291 = vld [vmem:[#allocation12 + $0x438] sm:$0xff]
    %v1292 = vld [vmem:[#allocation12 + $0x440] sm:$0xff]
    %v1293 = vld [vmem:[#allocation12 + $0x448] sm:$0xff]
    %v1294 = vld [vmem:[#allocation12 + $0x450] sm:$0xff]
    %v1295 = vld [vmem:[#allocation12 + $0x458] sm:$0xff]
    %v1296 = vld [vmem:[#allocation12 + $0x460] sm:$0xff]
    %v1297 = vld [vmem:[#allocation12 + $0x468] sm:$0xff]
    %v1298 = vld [vmem:[#allocation12 + $0x470] sm:$0xff]
    %v1299 = vld [vmem:[#allocation12 + $0x478] sm:$0xff]
    %v1300 = vld [vmem:[#allocation12 + $0x480] sm:$0xff]
    %v1301 = vld [vmem:[#allocation12 + $0x488] sm:$0xff]
    %v1302 = vld [vmem:[#allocation12 + $0x490] sm:$0xff]
    %v1303 = vld [vmem:[#allocation12 + $0x498] sm:$0xff]
    %v1304 = vld [vmem:[#allocation12 + $0x4a0] sm:$0xff]
    %v1305 = vld [vmem:[#allocation12 + $0x4a8] sm:$0xff]
    %v1306 = vld [vmem:[#allocation12 + $0x4b0] sm:$0xff]
    %v1307 = vld [vmem:[#allocation12 + $0x4b8] sm:$0xff]
    %v1308 = vld [vmem:[#allocation12 + $0x4c0] sm:$0xff]
    %v1309 = vld [vmem:[#allocation12 + $0x4c8] sm:$0xff]
    %v1310 = vld [vmem:[#allocation12 + $0x4d0] sm:$0xff]
    %v1311 = vld [vmem:[#allocation12 + $0x4d8] sm:$0xff]
    %v1312 = vld [vmem:[#allocation12 + $0x4e0] sm:$0xff]
    %v1313 = vld [vmem:[#allocation12 + $0x4e8] sm:$0xff]
    %v1314 = vld [vmem:[#allocation12 + $0x4f0] sm:$0xff]
    %v1315 = vld [vmem:[#allocation12 + $0x4f8] sm:$0xff]
    %v1316 = vld [vmem:[#allocation12 + $0x500] sm:$0xff]
    %v1317 = vld [vmem:[#allocation12 + $0x508] sm:$0xff]
    %v1318 = vld [vmem:[#allocation12 + $0x510] sm:$0xff]
    %v1319 = vld [vmem:[#allocation12 + $0x518] sm:$0xff]
    %v1320 = vld [vmem:[#allocation12 + $0x520] sm:$0xff]
    %v1321 = vld [vmem:[#allocation12 + $0x528] sm:$0xff]
    %v1322 = vld [vmem:[#allocation12 + $0x530] sm:$0xff]
    %v1323 = vld [vmem:[#allocation12 + $0x538] sm:$0xff]
    %v1324 = vld [vmem:[#allocation12 + $0x540] sm:$0xff]
    %v1325 = vld [vmem:[#allocation12 + $0x548] sm:$0xff]
    %v1326 = vld [vmem:[#allocation12 + $0x550] sm:$0xff]
    %v1327 = vld [vmem:[#allocation12 + $0x558] sm:$0xff]
    %v1328 = vld [vmem:[#allocation12 + $0x560] sm:$0xff]
    %v1329 = vld [vmem:[#allocation12 + $0x568] sm:$0xff]
    %v1330 = vld [vmem:[#allocation12 + $0x570] sm:$0xff]
    %v1331 = vld [vmem:[#allocation12 + $0x578] sm:$0xff]
    %v1332 = vld [vmem:[#allocation12 + $0x580] sm:$0xff]
    %v1333 = vld [vmem:[#allocation12 + $0x588] sm:$0xff]
    %v1334 = vld [vmem:[#allocation12 + $0x590] sm:$0xff]
    %v1335 = vld [vmem:[#allocation12 + $0x598] sm:$0xff]
    %v1336 = vld [vmem:[#allocation12 + $0x5a0] sm:$0xff]
    %v1337 = vld [vmem:[#allocation12 + $0x5a8] sm:$0xff]
    %v1338 = vld [vmem:[#allocation12 + $0x5b0] sm:$0xff]
    %v1339 = vld [vmem:[#allocation12 + $0x5b8] sm:$0xff]
    %v1340 = vld [vmem:[#allocation12 + $0x5c0] sm:$0xff]
    %v1341 = vld [vmem:[#allocation12 + $0x5c8] sm:$0xff]
    %v1342 = vld [vmem:[#allocation12 + $0x5d0] sm:$0xff]
    %v1343 = vld [vmem:[#allocation12 + $0x5d8] sm:$0xff]
    %v1344 = vld [vmem:[#allocation12 + $0x5e0] sm:$0xff]
    %v1345 = vld [vmem:[#allocation12 + $0x5e8] sm:$0xff]
    %v1346 = vld [vmem:[#allocation12 + $0x5f0] sm:$0xff]
    %v1347 = vld [vmem:[#allocation12 + $0x5f8] sm:$0xff]
    %v1348 = vld [vmem:[#allocation12 + $0x600] sm:$0xff]
    %v1349 = vld [vmem:[#allocation12 + $0x608] sm:$0xff]
    %v1350 = vld [vmem:[#allocation12 + $0x610] sm:$0xff]
    %v1351 = vld [vmem:[#allocation12 + $0x618] sm:$0xff]
    %v1352 = vld [vmem:[#allocation12 + $0x620] sm:$0xff]
    %v1353 = vld [vmem:[#allocation12 + $0x628] sm:$0xff]
    %v1354 = vld [vmem:[#allocation12 + $0x630] sm:$0xff]
    %v1355 = vld [vmem:[#allocation12 + $0x638] sm:$0xff]
    %v1356 = vld [vmem:[#allocation12 + $0x640] sm:$0xff]
    %v1357 = vld [vmem:[#allocation12 + $0x648] sm:$0xff]
    %v1358 = vld [vmem:[#allocation12 + $0x650] sm:$0xff]
    %v1359 = vld [vmem:[#allocation12 + $0x658] sm:$0xff]
    %v1360 = vld [vmem:[#allocation12 + $0x660] sm:$0xff]
    %v1361 = vld [vmem:[#allocation12 + $0x668] sm:$0xff]
    %v1362 = vld [vmem:[#allocation12 + $0x670] sm:$0xff]
    %v1363 = vld [vmem:[#allocation12 + $0x678] sm:$0xff]
    %v1364 = vld [vmem:[#allocation12 + $0x680] sm:$0xff]
    %v1365 = vld [vmem:[#allocation12 + $0x688] sm:$0xff]
    %v1366 = vld [vmem:[#allocation12 + $0x690] sm:$0xff]
    %v1367 = vld [vmem:[#allocation12 + $0x698] sm:$0xff]
    %v1368 = vld [vmem:[#allocation12 + $0x6a0] sm:$0xff]
    %v1369 = vld [vmem:[#allocation12 + $0x6a8] sm:$0xff]
    %v1370 = vld [vmem:[#allocation12 + $0x6b0] sm:$0xff]
    %v1371 = vld [vmem:[#allocation12 + $0x6b8] sm:$0xff]
    %v1372 = vld [vmem:[#allocation12 + $0x6c0] sm:$0xff]
    %v1373 = vld [vmem:[#allocation12 + $0x6c8] sm:$0xff]
    %v1374 = vld [vmem:[#allocation12 + $0x6d0] sm:$0xff]
    %v1375 = vld [vmem:[#allocation12 + $0x6d8] sm:$0xff]
    %v1376 = vld [vmem:[#allocation12 + $0x6e0] sm:$0xff]
    %v1377 = vld [vmem:[#allocation12 + $0x6e8] sm:$0xff]
    %v1378 = vld [vmem:[#allocation12 + $0x6f0] sm:$0xff]
    %v1379 = vld [vmem:[#allocation12 + $0x6f8] sm:$0xff]
    %v1380 = vld [vmem:[#allocation12 + $0x700] sm:$0xff]
    %v1381 = vld [vmem:[#allocation12 + $0x708] sm:$0xff]
    %v1382 = vld [vmem:[#allocation12 + $0x710] sm:$0xff]
    %v1383 = vld [vmem:[#allocation12 + $0x718] sm:$0xff]
    %v1384 = vld [vmem:[#allocation12 + $0x720] sm:$0xff]
    %v1385 = vld [vmem:[#allocation12 + $0x728] sm:$0xff]
    %v1386 = vld [vmem:[#allocation12 + $0x730] sm:$0xff]
    %v1387 = vld [vmem:[#allocation12 + $0x738] sm:$0xff]
    %v1388 = vld [vmem:[#allocation12 + $0x740] sm:$0xff]
    %v1389 = vld [vmem:[#allocation12 + $0x748] sm:$0xff]
    %v1390 = vld [vmem:[#allocation12 + $0x750] sm:$0xff]
    %v1391 = vld [vmem:[#allocation12 + $0x758] sm:$0xff]
    %v1392 = vld [vmem:[#allocation12 + $0x760] sm:$0xff]
    %v1393 = vld [vmem:[#allocation12 + $0x768] sm:$0xff]
    %v1394 = vld [vmem:[#allocation12 + $0x770] sm:$0xff]
    %v1395 = vld [vmem:[#allocation12 + $0x778] sm:$0xff]
    %v1396 = vld [vmem:[#allocation12 + $0x780] sm:$0xff]
    %v1397 = vld [vmem:[#allocation12 + $0x788] sm:$0xff]
    %v1398 = vld [vmem:[#allocation12 + $0x790] sm:$0xff]
    %v1399 = vld [vmem:[#allocation12 + $0x798] sm:$0xff]
    %v1400 = vld [vmem:[#allocation12 + $0x7a0] sm:$0xff]
    %v1401 = vld [vmem:[#allocation12 + $0x7a8] sm:$0xff]
    %v1402 = vld [vmem:[#allocation12 + $0x7b0] sm:$0xff]
    %v1403 = vld [vmem:[#allocation12 + $0x7b8] sm:$0xff]
    %v1404 = vld [vmem:[#allocation12 + $0x7c0] sm:$0xff]
    %v1405 = vld [vmem:[#allocation12 + $0x7c8] sm:$0xff]
    %v1406 = vld [vmem:[#allocation12 + $0x7d0] sm:$0xff]
    %v1407 = vld [vmem:[#allocation12 + $0x7d8] sm:$0xff]
    %v1408 = vld [vmem:[#allocation12 + $0x7e0] sm:$0xff]
    %v1409 = vld [vmem:[#allocation12 + $0x7e8] sm:$0xff]
    %v1410 = vld [vmem:[#allocation12 + $0x7f0] sm:$0xff]
    %v1411 = vld [vmem:[#allocation12 + $0x7f8] sm:$0xff]
    %v1668 = vunpack.c.l.b16 %v1156
    %v1669 = vunpack.c.h.b16 %v1156
    %v1670 = vunpack.c.l.b16 %v1157
    %v1671 = vunpack.c.h.b16 %v1157
    %v1672 = vunpack.c.l.b16 %v1158
    %v1673 = vunpack.c.h.b16 %v1158
    %v1674 = vunpack.c.l.b16 %v1159
    %v1675 = vunpack.c.h.b16 %v1159
    %v1676 = vunpack.c.l.b16 %v1160
    %v1677 = vunpack.c.h.b16 %v1160
    %v1678 = vunpack.c.l.b16 %v1161
    %v1679 = vunpack.c.h.b16 %v1161
    %v1680 = vunpack.c.l.b16 %v1162
    %v1681 = vunpack.c.h.b16 %v1162
    %v1682 = vunpack.c.l.b16 %v1163
    %v1683 = vunpack.c.h.b16 %v1163
    %v1684 = vunpack.c.l.b16 %v1164
    %v1685 = vunpack.c.h.b16 %v1164
    %v1686 = vunpack.c.l.b16 %v1165
    %v1687 = vunpack.c.h.b16 %v1165
    %v1688 = vunpack.c.l.b16 %v1166
    %v1689 = vunpack.c.h.b16 %v1166
    %v1690 = vunpack.c.l.b16 %v1167
    %v1691 = vunpack.c.h.b16 %v1167
    %v1692 = vunpack.c.l.b16 %v1168
    %v1693 = vunpack.c.h.b16 %v1168
    %v1694 = vunpack.c.l.b16 %v1169
    %v1695 = vunpack.c.h.b16 %v1169
    %v1696 = vunpack.c.l.b16 %v1170
    %v1697 = vunpack.c.h.b16 %v1170
    %v1698 = vunpack.c.l.b16 %v1171
    %v1699 = vunpack.c.h.b16 %v1171
    %v1700 = vunpack.c.l.b16 %v1172
    %v1701 = vunpack.c.h.b16 %v1172
    %v1702 = vunpack.c.l.b16 %v1173
    %v1703 = vunpack.c.h.b16 %v1173
    %v1704 = vunpack.c.l.b16 %v1174
    %v1705 = vunpack.c.h.b16 %v1174
    %v1706 = vunpack.c.l.b16 %v1175
    %v1707 = vunpack.c.h.b16 %v1175
    %v1708 = vunpack.c.l.b16 %v1176
    %v1709 = vunpack.c.h.b16 %v1176
    %v1710 = vunpack.c.l.b16 %v1177
    %v1711 = vunpack.c.h.b16 %v1177
    %v1712 = vunpack.c.l.b16 %v1178
    %v1713 = vunpack.c.h.b16 %v1178
    %v1714 = vunpack.c.l.b16 %v1179
    %v1715 = vunpack.c.h.b16 %v1179
    %v1716 = vunpack.c.l.b16 %v1180
    %v1717 = vunpack.c.h.b16 %v1180
    %v1718 = vunpack.c.l.b16 %v1181
    %v1719 = vunpack.c.h.b16 %v1181
    %v1720 = vunpack.c.l.b16 %v1182
    %v1721 = vunpack.c.h.b16 %v1182
    %v1722 = vunpack.c.l.b16 %v1183
    %v1723 = vunpack.c.h.b16 %v1183
    %v1724 = vunpack.c.l.b16 %v1184
    %v1725 = vunpack.c.h.b16 %v1184
    %v1726 = vunpack.c.l.b16 %v1185
    %v1727 = vunpack.c.h.b16 %v1185
    %v1728 = vunpack.c.l.b16 %v1186
    %v1729 = vunpack.c.h.b16 %v1186
    %v1730 = vunpack.c.l.b16 %v1187
    %v1731 = vunpack.c.h.b16 %v1187
    %v1732 = vunpack.c.l.b16 %v1188
    %v1733 = vunpack.c.h.b16 %v1188
    %v1734 = vunpack.c.l.b16 %v1189
    %v1735 = vunpack.c.h.b16 %v1189
    %v1736 = vunpack.c.l.b16 %v1190
    %v1737 = vunpack.c.h.b16 %v1190
    %v1738 = vunpack.c.l.b16 %v1191
    %v1739 = vunpack.c.h.b16 %v1191
    %v1740 = vunpack.c.l.b16 %v1192
    %v1741 = vunpack.c.h.b16 %v1192
    %v1742 = vunpack.c.l.b16 %v1193
    %v1743 = vunpack.c.h.b16 %v1193
    %v1744 = vunpack.c.l.b16 %v1194
    %v1745 = vunpack.c.h.b16 %v1194
    %v1746 = vunpack.c.l.b16 %v1195
    %v1747 = vunpack.c.h.b16 %v1195
    %v1748 = vunpack.c.l.b16 %v1196
    %v1749 = vunpack.c.h.b16 %v1196
    %v1750 = vunpack.c.l.b16 %v1197
    %v1751 = vunpack.c.h.b16 %v1197
    %v1752 = vunpack.c.l.b16 %v1198
    %v1753 = vunpack.c.h.b16 %v1198
    %v1754 = vunpack.c.l.b16 %v1199
    %v1755 = vunpack.c.h.b16 %v1199
    %v1756 = vunpack.c.l.b16 %v1200
    %v1757 = vunpack.c.h.b16 %v1200
    %v1758 = vunpack.c.l.b16 %v1201
    %v1759 = vunpack.c.h.b16 %v1201
    %v1760 = vunpack.c.l.b16 %v1202
    %v1761 = vunpack.c.h.b16 %v1202
    %v1762 = vunpack.c.l.b16 %v1203
    %v1763 = vunpack.c.h.b16 %v1203
    %v1764 = vunpack.c.l.b16 %v1204
    %v1765 = vunpack.c.h.b16 %v1204
    %v1766 = vunpack.c.l.b16 %v1205
    %v1767 = vunpack.c.h.b16 %v1205
    %v1768 = vunpack.c.l.b16 %v1206
    %v1769 = vunpack.c.h.b16 %v1206
    %v1770 = vunpack.c.l.b16 %v1207
    %v1771 = vunpack.c.h.b16 %v1207
    %v1772 = vunpack.c.l.b16 %v1208
    %v1773 = vunpack.c.h.b16 %v1208
    %v1774 = vunpack.c.l.b16 %v1209
    %v1775 = vunpack.c.h.b16 %v1209
    %v1776 = vunpack.c.l.b16 %v1210
    %v1777 = vunpack.c.h.b16 %v1210
    %v1778 = vunpack.c.l.b16 %v1211
    %v1779 = vunpack.c.h.b16 %v1211
    %v1780 = vunpack.c.l.b16 %v1212
    %v1781 = vunpack.c.h.b16 %v1212
    %v1782 = vunpack.c.l.b16 %v1213
    %v1783 = vunpack.c.h.b16 %v1213
    %v1784 = vunpack.c.l.b16 %v1214
    %v1785 = vunpack.c.h.b16 %v1214
    %v1786 = vunpack.c.l.b16 %v1215
    %v1787 = vunpack.c.h.b16 %v1215
    %v1788 = vunpack.c.l.b16 %v1216
    %v1789 = vunpack.c.h.b16 %v1216
    %v1790 = vunpack.c.l.b16 %v1217
    %v1791 = vunpack.c.h.b16 %v1217
    %v1792 = vunpack.c.l.b16 %v1218
    %v1793 = vunpack.c.h.b16 %v1218
    %v1794 = vunpack.c.l.b16 %v1219
    %v1795 = vunpack.c.h.b16 %v1219
    %v1796 = vunpack.c.l.b16 %v1220
    %v1797 = vunpack.c.h.b16 %v1220
    %v1798 = vunpack.c.l.b16 %v1221
    %v1799 = vunpack.c.h.b16 %v1221
    %v1800 = vunpack.c.l.b16 %v1222
    %v1801 = vunpack.c.h.b16 %v1222
    %v1802 = vunpack.c.l.b16 %v1223
    %v1803 = vunpack.c.h.b16 %v1223
    %v1804 = vunpack.c.l.b16 %v1224
    %v1805 = vunpack.c.h.b16 %v1224
    %v1806 = vunpack.c.l.b16 %v1225
    %v1807 = vunpack.c.h.b16 %v1225
    %v1808 = vunpack.c.l.b16 %v1226
    %v1809 = vunpack.c.h.b16 %v1226
    %v1810 = vunpack.c.l.b16 %v1227
    %v1811 = vunpack.c.h.b16 %v1227
    %v1812 = vunpack.c.l.b16 %v1228
    %v1813 = vunpack.c.h.b16 %v1228
    %v1814 = vunpack.c.l.b16 %v1229
    %v1815 = vunpack.c.h.b16 %v1229
    %v1816 = vunpack.c.l.b16 %v1230
    %v1817 = vunpack.c.h.b16 %v1230
    %v1818 = vunpack.c.l.b16 %v1231
    %v1819 = vunpack.c.h.b16 %v1231
    %v1820 = vunpack.c.l.b16 %v1232
    %v1821 = vunpack.c.h.b16 %v1232
    %v1822 = vunpack.c.l.b16 %v1233
    %v1823 = vunpack.c.h.b16 %v1233
    %v1824 = vunpack.c.l.b16 %v1234
    %v1825 = vunpack.c.h.b16 %v1234
    %v1826 = vunpack.c.l.b16 %v1235
    %v1827 = vunpack.c.h.b16 %v1235
    %v1828 = vunpack.c.l.b16 %v1236
    %v1829 = vunpack.c.h.b16 %v1236
    %v1830 = vunpack.c.l.b16 %v1237
    %v1831 = vunpack.c.h.b16 %v1237
    %v1832 = vunpack.c.l.b16 %v1238
    %v1833 = vunpack.c.h.b16 %v1238
    %v1834 = vunpack.c.l.b16 %v1239
    %v1835 = vunpack.c.h.b16 %v1239
    %v1836 = vunpack.c.l.b16 %v1240
    %v1837 = vunpack.c.h.b16 %v1240
    %v1838 = vunpack.c.l.b16 %v1241
    %v1839 = vunpack.c.h.b16 %v1241
    %v1840 = vunpack.c.l.b16 %v1242
    %v1841 = vunpack.c.h.b16 %v1242
    %v1842 = vunpack.c.l.b16 %v1243
    %v1843 = vunpack.c.h.b16 %v1243
    %v1844 = vunpack.c.l.b16 %v1244
    %v1845 = vunpack.c.h.b16 %v1244
    %v1846 = vunpack.c.l.b16 %v1245
    %v1847 = vunpack.c.h.b16 %v1245
    %v1848 = vunpack.c.l.b16 %v1246
    %v1849 = vunpack.c.h.b16 %v1246
    %v1850 = vunpack.c.l.b16 %v1247
    %v1851 = vunpack.c.h.b16 %v1247
    %v1852 = vunpack.c.l.b16 %v1248
    %v1853 = vunpack.c.h.b16 %v1248
    %v1854 = vunpack.c.l.b16 %v1249
    %v1855 = vunpack.c.h.b16 %v1249
    %v1856 = vunpack.c.l.b16 %v1250
    %v1857 = vunpack.c.h.b16 %v1250
    %v1858 = vunpack.c.l.b16 %v1251
    %v1859 = vunpack.c.h.b16 %v1251
    %v1860 = vunpack.c.l.b16 %v1252
    %v1861 = vunpack.c.h.b16 %v1252
    %v1862 = vunpack.c.l.b16 %v1253
    %v1863 = vunpack.c.h.b16 %v1253
    %v1864 = vunpack.c.l.b16 %v1254
    %v1865 = vunpack.c.h.b16 %v1254
    %v1866 = vunpack.c.l.b16 %v1255
    %v1867 = vunpack.c.h.b16 %v1255
    %v1868 = vunpack.c.l.b16 %v1256
    %v1869 = vunpack.c.h.b16 %v1256
    %v1870 = vunpack.c.l.b16 %v1257
    %v1871 = vunpack.c.h.b16 %v1257
    %v1872 = vunpack.c.l.b16 %v1258
    %v1873 = vunpack.c.h.b16 %v1258
    %v1874 = vunpack.c.l.b16 %v1259
    %v1875 = vunpack.c.h.b16 %v1259
    %v1876 = vunpack.c.l.b16 %v1260
    %v1877 = vunpack.c.h.b16 %v1260
    %v1878 = vunpack.c.l.b16 %v1261
    %v1879 = vunpack.c.h.b16 %v1261
    %v1880 = vunpack.c.l.b16 %v1262
    %v1881 = vunpack.c.h.b16 %v1262
    %v1882 = vunpack.c.l.b16 %v1263
    %v1883 = vunpack.c.h.b16 %v1263
    %v1884 = vunpack.c.l.b16 %v1264
    %v1885 = vunpack.c.h.b16 %v1264
    %v1886 = vunpack.c.l.b16 %v1265
    %v1887 = vunpack.c.h.b16 %v1265
    %v1888 = vunpack.c.l.b16 %v1266
    %v1889 = vunpack.c.h.b16 %v1266
    %v1890 = vunpack.c.l.b16 %v1267
    %v1891 = vunpack.c.h.b16 %v1267
    %v1892 = vunpack.c.l.b16 %v1268
    %v1893 = vunpack.c.h.b16 %v1268
    %v1894 = vunpack.c.l.b16 %v1269
    %v1895 = vunpack.c.h.b16 %v1269
    %v1896 = vunpack.c.l.b16 %v1270
    %v1897 = vunpack.c.h.b16 %v1270
    %v1898 = vunpack.c.l.b16 %v1271
    %v1899 = vunpack.c.h.b16 %v1271
    %v1900 = vunpack.c.l.b16 %v1272
    %v1901 = vunpack.c.h.b16 %v1272
    %v1902 = vunpack.c.l.b16 %v1273
    %v1903 = vunpack.c.h.b16 %v1273
    %v1904 = vunpack.c.l.b16 %v1274
    %v1905 = vunpack.c.h.b16 %v1274
    %v1906 = vunpack.c.l.b16 %v1275
    %v1907 = vunpack.c.h.b16 %v1275
    %v1908 = vunpack.c.l.b16 %v1276
    %v1909 = vunpack.c.h.b16 %v1276
    %v1910 = vunpack.c.l.b16 %v1277
    %v1911 = vunpack.c.h.b16 %v1277
    %v1912 = vunpack.c.l.b16 %v1278
    %v1913 = vunpack.c.h.b16 %v1278
    %v1914 = vunpack.c.l.b16 %v1279
    %v1915 = vunpack.c.h.b16 %v1279
    %v1916 = vunpack.c.l.b16 %v1280
    %v1917 = vunpack.c.h.b16 %v1280
    %v1918 = vunpack.c.l.b16 %v1281
    %v1919 = vunpack.c.h.b16 %v1281
    %v1920 = vunpack.c.l.b16 %v1282
    %v1921 = vunpack.c.h.b16 %v1282
    %v1922 = vunpack.c.l.b16 %v1283
    %v1923 = vunpack.c.h.b16 %v1283
    %v1924 = vunpack.c.l.b16 %v1284
    %v1925 = vunpack.c.h.b16 %v1284
    %v1926 = vunpack.c.l.b16 %v1285
    %v1927 = vunpack.c.h.b16 %v1285
    %v1928 = vunpack.c.l.b16 %v1286
    %v1929 = vunpack.c.h.b16 %v1286
    %v1930 = vunpack.c.l.b16 %v1287
    %v1931 = vunpack.c.h.b16 %v1287
    %v1932 = vunpack.c.l.b16 %v1288
    %v1933 = vunpack.c.h.b16 %v1288
    %v1934 = vunpack.c.l.b16 %v1289
    %v1935 = vunpack.c.h.b16 %v1289
    %v1936 = vunpack.c.l.b16 %v1290
    %v1937 = vunpack.c.h.b16 %v1290
    %v1938 = vunpack.c.l.b16 %v1291
    %v1939 = vunpack.c.h.b16 %v1291
    %v1940 = vunpack.c.l.b16 %v1292
    %v1941 = vunpack.c.h.b16 %v1292
    %v1942 = vunpack.c.l.b16 %v1293
    %v1943 = vunpack.c.h.b16 %v1293
    %v1944 = vunpack.c.l.b16 %v1294
    %v1945 = vunpack.c.h.b16 %v1294
    %v1946 = vunpack.c.l.b16 %v1295
    %v1947 = vunpack.c.h.b16 %v1295
    %v1948 = vunpack.c.l.b16 %v1296
    %v1949 = vunpack.c.h.b16 %v1296
    %v1950 = vunpack.c.l.b16 %v1297
    %v1951 = vunpack.c.h.b16 %v1297
    %v1952 = vunpack.c.l.b16 %v1298
    %v1953 = vunpack.c.h.b16 %v1298
    %v1954 = vunpack.c.l.b16 %v1299
    %v1955 = vunpack.c.h.b16 %v1299
    %v1956 = vunpack.c.l.b16 %v1300
    %v1957 = vunpack.c.h.b16 %v1300
    %v1958 = vunpack.c.l.b16 %v1301
    %v1959 = vunpack.c.h.b16 %v1301
    %v1960 = vunpack.c.l.b16 %v1302
    %v1961 = vunpack.c.h.b16 %v1302
    %v1962 = vunpack.c.l.b16 %v1303
    %v1963 = vunpack.c.h.b16 %v1303
    %v1964 = vunpack.c.l.b16 %v1304
    %v1965 = vunpack.c.h.b16 %v1304
    %v1966 = vunpack.c.l.b16 %v1305
    %v1967 = vunpack.c.h.b16 %v1305
    %v1968 = vunpack.c.l.b16 %v1306
    %v1969 = vunpack.c.h.b16 %v1306
    %v1970 = vunpack.c.l.b16 %v1307
    %v1971 = vunpack.c.h.b16 %v1307
    %v1972 = vunpack.c.l.b16 %v1308
    %v1973 = vunpack.c.h.b16 %v1308
    %v1974 = vunpack.c.l.b16 %v1309
    %v1975 = vunpack.c.h.b16 %v1309
    %v1976 = vunpack.c.l.b16 %v1310
    %v1977 = vunpack.c.h.b16 %v1310
    %v1978 = vunpack.c.l.b16 %v1311
    %v1979 = vunpack.c.h.b16 %v1311
    %v1980 = vunpack.c.l.b16 %v1312
    %v1981 = vunpack.c.h.b16 %v1312
    %v1982 = vunpack.c.l.b16 %v1313
    %v1983 = vunpack.c.h.b16 %v1313
    %v1984 = vunpack.c.l.b16 %v1314
    %v1985 = vunpack.c.h.b16 %v1314
    %v1986 = vunpack.c.l.b16 %v1315
    %v1987 = vunpack.c.h.b16 %v1315
    %v1988 = vunpack.c.l.b16 %v1316
    %v1989 = vunpack.c.h.b16 %v1316
    %v1990 = vunpack.c.l.b16 %v1317
    %v1991 = vunpack.c.h.b16 %v1317
    %v1992 = vunpack.c.l.b16 %v1318
    %v1993 = vunpack.c.h.b16 %v1318
    %v1994 = vunpack.c.l.b16 %v1319
    %v1995 = vunpack.c.h.b16 %v1319
    %v1996 = vunpack.c.l.b16 %v1320
    %v1997 = vunpack.c.h.b16 %v1320
    %v1998 = vunpack.c.l.b16 %v1321
    %v1999 = vunpack.c.h.b16 %v1321
    %v2000 = vunpack.c.l.b16 %v1322
    %v2001 = vunpack.c.h.b16 %v1322
    %v2002 = vunpack.c.l.b16 %v1323
    %v2003 = vunpack.c.h.b16 %v1323
    %v2004 = vunpack.c.l.b16 %v1324
    %v2005 = vunpack.c.h.b16 %v1324
    %v2006 = vunpack.c.l.b16 %v1325
    %v2007 = vunpack.c.h.b16 %v1325
    %v2008 = vunpack.c.l.b16 %v1326
    %v2009 = vunpack.c.h.b16 %v1326
    %v2010 = vunpack.c.l.b16 %v1327
    %v2011 = vunpack.c.h.b16 %v1327
    %v2012 = vunpack.c.l.b16 %v1328
    %v2013 = vunpack.c.h.b16 %v1328
    %v2014 = vunpack.c.l.b16 %v1329
    %v2015 = vunpack.c.h.b16 %v1329
    %v2016 = vunpack.c.l.b16 %v1330
    %v2017 = vunpack.c.h.b16 %v1330
    %v2018 = vunpack.c.l.b16 %v1331
    %v2019 = vunpack.c.h.b16 %v1331
    %v2020 = vunpack.c.l.b16 %v1332
    %v2021 = vunpack.c.h.b16 %v1332
    %v2022 = vunpack.c.l.b16 %v1333
    %v2023 = vunpack.c.h.b16 %v1333
    %v2024 = vunpack.c.l.b16 %v1334
    %v2025 = vunpack.c.h.b16 %v1334
    %v2026 = vunpack.c.l.b16 %v1335
    %v2027 = vunpack.c.h.b16 %v1335
    %v2028 = vunpack.c.l.b16 %v1336
    %v2029 = vunpack.c.h.b16 %v1336
    %v2030 = vunpack.c.l.b16 %v1337
    %v2031 = vunpack.c.h.b16 %v1337
    %v2032 = vunpack.c.l.b16 %v1338
    %v2033 = vunpack.c.h.b16 %v1338
    %v2034 = vunpack.c.l.b16 %v1339
    %v2035 = vunpack.c.h.b16 %v1339
    %v2036 = vunpack.c.l.b16 %v1340
    %v2037 = vunpack.c.h.b16 %v1340
    %v2038 = vunpack.c.l.b16 %v1341
    %v2039 = vunpack.c.h.b16 %v1341
    %v2040 = vunpack.c.l.b16 %v1342
    %v2041 = vunpack.c.h.b16 %v1342
    %v2042 = vunpack.c.l.b16 %v1343
    %v2043 = vunpack.c.h.b16 %v1343
    %v2044 = vunpack.c.l.b16 %v1344
    %v2045 = vunpack.c.h.b16 %v1344
    %v2046 = vunpack.c.l.b16 %v1345
    %v2047 = vunpack.c.h.b16 %v1345
    %v2048 = vunpack.c.l.b16 %v1346
    %v2049 = vunpack.c.h.b16 %v1346
    %v2050 = vunpack.c.l.b16 %v1347
    %v2051 = vunpack.c.h.b16 %v1347
    %v2052 = vunpack.c.l.b16 %v1348
    %v2053 = vunpack.c.h.b16 %v1348
    %v2054 = vunpack.c.l.b16 %v1349
    %v2055 = vunpack.c.h.b16 %v1349
    %v2056 = vunpack.c.l.b16 %v1350
    %v2057 = vunpack.c.h.b16 %v1350
    %v2058 = vunpack.c.l.b16 %v1351
    %v2059 = vunpack.c.h.b16 %v1351
    %v2060 = vunpack.c.l.b16 %v1352
    %v2061 = vunpack.c.h.b16 %v1352
    %v2062 = vunpack.c.l.b16 %v1353
    %v2063 = vunpack.c.h.b16 %v1353
    %v2064 = vunpack.c.l.b16 %v1354
    %v2065 = vunpack.c.h.b16 %v1354
    %v2066 = vunpack.c.l.b16 %v1355
    %v2067 = vunpack.c.h.b16 %v1355
    %v2068 = vunpack.c.l.b16 %v1356
    %v2069 = vunpack.c.h.b16 %v1356
    %v2070 = vunpack.c.l.b16 %v1357
    %v2071 = vunpack.c.h.b16 %v1357
    %v2072 = vunpack.c.l.b16 %v1358
    %v2073 = vunpack.c.h.b16 %v1358
    %v2074 = vunpack.c.l.b16 %v1359
    %v2075 = vunpack.c.h.b16 %v1359
    %v2076 = vunpack.c.l.b16 %v1360
    %v2077 = vunpack.c.h.b16 %v1360
    %v2078 = vunpack.c.l.b16 %v1361
    %v2079 = vunpack.c.h.b16 %v1361
    %v2080 = vunpack.c.l.b16 %v1362
    %v2081 = vunpack.c.h.b16 %v1362
    %v2082 = vunpack.c.l.b16 %v1363
    %v2083 = vunpack.c.h.b16 %v1363
    %v2084 = vunpack.c.l.b16 %v1364
    %v2085 = vunpack.c.h.b16 %v1364
    %v2086 = vunpack.c.l.b16 %v1365
    %v2087 = vunpack.c.h.b16 %v1365
    %v2088 = vunpack.c.l.b16 %v1366
    %v2089 = vunpack.c.h.b16 %v1366
    %v2090 = vunpack.c.l.b16 %v1367
    %v2091 = vunpack.c.h.b16 %v1367
    %v2092 = vunpack.c.l.b16 %v1368
    %v2093 = vunpack.c.h.b16 %v1368
    %v2094 = vunpack.c.l.b16 %v1369
    %v2095 = vunpack.c.h.b16 %v1369
    %v2096 = vunpack.c.l.b16 %v1370
    %v2097 = vunpack.c.h.b16 %v1370
    %v2098 = vunpack.c.l.b16 %v1371
    %v2099 = vunpack.c.h.b16 %v1371
    %v2100 = vunpack.c.l.b16 %v1372
    %v2101 = vunpack.c.h.b16 %v1372
    %v2102 = vunpack.c.l.b16 %v1373
    %v2103 = vunpack.c.h.b16 %v1373
    %v2104 = vunpack.c.l.b16 %v1374
    %v2105 = vunpack.c.h.b16 %v1374
    %v2106 = vunpack.c.l.b16 %v1375
    %v2107 = vunpack.c.h.b16 %v1375
    %v2108 = vunpack.c.l.b16 %v1376
    %v2109 = vunpack.c.h.b16 %v1376
    %v2110 = vunpack.c.l.b16 %v1377
    %v2111 = vunpack.c.h.b16 %v1377
    %v2112 = vunpack.c.l.b16 %v1378
    %v2113 = vunpack.c.h.b16 %v1378
    %v2114 = vunpack.c.l.b16 %v1379
    %v2115 = vunpack.c.h.b16 %v1379
    %v2116 = vunpack.c.l.b16 %v1380
    %v2117 = vunpack.c.h.b16 %v1380
    %v2118 = vunpack.c.l.b16 %v1381
    %v2119 = vunpack.c.h.b16 %v1381
    %v2120 = vunpack.c.l.b16 %v1382
    %v2121 = vunpack.c.h.b16 %v1382
    %v2122 = vunpack.c.l.b16 %v1383
    %v2123 = vunpack.c.h.b16 %v1383
    %v2124 = vunpack.c.l.b16 %v1384
    %v2125 = vunpack.c.h.b16 %v1384
    %v2126 = vunpack.c.l.b16 %v1385
    %v2127 = vunpack.c.h.b16 %v1385
    %v2128 = vunpack.c.l.b16 %v1386
    %v2129 = vunpack.c.h.b16 %v1386
    %v2130 = vunpack.c.l.b16 %v1387
    %v2131 = vunpack.c.h.b16 %v1387
    %v2132 = vunpack.c.l.b16 %v1388
    %v2133 = vunpack.c.h.b16 %v1388
    %v2134 = vunpack.c.l.b16 %v1389
    %v2135 = vunpack.c.h.b16 %v1389
    %v2136 = vunpack.c.l.b16 %v1390
    %v2137 = vunpack.c.h.b16 %v1390
    %v2138 = vunpack.c.l.b16 %v1391
    %v2139 = vunpack.c.h.b16 %v1391
    %v2140 = vunpack.c.l.b16 %v1392
    %v2141 = vunpack.c.h.b16 %v1392
    %v2142 = vunpack.c.l.b16 %v1393
    %v2143 = vunpack.c.h.b16 %v1393
    %v2144 = vunpack.c.l.b16 %v1394
    %v2145 = vunpack.c.h.b16 %v1394
    %v2146 = vunpack.c.l.b16 %v1395
    %v2147 = vunpack.c.h.b16 %v1395
    %v2148 = vunpack.c.l.b16 %v1396
    %v2149 = vunpack.c.h.b16 %v1396
    %v2150 = vunpack.c.l.b16 %v1397
    %v2151 = vunpack.c.h.b16 %v1397
    %v2152 = vunpack.c.l.b16 %v1398
    %v2153 = vunpack.c.h.b16 %v1398
    %v2154 = vunpack.c.l.b16 %v1399
    %v2155 = vunpack.c.h.b16 %v1399
    %v2156 = vunpack.c.l.b16 %v1400
    %v2157 = vunpack.c.h.b16 %v1400
    %v2158 = vunpack.c.l.b16 %v1401
    %v2159 = vunpack.c.h.b16 %v1401
    %v2160 = vunpack.c.l.b16 %v1402
    %v2161 = vunpack.c.h.b16 %v1402
    %v2162 = vunpack.c.l.b16 %v1403
    %v2163 = vunpack.c.h.b16 %v1403
    %v2164 = vunpack.c.l.b16 %v1404
    %v2165 = vunpack.c.h.b16 %v1404
    %v2166 = vunpack.c.l.b16 %v1405
    %v2167 = vunpack.c.h.b16 %v1405
    %v2168 = vunpack.c.l.b16 %v1406
    %v2169 = vunpack.c.h.b16 %v1406
    %v2170 = vunpack.c.l.b16 %v1407
    %v2171 = vunpack.c.h.b16 %v1407
    %v2172 = vunpack.c.l.b16 %v1408
    %v2173 = vunpack.c.h.b16 %v1408
    %v2174 = vunpack.c.l.b16 %v1409
    %v2175 = vunpack.c.h.b16 %v1409
    %v2176 = vunpack.c.l.b16 %v1410
    %v2177 = vunpack.c.h.b16 %v1410
    %v2178 = vunpack.c.l.b16 %v1411
    %v2179 = vunpack.c.h.b16 %v1411
    %v2180 = vpack.c.b16 %v1676, %v1668
    %v2181 = vpack.c.b16 %v1677, %v1669
    %v2182 = vpack.c.b16 %v1678, %v1670
    %v2183 = vpack.c.b16 %v1679, %v1671
    %v2184 = vpack.c.b16 %v1680, %v1672
    %v2185 = vpack.c.b16 %v1681, %v1673
    %v2186 = vpack.c.b16 %v1682, %v1674
    %v2187 = vpack.c.b16 %v1683, %v1675
    %v2188 = vpack.c.b16 %v1692, %v1684
    %v2189 = vpack.c.b16 %v1693, %v1685
    %v2190 = vpack.c.b16 %v1694, %v1686
    %v2191 = vpack.c.b16 %v1695, %v1687
    %v2192 = vpack.c.b16 %v1696, %v1688
    %v2193 = vpack.c.b16 %v1697, %v1689
    %v2194 = vpack.c.b16 %v1698, %v1690
    %v2195 = vpack.c.b16 %v1699, %v1691
    %v2196 = vpack.c.b16 %v1708, %v1700
    %v2197 = vpack.c.b16 %v1709, %v1701
    %v2198 = vpack.c.b16 %v1710, %v1702
    %v2199 = vpack.c.b16 %v1711, %v1703
    %v2200 = vpack.c.b16 %v1712, %v1704
    %v2201 = vpack.c.b16 %v1713, %v1705
    %v2202 = vpack.c.b16 %v1714, %v1706
    %v2203 = vpack.c.b16 %v1715, %v1707
    %v2204 = vpack.c.b16 %v1724, %v1716
    %v2205 = vpack.c.b16 %v1725, %v1717
    %v2206 = vpack.c.b16 %v1726, %v1718
    %v2207 = vpack.c.b16 %v1727, %v1719
    %v2208 = vpack.c.b16 %v1728, %v1720
    %v2209 = vpack.c.b16 %v1729, %v1721
    %v2210 = vpack.c.b16 %v1730, %v1722
    %v2211 = vpack.c.b16 %v1731, %v1723
    %v2212 = vpack.c.b16 %v1740, %v1732
    %v2213 = vpack.c.b16 %v1741, %v1733
    %v2214 = vpack.c.b16 %v1742, %v1734
    %v2215 = vpack.c.b16 %v1743, %v1735
    %v2216 = vpack.c.b16 %v1744, %v1736
    %v2217 = vpack.c.b16 %v1745, %v1737
    %v2218 = vpack.c.b16 %v1746, %v1738
    %v2219 = vpack.c.b16 %v1747, %v1739
    %v2220 = vpack.c.b16 %v1756, %v1748
    %v2221 = vpack.c.b16 %v1757, %v1749
    %v2222 = vpack.c.b16 %v1758, %v1750
    %v2223 = vpack.c.b16 %v1759, %v1751
    %v2224 = vpack.c.b16 %v1760, %v1752
    %v2225 = vpack.c.b16 %v1761, %v1753
    %v2226 = vpack.c.b16 %v1762, %v1754
    %v2227 = vpack.c.b16 %v1763, %v1755
    %v2228 = vpack.c.b16 %v1772, %v1764
    %v2229 = vpack.c.b16 %v1773, %v1765
    %v2230 = vpack.c.b16 %v1774, %v1766
    %v2231 = vpack.c.b16 %v1775, %v1767
    %v2232 = vpack.c.b16 %v1776, %v1768
    %v2233 = vpack.c.b16 %v1777, %v1769
    %v2234 = vpack.c.b16 %v1778, %v1770
    %v2235 = vpack.c.b16 %v1779, %v1771
    %v2236 = vpack.c.b16 %v1788, %v1780
    %v2237 = vpack.c.b16 %v1789, %v1781
    %v2238 = vpack.c.b16 %v1790, %v1782
    %v2239 = vpack.c.b16 %v1791, %v1783
    %v2240 = vpack.c.b16 %v1792, %v1784
    %v2241 = vpack.c.b16 %v1793, %v1785
    %v2242 = vpack.c.b16 %v1794, %v1786
    %v2243 = vpack.c.b16 %v1795, %v1787
    %v2244 = vpack.c.b16 %v1804, %v1796
    %v2245 = vpack.c.b16 %v1805, %v1797
    %v2246 = vpack.c.b16 %v1806, %v1798
    %v2247 = vpack.c.b16 %v1807, %v1799
    %v2248 = vpack.c.b16 %v1808, %v1800
    %v2249 = vpack.c.b16 %v1809, %v1801
    %v2250 = vpack.c.b16 %v1810, %v1802
    %v2251 = vpack.c.b16 %v1811, %v1803
    %v2252 = vpack.c.b16 %v1820, %v1812
    %v2253 = vpack.c.b16 %v1821, %v1813
    %v2254 = vpack.c.b16 %v1822, %v1814
    %v2255 = vpack.c.b16 %v1823, %v1815
    %v2256 = vpack.c.b16 %v1824, %v1816
    %v2257 = vpack.c.b16 %v1825, %v1817
    %v2258 = vpack.c.b16 %v1826, %v1818
    %v2259 = vpack.c.b16 %v1827, %v1819
    %v2260 = vpack.c.b16 %v1836, %v1828
    %v2261 = vpack.c.b16 %v1837, %v1829
    %v2262 = vpack.c.b16 %v1838, %v1830
    %v2263 = vpack.c.b16 %v1839, %v1831
    %v2264 = vpack.c.b16 %v1840, %v1832
    %v2265 = vpack.c.b16 %v1841, %v1833
    %v2266 = vpack.c.b16 %v1842, %v1834
    %v2267 = vpack.c.b16 %v1843, %v1835
    %v2268 = vpack.c.b16 %v1852, %v1844
    %v2269 = vpack.c.b16 %v1853, %v1845
    %v2270 = vpack.c.b16 %v1854, %v1846
    %v2271 = vpack.c.b16 %v1855, %v1847
    %v2272 = vpack.c.b16 %v1856, %v1848
    %v2273 = vpack.c.b16 %v1857, %v1849
    %v2274 = vpack.c.b16 %v1858, %v1850
    %v2275 = vpack.c.b16 %v1859, %v1851
    %v2276 = vpack.c.b16 %v1868, %v1860
    %v2277 = vpack.c.b16 %v1869, %v1861
    %v2278 = vpack.c.b16 %v1870, %v1862
    %v2279 = vpack.c.b16 %v1871, %v1863
    %v2280 = vpack.c.b16 %v1872, %v1864
    %v2281 = vpack.c.b16 %v1873, %v1865
    %v2282 = vpack.c.b16 %v1874, %v1866
    %v2283 = vpack.c.b16 %v1875, %v1867
    %v2284 = vpack.c.b16 %v1884, %v1876
    %v2285 = vpack.c.b16 %v1885, %v1877
    %v2286 = vpack.c.b16 %v1886, %v1878
    %v2287 = vpack.c.b16 %v1887, %v1879
    %v2288 = vpack.c.b16 %v1888, %v1880
    %v2289 = vpack.c.b16 %v1889, %v1881
    %v2290 = vpack.c.b16 %v1890, %v1882
    %v2291 = vpack.c.b16 %v1891, %v1883
    %v2292 = vpack.c.b16 %v1900, %v1892
    %v2293 = vpack.c.b16 %v1901, %v1893
    %v2294 = vpack.c.b16 %v1902, %v1894
    %v2295 = vpack.c.b16 %v1903, %v1895
    %v2296 = vpack.c.b16 %v1904, %v1896
    %v2297 = vpack.c.b16 %v1905, %v1897
    %v2298 = vpack.c.b16 %v1906, %v1898
    %v2299 = vpack.c.b16 %v1907, %v1899
    %v2300 = vpack.c.b16 %v1916, %v1908
    %v2301 = vpack.c.b16 %v1917, %v1909
    %v2302 = vpack.c.b16 %v1918, %v1910
    %v2303 = vpack.c.b16 %v1919, %v1911
    %v2304 = vpack.c.b16 %v1920, %v1912
    %v2305 = vpack.c.b16 %v1921, %v1913
    %v2306 = vpack.c.b16 %v1922, %v1914
    %v2307 = vpack.c.b16 %v1923, %v1915
    %v2308 = vpack.c.b16 %v1932, %v1924
    %v2309 = vpack.c.b16 %v1933, %v1925
    %v2310 = vpack.c.b16 %v1934, %v1926
    %v2311 = vpack.c.b16 %v1935, %v1927
    %v2312 = vpack.c.b16 %v1936, %v1928
    %v2313 = vpack.c.b16 %v1937, %v1929
    %v2314 = vpack.c.b16 %v1938, %v1930
    %v2315 = vpack.c.b16 %v1939, %v1931
    %v2316 = vpack.c.b16 %v1948, %v1940
    %v2317 = vpack.c.b16 %v1949, %v1941
    %v2318 = vpack.c.b16 %v1950, %v1942
    %v2319 = vpack.c.b16 %v1951, %v1943
    %v2320 = vpack.c.b16 %v1952, %v1944
    %v2321 = vpack.c.b16 %v1953, %v1945
    %v2322 = vpack.c.b16 %v1954, %v1946
    %v2323 = vpack.c.b16 %v1955, %v1947
    %v2324 = vpack.c.b16 %v1964, %v1956
    %v2325 = vpack.c.b16 %v1965, %v1957
    %v2326 = vpack.c.b16 %v1966, %v1958
    %v2327 = vpack.c.b16 %v1967, %v1959
    %v2328 = vpack.c.b16 %v1968, %v1960
    %v2329 = vpack.c.b16 %v1969, %v1961
    %v2330 = vpack.c.b16 %v1970, %v1962
    %v2331 = vpack.c.b16 %v1971, %v1963
    %v2332 = vpack.c.b16 %v1980, %v1972
    %v2333 = vpack.c.b16 %v1981, %v1973
    %v2334 = vpack.c.b16 %v1982, %v1974
    %v2335 = vpack.c.b16 %v1983, %v1975
    %v2336 = vpack.c.b16 %v1984, %v1976
    %v2337 = vpack.c.b16 %v1985, %v1977
    %v2338 = vpack.c.b16 %v1986, %v1978
    %v2339 = vpack.c.b16 %v1987, %v1979
    %v2340 = vpack.c.b16 %v1996, %v1988
    %v2341 = vpack.c.b16 %v1997, %v1989
    %v2342 = vpack.c.b16 %v1998, %v1990
    %v2343 = vpack.c.b16 %v1999, %v1991
    %v2344 = vpack.c.b16 %v2000, %v1992
    %v2345 = vpack.c.b16 %v2001, %v1993
    %v2346 = vpack.c.b16 %v2002, %v1994
    %v2347 = vpack.c.b16 %v2003, %v1995
    %v2348 = vpack.c.b16 %v2012, %v2004
    %v2349 = vpack.c.b16 %v2013, %v2005
    %v2350 = vpack.c.b16 %v2014, %v2006
    %v2351 = vpack.c.b16 %v2015, %v2007
    %v2352 = vpack.c.b16 %v2016, %v2008
    %v2353 = vpack.c.b16 %v2017, %v2009
    %v2354 = vpack.c.b16 %v2018, %v2010
    %v2355 = vpack.c.b16 %v2019, %v2011
    %v2356 = vpack.c.b16 %v2028, %v2020
    %v2357 = vpack.c.b16 %v2029, %v2021
    %v2358 = vpack.c.b16 %v2030, %v2022
    %v2359 = vpack.c.b16 %v2031, %v2023
    %v2360 = vpack.c.b16 %v2032, %v2024
    %v2361 = vpack.c.b16 %v2033, %v2025
    %v2362 = vpack.c.b16 %v2034, %v2026
    %v2363 = vpack.c.b16 %v2035, %v2027
    %v2364 = vpack.c.b16 %v2044, %v2036
    %v2365 = vpack.c.b16 %v2045, %v2037
    %v2366 = vpack.c.b16 %v2046, %v2038
    %v2367 = vpack.c.b16 %v2047, %v2039
    %v2368 = vpack.c.b16 %v2048, %v2040
    %v2369 = vpack.c.b16 %v2049, %v2041
    %v2370 = vpack.c.b16 %v2050, %v2042
    %v2371 = vpack.c.b16 %v2051, %v2043
    %v2372 = vpack.c.b16 %v2060, %v2052
    %v2373 = vpack.c.b16 %v2061, %v2053
    %v2374 = vpack.c.b16 %v2062, %v2054
    %v2375 = vpack.c.b16 %v2063, %v2055
    %v2376 = vpack.c.b16 %v2064, %v2056
    %v2377 = vpack.c.b16 %v2065, %v2057
    %v2378 = vpack.c.b16 %v2066, %v2058
    %v2379 = vpack.c.b16 %v2067, %v2059
    %v2380 = vpack.c.b16 %v2076, %v2068
    %v2381 = vpack.c.b16 %v2077, %v2069
    %v2382 = vpack.c.b16 %v2078, %v2070
    %v2383 = vpack.c.b16 %v2079, %v2071
    %v2384 = vpack.c.b16 %v2080, %v2072
    %v2385 = vpack.c.b16 %v2081, %v2073
    %v2386 = vpack.c.b16 %v2082, %v2074
    %v2387 = vpack.c.b16 %v2083, %v2075
    %v2388 = vpack.c.b16 %v2092, %v2084
    %v2389 = vpack.c.b16 %v2093, %v2085
    %v2390 = vpack.c.b16 %v2094, %v2086
    %v2391 = vpack.c.b16 %v2095, %v2087
    %v2392 = vpack.c.b16 %v2096, %v2088
    %v2393 = vpack.c.b16 %v2097, %v2089
    %v2394 = vpack.c.b16 %v2098, %v2090
    %v2395 = vpack.c.b16 %v2099, %v2091
    %v2396 = vpack.c.b16 %v2108, %v2100
    %v2397 = vpack.c.b16 %v2109, %v2101
    %v2398 = vpack.c.b16 %v2110, %v2102
    %v2399 = vpack.c.b16 %v2111, %v2103
    %v2400 = vpack.c.b16 %v2112, %v2104
    %v2401 = vpack.c.b16 %v2113, %v2105
    %v2402 = vpack.c.b16 %v2114, %v2106
    %v2403 = vpack.c.b16 %v2115, %v2107
    %v2404 = vpack.c.b16 %v2124, %v2116
    %v2405 = vpack.c.b16 %v2125, %v2117
    %v2406 = vpack.c.b16 %v2126, %v2118
    %v2407 = vpack.c.b16 %v2127, %v2119
    %v2408 = vpack.c.b16 %v2128, %v2120
    %v2409 = vpack.c.b16 %v2129, %v2121
    %v2410 = vpack.c.b16 %v2130, %v2122
    %v2411 = vpack.c.b16 %v2131, %v2123
    %v2412 = vpack.c.b16 %v2140, %v2132
    %v2413 = vpack.c.b16 %v2141, %v2133
    %v2414 = vpack.c.b16 %v2142, %v2134
    %v2415 = vpack.c.b16 %v2143, %v2135
    %v2416 = vpack.c.b16 %v2144, %v2136
    %v2417 = vpack.c.b16 %v2145, %v2137
    %v2418 = vpack.c.b16 %v2146, %v2138
    %v2419 = vpack.c.b16 %v2147, %v2139
    %v2420 = vpack.c.b16 %v2156, %v2148
    %v2421 = vpack.c.b16 %v2157, %v2149
    %v2422 = vpack.c.b16 %v2158, %v2150
    %v2423 = vpack.c.b16 %v2159, %v2151
    %v2424 = vpack.c.b16 %v2160, %v2152
    %v2425 = vpack.c.b16 %v2161, %v2153
    %v2426 = vpack.c.b16 %v2162, %v2154
    %v2427 = vpack.c.b16 %v2163, %v2155
    %v2428 = vpack.c.b16 %v2172, %v2164
    %v2429 = vpack.c.b16 %v2173, %v2165
    %v2430 = vpack.c.b16 %v2174, %v2166
    %v2431 = vpack.c.b16 %v2175, %v2167
    %v2432 = vpack.c.b16 %v2176, %v2168
    %v2433 = vpack.c.b16 %v2177, %v2169
    %v2434 = vpack.c.b16 %v2178, %v2170
    %v2435 = vpack.c.b16 %v2179, %v2171
    %2692 = vmatprep.subr.bf16.mxu0 %v2181
    %2693 = vmatpush1.bf16.msra.mxu0 %v2180
    %2694 = vmatprep.subr.bf16.mxu0 %v2189
    %2695 = vmatpush1.bf16.msra.mxu0 %v2188
    %2696 = vmatprep.subr.bf16.mxu0 %v2197
    %2697 = vmatpush1.bf16.msra.mxu0 %v2196
    %2698 = vmatprep.subr.bf16.mxu0 %v2205
    %2699 = vmatpush1.bf16.msra.mxu0 %v2204
    %2700 = vmatprep.subr.bf16.mxu0 %v2213
    %2701 = vmatpush1.bf16.msra.mxu0 %v2212
    %2702 = vmatprep.subr.bf16.mxu0 %v2221
    %2703 = vmatpush1.bf16.msra.mxu0 %v2220
    %2704 = vmatprep.subr.bf16.mxu0 %v2229
    %2705 = vmatpush1.bf16.msra.mxu0 %v2228
    %2706 = vmatprep.subr.bf16.mxu0 %v2237
    %2707 = vmatpush1.bf16.msra.mxu0 %v2236
    %2708 = vmatprep.subr.bf16.mxu0 %v2245
    %2709 = vmatpush1.bf16.msra.mxu0 %v2244
    %2710 = vmatprep.subr.bf16.mxu0 %v2253
    %2711 = vmatpush1.bf16.msra.mxu0 %v2252
    %2712 = vmatprep.subr.bf16.mxu0 %v2261
    %2713 = vmatpush1.bf16.msra.mxu0 %v2260
    %2714 = vmatprep.subr.bf16.mxu0 %v2269
    %2715 = vmatpush1.bf16.msra.mxu0 %v2268
    %2716 = vmatprep.subr.bf16.mxu0 %v2277
    %2717 = vmatpush1.bf16.msra.mxu0 %v2276
    %2718 = vmatprep.subr.bf16.mxu0 %v2285
    %2719 = vmatpush1.bf16.msra.mxu0 %v2284
    %2720 = vmatprep.subr.bf16.mxu0 %v2293
    %2721 = vmatpush1.bf16.msra.mxu0 %v2292
    %2722 = vmatprep.subr.bf16.mxu0 %v2301
    %2723 = vmatpush1.bf16.msra.mxu0 %v2300
    %2724 = vmatprep.mubr.bf16.mxu0 %v1153
    %2725 = vmatmul.mubr.bf16.gmra.mrb[0].mxu0 %v1152
    %v2726 = vpop.f32.mrb[0].mxu0
    %v2727 = vadd.f32 0.0, %v2726
    %v2728 = vpop.f32.mrb[0].mxu0
    %v2729 = vadd.f32 0.0, %v2728
    %v2730 = vpop.f32.mrb[0].mxu0
    %v2731 = vpop.f32.mrb[0].mxu0
    %2732 = vdwg.mxu0
    %2733 = vmatprep.subr.bf16.mxu0 %v2309
    %2734 = vmatpush1.bf16.msra.mxu0 %v2308
    %2735 = vmatprep.subr.bf16.mxu0 %v2317
    %2736 = vmatpush1.bf16.msra.mxu0 %v2316
    %2737 = vmatprep.subr.bf16.mxu0 %v2325
    %2738 = vmatpush1.bf16.msra.mxu0 %v2324
    %2739 = vmatprep.subr.bf16.mxu0 %v2333
    %2740 = vmatpush1.bf16.msra.mxu0 %v2332
    %2741 = vmatprep.subr.bf16.mxu0 %v2341
    %2742 = vmatpush1.bf16.msra.mxu0 %v2340
    %2743 = vmatprep.subr.bf16.mxu0 %v2349
    %2744 = vmatpush1.bf16.msra.mxu0 %v2348
    %2745 = vmatprep.subr.bf16.mxu0 %v2357
    %2746 = vmatpush1.bf16.msra.mxu0 %v2356
    %2747 = vmatprep.subr.bf16.mxu0 %v2365
    %2748 = vmatpush1.bf16.msra.mxu0 %v2364
    %2749 = vmatprep.subr.bf16.mxu0 %v2373
    %2750 = vmatpush1.bf16.msra.mxu0 %v2372
    %2751 = vmatprep.subr.bf16.mxu0 %v2381
    %2752 = vmatpush1.bf16.msra.mxu0 %v2380
    %2753 = vmatprep.subr.bf16.mxu0 %v2389
    %2754 = vmatpush1.bf16.msra.mxu0 %v2388
    %2755 = vmatprep.subr.bf16.mxu0 %v2397
    %2756 = vmatpush1.bf16.msra.mxu0 %v2396
    %2757 = vmatprep.subr.bf16.mxu0 %v2405
    %2758 = vmatpush1.bf16.msra.mxu0 %v2404
    %2759 = vmatprep.subr.bf16.mxu0 %v2413
    %2760 = vmatpush1.bf16.msra.mxu0 %v2412
    %2761 = vmatprep.subr.bf16.mxu0 %v2421
    %2762 = vmatpush1.bf16.msra.mxu0 %v2420
    %2763 = vmatprep.subr.bf16.mxu0 %v2429
    %2764 = vmatpush1.bf16.msra.mxu0 %v2428
    %2765 = vmatprep.mubr.bf16.mxu0 %v1155
    %2766 = vmatmul.mubr.bf16.gmra.mrb[0].mxu0 %v1154
    %v2767 = vpop.f32.mrb[0].mxu0
    %v2768 = vadd.f32 %v2727, %v2767
    %v2769 = vpop.f32.mrb[0].mxu0
    %v2770 = vadd.f32 %v2729, %v2769
    %v2771 = vpop.f32.mrb[0].mxu0
    %v2772 = vpop.f32.mrb[0].mxu0
    %2773 = vdwg.mxu0
    %2774 = vmatprep.subr.bf16.mxu0 %v2183
    %2775 = vmatpush1.bf16.msra.mxu0 %v2182
    %2776 = vmatprep.subr.bf16.mxu0 %v2191
    %2777 = vmatpush1.bf16.msra.mxu0 %v2190
    %2778 = vmatprep.subr.bf16.mxu0 %v2199
    %2779 = vmatpush1.bf16.msra.mxu0 %v2198
    %2780 = vmatprep.subr.bf16.mxu0 %v2207
    %2781 = vmatpush1.bf16.msra.mxu0 %v2206
    %2782 = vmatprep.subr.bf16.mxu0 %v2215
    %2783 = vmatpush1.bf16.msra.mxu0 %v2214
    %2784 = vmatprep.subr.bf16.mxu0 %v2223
    %2785 = vmatpush1.bf16.msra.mxu0 %v2222
    %2786 = vmatprep.subr.bf16.mxu0 %v2231
    %2787 = vmatpush1.bf16.msra.mxu0 %v2230
    %2788 = vmatprep.subr.bf16.mxu0 %v2239
    %2789 = vmatpush1.bf16.msra.mxu0 %v2238
    %2790 = vmatprep.subr.bf16.mxu0 %v2247
    %2791 = vmatpush1.bf16.msra.mxu0 %v2246
    %2792 = vmatprep.subr.bf16.mxu0 %v2255
    %2793 = vmatpush1.bf16.msra.mxu0 %v2254
    %2794 = vmatprep.subr.bf16.mxu0 %v2263
    %2795 = vmatpush1.bf16.msra.mxu0 %v2262
    %2796 = vmatprep.subr.bf16.mxu0 %v2271
    %2797 = vmatpush1.bf16.msra.mxu0 %v2270
    %2798 = vmatprep.subr.bf16.mxu0 %v2279
    %2799 = vmatpush1.bf16.msra.mxu0 %v2278
    %2800 = vmatprep.subr.bf16.mxu0 %v2287
    %2801 = vmatpush1.bf16.msra.mxu0 %v2286
    %2802 = vmatprep.subr.bf16.mxu0 %v2295
    %2803 = vmatpush1.bf16.msra.mxu0 %v2294
    %2804 = vmatprep.subr.bf16.mxu0 %v2303
    %2805 = vmatpush1.bf16.msra.mxu0 %v2302
    %2806 = vmatprep.mubr.bf16.mxu0 %v1153
    %2807 = vmatmul.mubr.bf16.gmra.mrb[0].mxu0 %v1152
    %v2808 = vpop.f32.mrb[0].mxu0
    %v2809 = vadd.f32 0.0, %v2808
    %v2810 = vpop.f32.mrb[0].mxu0
    %v2811 = vadd.f32 0.0, %v2810
    %v2812 = vpop.f32.mrb[0].mxu0
    %v2813 = vpop.f32.mrb[0].mxu0
    %2814 = vdwg.mxu0
    %2815 = vmatprep.subr.bf16.mxu0 %v2311
    %2816 = vmatpush1.bf16.msra.mxu0 %v2310
    %2817 = vmatprep.subr.bf16.mxu0 %v2319
    %2818 = vmatpush1.bf16.msra.mxu0 %v2318
    %2819 = vmatprep.subr.bf16.mxu0 %v2327
    %2820 = vmatpush1.bf16.msra.mxu0 %v2326
    %2821 = vmatprep.subr.bf16.mxu0 %v2335
    %2822 = vmatpush1.bf16.msra.mxu0 %v2334
    %2823 = vmatprep.subr.bf16.mxu0 %v2343
    %2824 = vmatpush1.bf16.msra.mxu0 %v2342
    %2825 = vmatprep.subr.bf16.mxu0 %v2351
    %2826 = vmatpush1.bf16.msra.mxu0 %v2350
    %2827 = vmatprep.subr.bf16.mxu0 %v2359
    %2828 = vmatpush1.bf16.msra.mxu0 %v2358
    %2829 = vmatprep.subr.bf16.mxu0 %v2367
    %2830 = vmatpush1.bf16.msra.mxu0 %v2366
    %2831 = vmatprep.subr.bf16.mxu0 %v2375
    %2832 = vmatpush1.bf16.msra.mxu0 %v2374
    %2833 = vmatprep.subr.bf16.mxu0 %v2383
    %2834 = vmatpush1.bf16.msra.mxu0 %v2382
    %2835 = vmatprep.subr.bf16.mxu0 %v2391
    %2836 = vmatpush1.bf16.msra.mxu0 %v2390
    %2837 = vmatprep.subr.bf16.mxu0 %v2399
    %2838 = vmatpush1.bf16.msra.mxu0 %v2398
    %2839 = vmatprep.subr.bf16.mxu0 %v2407
    %2840 = vmatpush1.bf16.msra.mxu0 %v2406
    %2841 = vmatprep.subr.bf16.mxu0 %v2415
    %2842 = vmatpush1.bf16.msra.mxu0 %v2414
    %2843 = vmatprep.subr.bf16.mxu0 %v2423
    %2844 = vmatpush1.bf16.msra.mxu0 %v2422
    %2845 = vmatprep.subr.bf16.mxu0 %v2431
    %2846 = vmatpush1.bf16.msra.mxu0 %v2430
    %2847 = vmatprep.mubr.bf16.mxu0 %v1155
    %2848 = vmatmul.mubr.bf16.gmra.mrb[0].mxu0 %v1154
    %v2849 = vpop.f32.mrb[0].mxu0
    %v2850 = vadd.f32 %v2809, %v2849
    %v2851 = vpop.f32.mrb[0].mxu0
    %v2852 = vadd.f32 %v2811, %v2851
    %v2853 = vpop.f32.mrb[0].mxu0
    %v2854 = vpop.f32.mrb[0].mxu0
    %2855 = vdwg.mxu0
    %2856 = vmatprep.subr.bf16.mxu0 %v2185
    %2857 = vmatpush1.bf16.msra.mxu0 %v2184
    %2858 = vmatprep.subr.bf16.mxu0 %v2193
    %2859 = vmatpush1.bf16.msra.mxu0 %v2192
    %2860 = vmatprep.subr.bf16.mxu0 %v2201
    %2861 = vmatpush1.bf16.msra.mxu0 %v2200
    %2862 = vmatprep.subr.bf16.mxu0 %v2209
    %2863 = vmatpush1.bf16.msra.mxu0 %v2208
    %2864 = vmatprep.subr.bf16.mxu0 %v2217
    %2865 = vmatpush1.bf16.msra.mxu0 %v2216
    %2866 = vmatprep.subr.bf16.mxu0 %v2225
    %2867 = vmatpush1.bf16.msra.mxu0 %v2224
    %2868 = vmatprep.subr.bf16.mxu0 %v2233
    %2869 = vmatpush1.bf16.msra.mxu0 %v2232
    %2870 = vmatprep.subr.bf16.mxu0 %v2241
    %2871 = vmatpush1.bf16.msra.mxu0 %v2240
    %2872 = vmatprep.subr.bf16.mxu0 %v2249
    %2873 = vmatpush1.bf16.msra.mxu0 %v2248
    %2874 = vmatprep.subr.bf16.mxu0 %v2257
    %2875 = vmatpush1.bf16.msra.mxu0 %v2256
    %2876 = vmatprep.subr.bf16.mxu0 %v2265
    %2877 = vmatpush1.bf16.msra.mxu0 %v2264
    %2878 = vmatprep.subr.bf16.mxu0 %v2273
    %2879 = vmatpush1.bf16.msra.mxu0 %v2272
    %2880 = vmatprep.subr.bf16.mxu0 %v2281
    %2881 = vmatpush1.bf16.msra.mxu0 %v2280
    %2882 = vmatprep.subr.bf16.mxu0 %v2289
    %2883 = vmatpush1.bf16.msra.mxu0 %v2288
    %2884 = vmatprep.subr.bf16.mxu0 %v2297
    %2885 = vmatpush1.bf16.msra.mxu0 %v2296
    %2886 = vmatprep.subr.bf16.mxu0 %v2305
    %2887 = vmatpush1.bf16.msra.mxu0 %v2304
    %2888 = vmatprep.mubr.bf16.mxu0 %v1153
    %2889 = vmatmul.mubr.bf16.gmra.mrb[0].mxu0 %v1152
    %v2890 = vpop.f32.mrb[0].mxu0
    %v2891 = vadd.f32 0.0, %v2890
    %v2892 = vpop.f32.mrb[0].mxu0
    %v2893 = vadd.f32 0.0, %v2892
    %v2894 = vpop.f32.mrb[0].mxu0
    %v2895 = vpop.f32.mrb[0].mxu0
    %2896 = vdwg.mxu0
    %2897 = vmatprep.subr.bf16.mxu0 %v2313
    %2898 = vmatpush1.bf16.msra.mxu0 %v2312
    %2899 = vmatprep.subr.bf16.mxu0 %v2321
    %2900 = vmatpush1.bf16.msra.mxu0 %v2320
    %2901 = vmatprep.subr.bf16.mxu0 %v2329
    %2902 = vmatpush1.bf16.msra.mxu0 %v2328
    %2903 = vmatprep.subr.bf16.mxu0 %v2337
    %2904 = vmatpush1.bf16.msra.mxu0 %v2336
    %2905 = vmatprep.subr.bf16.mxu0 %v2345
    %2906 = vmatpush1.bf16.msra.mxu0 %v2344
    %2907 = vmatprep.subr.bf16.mxu0 %v2353
    %2908 = vmatpush1.bf16.msra.mxu0 %v2352
    %2909 = vmatprep.subr.bf16.mxu0 %v2361
    %2910 = vmatpush1.bf16.msra.mxu0 %v2360
    %2911 = vmatprep.subr.bf16.mxu0 %v2369
    %2912 = vmatpush1.bf16.msra.mxu0 %v2368
    %2913 = vmatprep.subr.bf16.mxu0 %v2377
    %2914 = vmatpush1.bf16.msra.mxu0 %v2376
    %2915 = vmatprep.subr.bf16.mxu0 %v2385
    %2916 = vmatpush1.bf16.msra.mxu0 %v2384
    %2917 = vmatprep.subr.bf16.mxu0 %v2393
    %2918 = vmatpush1.bf16.msra.mxu0 %v2392
    %2919 = vmatprep.subr.bf16.mxu0 %v2401
    %2920 = vmatpush1.bf16.msra.mxu0 %v2400
    %2921 = vmatprep.subr.bf16.mxu0 %v2409
    %2922 = vmatpush1.bf16.msra.mxu0 %v2408
    %2923 = vmatprep.subr.bf16.mxu0 %v2417
    %2924 = vmatpush1.bf16.msra.mxu0 %v2416
    %2925 = vmatprep.subr.bf16.mxu0 %v2425
    %2926 = vmatpush1.bf16.msra.mxu0 %v2424
    %2927 = vmatprep.subr.bf16.mxu0 %v2433
    %2928 = vmatpush1.bf16.msra.mxu0 %v2432
    %2929 = vmatprep.mubr.bf16.mxu0 %v1155
    %2930 = vmatmul.mubr.bf16.gmra.mrb[0].mxu0 %v1154
    %v2931 = vpop.f32.mrb[0].mxu0
    %v2932 = vadd.f32 %v2891, %v2931
    %v2933 = vpop.f32.mrb[0].mxu0
    %v2934 = vadd.f32 %v2893, %v2933
    %v2935 = vpop.f32.mrb[0].mxu0
    %v2936 = vpop.f32.mrb[0].mxu0
    %2937 = vdwg.mxu0
    %2938 = vmatprep.subr.bf16.mxu0 %v2187
    %2939 = vmatpush1.bf16.msra.mxu0 %v2186
    %2940 = vmatprep.subr.bf16.mxu0 %v2195
    %2941 = vmatpush1.bf16.msra.mxu0 %v2194
    %2942 = vmatprep.subr.bf16.mxu0 %v2203
    %2943 = vmatpush1.bf16.msra.mxu0 %v2202
    %2944 = vmatprep.subr.bf16.mxu0 %v2211
    %2945 = vmatpush1.bf16.msra.mxu0 %v2210
    %2946 = vmatprep.subr.bf16.mxu0 %v2219
    %2947 = vmatpush1.bf16.msra.mxu0 %v2218
    %2948 = vmatprep.subr.bf16.mxu0 %v2227
    %2949 = vmatpush1.bf16.msra.mxu0 %v2226
    %2950 = vmatprep.subr.bf16.mxu0 %v2235
    %2951 = vmatpush1.bf16.msra.mxu0 %v2234
    %2952 = vmatprep.subr.bf16.mxu0 %v2243
    %2953 = vmatpush1.bf16.msra.mxu0 %v2242
    %2954 = vmatprep.subr.bf16.mxu0 %v2251
    %2955 = vmatpush1.bf16.msra.mxu0 %v2250
    %2956 = vmatprep.subr.bf16.mxu0 %v2259
    %2957 = vmatpush1.bf16.msra.mxu0 %v2258
    %2958 = vmatprep.subr.bf16.mxu0 %v2267
    %2959 = vmatpush1.bf16.msra.mxu0 %v2266
    %2960 = vmatprep.subr.bf16.mxu0 %v2275
    %2961 = vmatpush1.bf16.msra.mxu0 %v2274
    %2962 = vmatprep.subr.bf16.mxu0 %v2283
    %2963 = vmatpush1.bf16.msra.mxu0 %v2282
    %2964 = vmatprep.subr.bf16.mxu0 %v2291
    %2965 = vmatpush1.bf16.msra.mxu0 %v2290
    %2966 = vmatprep.subr.bf16.mxu0 %v2299
    %2967 = vmatpush1.bf16.msra.mxu0 %v2298
    %2968 = vmatprep.subr.bf16.mxu0 %v2307
    %2969 = vmatpush1.bf16.msra.mxu0 %v2306
    %2970 = vmatprep.mubr.bf16.mxu0 %v1153
    %2971 = vmatmul.mubr.bf16.gmra.mrb[0].mxu0 %v1152
    %v2972 = vpop.f32.mrb[0].mxu0
    %v2973 = vadd.f32 0.0, %v2972
    %v2974 = vpop.f32.mrb[0].mxu0
    %v2975 = vadd.f32 0.0, %v2974
    %v2976 = vpop.f32.mrb[0].mxu0
    %v2977 = vpop.f32.mrb[0].mxu0
    %2978 = vdwg.mxu0
    %2979 = vmatprep.subr.bf16.mxu0 %v2315
    %2980 = vmatpush1.bf16.msra.mxu0 %v2314
    %2981 = vmatprep.subr.bf16.mxu0 %v2323
    %2982 = vmatpush1.bf16.msra.mxu0 %v2322
    %2983 = vmatprep.subr.bf16.mxu0 %v2331
    %2984 = vmatpush1.bf16.msra.mxu0 %v2330
    %2985 = vmatprep.subr.bf16.mxu0 %v2339
    %2986 = vmatpush1.bf16.msra.mxu0 %v2338
    %2987 = vmatprep.subr.bf16.mxu0 %v2347
    %2988 = vmatpush1.bf16.msra.mxu0 %v2346
    %2989 = vmatprep.subr.bf16.mxu0 %v2355
    %2990 = vmatpush1.bf16.msra.mxu0 %v2354
    %2991 = vmatprep.subr.bf16.mxu0 %v2363
    %2992 = vmatpush1.bf16.msra.mxu0 %v2362
    %2993 = vmatprep.subr.bf16.mxu0 %v2371
    %2994 = vmatpush1.bf16.msra.mxu0 %v2370
    %2995 = vmatprep.subr.bf16.mxu0 %v2379
    %2996 = vmatpush1.bf16.msra.mxu0 %v2378
    %2997 = vmatprep.subr.bf16.mxu0 %v2387
    %2998 = vmatpush1.bf16.msra.mxu0 %v2386
    %2999 = vmatprep.subr.bf16.mxu0 %v2395
    %3000 = vmatpush1.bf16.msra.mxu0 %v2394
    %3001 = vmatprep.subr.bf16.mxu0 %v2403
    %3002 = vmatpush1.bf16.msra.mxu0 %v2402
    %3003 = vmatprep.subr.bf16.mxu0 %v2411
    %3004 = vmatpush1.bf16.msra.mxu0 %v2410
    %3005 = vmatprep.subr.bf16.mxu0 %v2419
    %3006 = vmatpush1.bf16.msra.mxu0 %v2418
    %3007 = vmatprep.subr.bf16.mxu0 %v2427
    %3008 = vmatpush1.bf16.msra.mxu0 %v2426
    %3009 = vmatprep.subr.bf16.mxu0 %v2435
    %3010 = vmatpush1.bf16.msra.mxu0 %v2434
    %3011 = vmatprep.mubr.bf16.mxu0 %v1155
    %3012 = vmatmul.mubr.bf16.gmra.mrb[0].mxu0 %v1154
    %v3013 = vpop.f32.mrb[0].mxu0
    %v3014 = vadd.f32 %v2973, %v3013
    %v3015 = vpop.f32.mrb[0].mxu0
    %v3016 = vadd.f32 %v2975, %v3015
    %v3017 = vpop.f32.mrb[0].mxu0
    %v3018 = vpop.f32.mrb[0].mxu0
    %3019 = vdwg.mxu0
    %v3020 = vrot.slane %v2768, 4
    %v3021 = vadd.f32 %v2768, %v3020
    %v3022 = vrot.slane %v3021, 2
    %v3023 = vadd.f32 %v3021, %v3022
    %v3024 = vrot.slane %v3023, 1
    %v3025 = vadd.f32 %v3023, %v3024
    %v3026 = vrot.slane %v2770, 4
    %v3027 = vadd.f32 %v2770, %v3026
    %v3028 = vrot.slane %v3027, 2
    %v3029 = vadd.f32 %v3027, %v3028
    %v3030 = vrot.slane %v3029, 1
    %v3031 = vadd.f32 %v3029, %v3030
    %v3032 = vrot.slane %v2850, 4
    %v3033 = vadd.f32 %v2850, %v3032
    %v3034 = vrot.slane %v3033, 2
    %v3035 = vadd.f32 %v3033, %v3034
    %v3036 = vrot.slane %v3035, 1
    %v3037 = vadd.f32 %v3035, %v3036
    %v3038 = vrot.slane %v2852, 4
    %v3039 = vadd.f32 %v2852, %v3038
    %v3040 = vrot.slane %v3039, 2
    %v3041 = vadd.f32 %v3039, %v3040
    %v3042 = vrot.slane %v3041, 1
    %v3043 = vadd.f32 %v3041, %v3042
    %v3044 = vrot.slane %v2932, 4
    %v3045 = vadd.f32 %v2932, %v3044
    %v3046 = vrot.slane %v3045, 2
    %v3047 = vadd.f32 %v3045, %v3046
    %v3048 = vrot.slane %v3047, 1
    %v3049 = vadd.f32 %v3047, %v3048
    %v3050 = vrot.slane %v2934, 4
    %v3051 = vadd.f32 %v2934, %v3050
    %v3052 = vrot.slane %v3051, 2
    %v3053 = vadd.f32 %v3051, %v3052
    %v3054 = vrot.slane %v3053, 1
    %v3055 = vadd.f32 %v3053, %v3054
    %v3056 = vrot.slane %v3014, 4
    %v3057 = vadd.f32 %v3014, %v3056
    %v3058 = vrot.slane %v3057, 2
    %v3059 = vadd.f32 %v3057, %v3058
    %v3060 = vrot.slane %v3059, 1
    %v3061 = vadd.f32 %v3059, %v3060
    %v3062 = vrot.slane %v3016, 4
    %v3063 = vadd.f32 %v3016, %v3062
    %v3064 = vrot.slane %v3063, 2
    %v3065 = vadd.f32 %v3063, %v3064
    %v3066 = vrot.slane %v3065, 1
    %v3067 = vadd.f32 %v3065, %v3066
    %v3068 = vmul.f32 %v3025, %v385
    %v3069 = vmul.f32 %v3031, %v385
    %v3070 = vmul.f32 %v3037, %v385
    %v3071 = vmul.f32 %v3043, %v385
    %v3072 = vmul.f32 %v3049, %v385
    %v3073 = vmul.f32 %v3055, %v385
    %v3074 = vmul.f32 %v3061, %v385
    %v3075 = vmul.f32 %v3067, %v385
    %v3076 = vmul.f32 %v2768, %v2768
    %v3077 = vmul.f32 %v2770, %v2770
    %v3078 = vmul.f32 %v2850, %v2850
    %v3079 = vmul.f32 %v2852, %v2852
    %v3080 = vmul.f32 %v2932, %v2932
    %v3081 = vmul.f32 %v2934, %v2934
    %v3082 = vmul.f32 %v3014, %v3014
    %v3083 = vmul.f32 %v3016, %v3016
    %v3084 = vrot.slane %v3076, 4
    %v3085 = vadd.f32 %v3076, %v3084
    %v3086 = vrot.slane %v3085, 2
    %v3087 = vadd.f32 %v3085, %v3086
    %v3088 = vrot.slane %v3087, 1
    %v3089 = vadd.f32 %v3087, %v3088
    %v3090 = vrot.slane %v3077, 4
    %v3091 = vadd.f32 %v3077, %v3090
    %v3092 = vrot.slane %v3091, 2
    %v3093 = vadd.f32 %v3091, %v3092
    %v3094 = vrot.slane %v3093, 1
    %v3095 = vadd.f32 %v3093, %v3094
    %v3096 = vrot.slane %v3078, 4
    %v3097 = vadd.f32 %v3078, %v3096
    %v3098 = vrot.slane %v3097, 2
    %v3099 = vadd.f32 %v3097, %v3098
    %v3100 = vrot.slane %v3099, 1
    %v3101 = vadd.f32 %v3099, %v3100
    %v3102 = vrot.slane %v3079, 4
    %v3103 = vadd.f32 %v3079, %v3102
    %v3104 = vrot.slane %v3103, 2
    %v3105 = vadd.f32 %v3103, %v3104
    %v3106 = vrot.slane %v3105, 1
    %v3107 = vadd.f32 %v3105, %v3106
    %v3108 = vrot.slane %v3080, 4
    %v3109 = vadd.f32 %v3080, %v3108
    %v3110 = vrot.slane %v3109, 2
    %v3111 = vadd.f32 %v3109, %v3110
    %v3112 = vrot.slane %v3111, 1
    %v3113 = vadd.f32 %v3111, %v3112
    %v3114 = vrot.slane %v3081, 4
    %v3115 = vadd.f32 %v3081, %v3114
    %v3116 = vrot.slane %v3115, 2
    %v3117 = vadd.f32 %v3115, %v3116
    %v3118 = vrot.slane %v3117, 1
    %v3119 = vadd.f32 %v3117, %v3118
    %v3120 = vrot.slane %v3082, 4
    %v3121 = vadd.f32 %v3082, %v3120
    %v3122 = vrot.slane %v3121, 2
    %v3123 = vadd.f32 %v3121, %v3122
    %v3124 = vrot.slane %v3123, 1
    %v3125 = vadd.f32 %v3123, %v3124
    %v3126 = vrot.slane %v3083, 4
    %v3127 = vadd.f32 %v3083, %v3126
    %v3128 = vrot.slane %v3127, 2
    %v3129 = vadd.f32 %v3127, %v3128
    %v3130 = vrot.slane %v3129, 1
    %v3131 = vadd.f32 %v3129, %v3130
    %v3132 = vmul.f32 %v3089, %v385
    %v3133 = vmul.f32 %v3095, %v385
    %v3134 = vmul.f32 %v3101, %v385
    %v3135 = vmul.f32 %v3107, %v385
    %v3136 = vmul.f32 %v3113, %v385
    %v3137 = vmul.f32 %v3119, %v385
    %v3138 = vmul.f32 %v3125, %v385
    %v3139 = vmul.f32 %v3131, %v385
    %v3140 = vmul.f32 %v3068, %v3068
    %v3141 = vmul.f32 %v3069, %v3069
    %v3142 = vmul.f32 %v3070, %v3070
    %v3143 = vmul.f32 %v3071, %v3071
    %v3144 = vmul.f32 %v3072, %v3072
    %v3145 = vmul.f32 %v3073, %v3073
    %v3146 = vmul.f32 %v3074, %v3074
    %v3147 = vmul.f32 %v3075, %v3075
    %v3148 = vsub.f32 %v3132, %v3140
    %v3149 = vsub.f32 %v3133, %v3141
    %v3150 = vsub.f32 %v3134, %v3142
    %v3151 = vsub.f32 %v3135, %v3143
    %v3152 = vsub.f32 %v3136, %v3144
    %v3153 = vsub.f32 %v3137, %v3145
    %v3154 = vsub.f32 %v3138, %v3146
    %v3155 = vsub.f32 %v3139, %v3147
    %v3156 = vld [vmem:[%s10] sm:$0xff]
    %v3157 = vadd.f32 %v3148, 0.8
    %v3158 = vadd.f32 %v3149, 0.8
    %v3159 = vadd.f32 %v3150, 0.8
    %v3160 = vadd.f32 %v3151, 0.8
    %v3161 = vadd.f32 %v3152, 0.8
    %v3162 = vadd.f32 %v3153, 0.8
    %v3163 = vadd.f32 %v3154, 0.8
    %v3164 = vadd.f32 %v3155, 0.8
    %v3165 = vrsqrt.pop %v3157
    %v3166 = vrsqrt.pop %v3158
    %v3167 = vrsqrt.pop %v3159
    %v3168 = vrsqrt.pop %v3160
    %v3169 = vrsqrt.pop %v3161
    %v3170 = vrsqrt.pop %v3162
    %v3171 = vrsqrt.pop %v3163
    %v3172 = vrsqrt.pop %v3164
    %v3181 = vcombine.low %v3165, %v3166
    %v3182 = vcombine.low %v3167, %v3168
    %v3183 = vcombine.low %v3169, %v3170
    %v3184 = vcombine.low %v3171, %v3172
    %v3186 = vunpack.c.l.s4 1966171168
    %v3187 = vunpack.c.0.s8 %v3186
    %v3188 = vlaneseq
    %v3189 = vshrl.u32 %v3188, 7
    %v3190 = vsub.s32 %v3187, %v3189
    %v3191 = vrot.slane %v3181, %v3190
    %v3193 = vunpack.c.l.s4 1966171168
    %v3194 = vunpack.c.0.s8 %v3193
    %v3195 = vlaneseq
    %v3196 = vshrl.u32 %v3195, 7
    %v3197 = vsub.s32 %v3194, %v3196
    %v3198 = vrot.slane %v3182, %v3197
    %v3200 = vunpack.c.l.s4 1966171168
    %v3201 = vunpack.c.0.s8 %v3200
    %v3202 = vlaneseq
    %v3203 = vshrl.u32 %v3202, 7
    %v3204 = vsub.s32 %v3201, %v3203
    %v3205 = vrot.slane %v3183, %v3204
    %v3207 = vunpack.c.l.s4 1966171168
    %v3208 = vunpack.c.0.s8 %v3207
    %v3209 = vlaneseq
    %v3210 = vshrl.u32 %v3209, 7
    %v3211 = vsub.s32 %v3208, %v3210
    %v3212 = vrot.slane %v3184, %v3211
    %v3213 = vcombine.low %v3191, %v3198
    %v3214 = vcombine.low %v3205, %v3212
    %v3216 = vunpack.c.l.s4 1966171168
    %v3217 = vunpack.c.0.s8 %v3216
    %v3218 = vlaneseq
    %v3219 = vshrl.u32 %v3218, 7
    %v3220 = vsub.s32 %v3217, %v3219
    %v3221 = vrot.slane %v3213, %v3220
    %v3223 = vunpack.c.l.s4 1966171168
    %v3224 = vunpack.c.0.s8 %v3223
    %v3225 = vlaneseq
    %v3226 = vshrl.u32 %v3225, 7
    %v3227 = vsub.s32 %v3224, %v3226
    %v3228 = vrot.slane %v3214, %v3227
    %v3229 = vcombine.low %v3221, %v3228
    %v3231 = vmul.f32 %v3156, %v3229
    %v3232 = vld [vmem:[#allocation13] sm:$0xff]
    %v3234 = vlaneseq
    %v3235 = vshrl.u32 %v3234, 7
    %v3236 = vsub.s32 0, %v3235
    %v3237 = vrot.slane %v3231, %v3236
    %v3238 = vlaneseq
    %v3239 = vshrl.u32 %v3238, 7
    %v3240 = vsub.s32 1, %v3239
    %v3241 = vrot.slane %v3231, %v3240
    %v3242 = vlaneseq
    %v3243 = vshrl.u32 %v3242, 7
    %v3244 = vsub.s32 2, %v3243
    %v3245 = vrot.slane %v3231, %v3244
    %v3246 = vlaneseq
    %v3247 = vshrl.u32 %v3246, 7
    %v3248 = vsub.s32 3, %v3247
    %v3249 = vrot.slane %v3231, %v3248
    %v3250 = vlaneseq
    %v3251 = vshrl.u32 %v3250, 7
    %v3252 = vsub.s32 4, %v3251
    %v3253 = vrot.slane %v3231, %v3252
    %v3254 = vlaneseq
    %v3255 = vshrl.u32 %v3254, 7
    %v3256 = vsub.s32 5, %v3255
    %v3257 = vrot.slane %v3231, %v3256
    %v3258 = vlaneseq
    %v3259 = vshrl.u32 %v3258, 7
    %v3260 = vsub.s32 6, %v3259
    %v3261 = vrot.slane %v3231, %v3260
    %v3262 = vlaneseq
    %v3263 = vshrl.u32 %v3262, 7
    %v3264 = vsub.s32 7, %v3263
    %v3265 = vrot.slane %v3231, %v3264
    %v3274 = vmul.f32 %v3068, %v3237
    %v3275 = vmul.f32 %v3069, %v3241
    %v3276 = vmul.f32 %v3070, %v3245
    %v3277 = vmul.f32 %v3071, %v3249
    %v3278 = vmul.f32 %v3072, %v3253
    %v3279 = vmul.f32 %v3073, %v3257
    %v3280 = vmul.f32 %v3074, %v3261
    %v3281 = vmul.f32 %v3075, %v3265
    %v3290 = vcombine.low %v3274, %v3275
    %v3291 = vcombine.low %v3276, %v3277
    %v3292 = vcombine.low %v3278, %v3279
    %v3293 = vcombine.low %v3280, %v3281
    %v3295 = vunpack.c.l.s4 1966171168
    %v3296 = vunpack.c.0.s8 %v3295
    %v3297 = vlaneseq
    %v3298 = vshrl.u32 %v3297, 7
    %v3299 = vsub.s32 %v3296, %v3298
    %v3300 = vrot.slane %v3290, %v3299
    %v3302 = vunpack.c.l.s4 1966171168
    %v3303 = vunpack.c.0.s8 %v3302
    %v3304 = vlaneseq
    %v3305 = vshrl.u32 %v3304, 7
    %v3306 = vsub.s32 %v3303, %v3305
    %v3307 = vrot.slane %v3291, %v3306
    %v3309 = vunpack.c.l.s4 1966171168
    %v3310 = vunpack.c.0.s8 %v3309
    %v3311 = vlaneseq
    %v3312 = vshrl.u32 %v3311, 7
    %v3313 = vsub.s32 %v3310, %v3312
    %v3314 = vrot.slane %v3292, %v3313
    %v3316 = vunpack.c.l.s4 1966171168
    %v3317 = vunpack.c.0.s8 %v3316
    %v3318 = vlaneseq
    %v3319 = vshrl.u32 %v3318, 7
    %v3320 = vsub.s32 %v3317, %v3319
    %v3321 = vrot.slane %v3293, %v3320
    %v3322 = vcombine.low %v3300, %v3307
    %v3323 = vcombine.low %v3314, %v3321
    %v3325 = vunpack.c.l.s4 1966171168
    %v3326 = vunpack.c.0.s8 %v3325
    %v3327 = vlaneseq
    %v3328 = vshrl.u32 %v3327, 7
    %v3329 = vsub.s32 %v3326, %v3328
    %v3330 = vrot.slane %v3322, %v3329
    %v3332 = vunpack.c.l.s4 1966171168
    %v3333 = vunpack.c.0.s8 %v3332
    %v3334 = vlaneseq
    %v3335 = vshrl.u32 %v3334, 7
    %v3336 = vsub.s32 %v3333, %v3335
    %v3337 = vrot.slane %v3323, %v3336
    %v3338 = vcombine.low %v3330, %v3337
    %v3340 = vsub.f32 %v3232, %v3338
    %v3341 = vmul.f32 %v2768, %v3237
    %v3342 = vmul.f32 %v2770, %v3241
    %v3343 = vmul.f32 %v2850, %v3245
    %v3344 = vmul.f32 %v2852, %v3249
    %v3345 = vmul.f32 %v2932, %v3253
    %v3346 = vmul.f32 %v2934, %v3257
    %v3347 = vmul.f32 %v3014, %v3261
    %v3348 = vmul.f32 %v3016, %v3265
    %v3350 = vlaneseq
    %v3351 = vshrl.u32 %v3350, 7
    %v3352 = vsub.s32 0, %v3351
    %v3353 = vrot.slane %v3340, %v3352
    %v3354 = vlaneseq
    %v3355 = vshrl.u32 %v3354, 7
    %v3356 = vsub.s32 1, %v3355
    %v3357 = vrot.slane %v3340, %v3356
    %v3358 = vlaneseq
    %v3359 = vshrl.u32 %v3358, 7
    %v3360 = vsub.s32 2, %v3359
    %v3361 = vrot.slane %v3340, %v3360
    %v3362 = vlaneseq
    %v3363 = vshrl.u32 %v3362, 7
    %v3364 = vsub.s32 3, %v3363
    %v3365 = vrot.slane %v3340, %v3364
    %v3366 = vlaneseq
    %v3367 = vshrl.u32 %v3366, 7
    %v3368 = vsub.s32 4, %v3367
    %v3369 = vrot.slane %v3340, %v3368
    %v3370 = vlaneseq
    %v3371 = vshrl.u32 %v3370, 7
    %v3372 = vsub.s32 5, %v3371
    %v3373 = vrot.slane %v3340, %v3372
    %v3374 = vlaneseq
    %v3375 = vshrl.u32 %v3374, 7
    %v3376 = vsub.s32 6, %v3375
    %v3377 = vrot.slane %v3340, %v3376
    %v3378 = vlaneseq
    %v3379 = vshrl.u32 %v3378, 7
    %v3380 = vsub.s32 7, %v3379
    %v3381 = vrot.slane %v3340, %v3380
    %v3390 = vadd.f32 %v3341, %v3353
    %v3391 = vadd.f32 %v3342, %v3357
    %v3392 = vadd.f32 %v3343, %v3361
    %v3393 = vadd.f32 %v3344, %v3365
    %v3394 = vadd.f32 %v3345, %v3369
    %v3395 = vadd.f32 %v3346, %v3373
    %v3396 = vadd.f32 %v3347, %v3377
    %v3397 = vadd.f32 %v3348, %v3381
    %v3398 = vmul.f32 %v3390, 0.2
    %v3399 = vmul.f32 %v3391, 0.2
    %v3400 = vmul.f32 %v3392, 0.2
    %v3401 = vmul.f32 %v3393, 0.2
    %v3402 = vmul.f32 %v3394, 0.2
    %v3403 = vmul.f32 %v3395, 0.2
    %v3404 = vmul.f32 %v3396, 0.2
    %v3405 = vmul.f32 %v3397, 0.2
    %v3406 = vmax.f32 %v3390, %v3398
    %v3407 = vmax.f32 %v3391, %v3399
    %v3408 = vmax.f32 %v3392, %v3400
    %v3409 = vmax.f32 %v3393, %v3401
    %v3410 = vmax.f32 %v3394, %v3402
    %v3411 = vmax.f32 %v3395, %v3403
    %v3412 = vmax.f32 %v3396, %v3404
    %v3413 = vmax.f32 %v3397, %v3405
    %v3414 = vpack.c.bf16 %v3406, %v3406
    %v3415 = vpack.c.bf16 %v3407, %v3407
    %v3416 = vpack.c.bf16 %v3408, %v3408
    %v3417 = vpack.c.bf16 %v3409, %v3409
    %v3418 = vpack.c.bf16 %v3410, %v3410
    %v3419 = vpack.c.bf16 %v3411, %v3411
    %v3420 = vpack.c.bf16 %v3412, %v3412
    %v3421 = vpack.c.bf16 %v3413, %v3413
    %v3422 = vld [vmem:[#allocation15] sm:$0xf]
    %v3423 = vld [vmem:[#allocation15 + $0x4] sm:$0xf]
    %v3424 = vld [vmem:[#allocation15 + $0x8] sm:$0xf]
    %v3425 = vld [vmem:[#allocation15 + $0xc] sm:$0xf]
    %v3426 = vld [vmem:[#allocation15 + $0x10] sm:$0xf]
    %v3427 = vld [vmem:[#allocation15 + $0x14] sm:$0xf]
    %v3428 = vld [vmem:[#allocation15 + $0x18] sm:$0xf]
    %v3429 = vld [vmem:[#allocation15 + $0x1c] sm:$0xf]
    %v3430 = vld [vmem:[#allocation15 + $0x20] sm:$0xf]
    %v3431 = vld [vmem:[#allocation15 + $0x24] sm:$0xf]
    %v3432 = vld [vmem:[#allocation15 + $0x28] sm:$0xf]
    %v3433 = vld [vmem:[#allocation15 + $0x2c] sm:$0xf]
    %v3434 = vld [vmem:[#allocation15 + $0x30] sm:$0xf]
    %v3435 = vld [vmem:[#allocation15 + $0x34] sm:$0xf]
    %v3436 = vld [vmem:[#allocation15 + $0x38] sm:$0xf]
    %v3437 = vld [vmem:[#allocation15 + $0x3c] sm:$0xf]
    %v3438 = vld [vmem:[#allocation15 + $0x40] sm:$0xf]
    %v3439 = vld [vmem:[#allocation15 + $0x44] sm:$0xf]
    %v3440 = vld [vmem:[#allocation15 + $0x48] sm:$0xf]
    %v3441 = vld [vmem:[#allocation15 + $0x4c] sm:$0xf]
    %v3442 = vld [vmem:[#allocation15 + $0x50] sm:$0xf]
    %v3443 = vld [vmem:[#allocation15 + $0x54] sm:$0xf]
    %v3444 = vld [vmem:[#allocation15 + $0x58] sm:$0xf]
    %v3445 = vld [vmem:[#allocation15 + $0x5c] sm:$0xf]
    %v3446 = vld [vmem:[#allocation15 + $0x60] sm:$0xf]
    %v3447 = vld [vmem:[#allocation15 + $0x64] sm:$0xf]
    %v3448 = vld [vmem:[#allocation15 + $0x68] sm:$0xf]
    %v3449 = vld [vmem:[#allocation15 + $0x6c] sm:$0xf]
    %v3450 = vld [vmem:[#allocation15 + $0x70] sm:$0xf]
    %v3451 = vld [vmem:[#allocation15 + $0x74] sm:$0xf]
    %v3452 = vld [vmem:[#allocation15 + $0x78] sm:$0xf]
    %v3453 = vld [vmem:[#allocation15 + $0x7c] sm:$0xf]
    %v3454 = vld [vmem:[#allocation15 + $0x80] sm:$0xf]
    %v3455 = vld [vmem:[#allocation15 + $0x84] sm:$0xf]
    %v3456 = vld [vmem:[#allocation15 + $0x88] sm:$0xf]
    %v3457 = vld [vmem:[#allocation15 + $0x8c] sm:$0xf]
    %v3458 = vld [vmem:[#allocation15 + $0x90] sm:$0xf]
    %v3459 = vld [vmem:[#allocation15 + $0x94] sm:$0xf]
    %v3460 = vld [vmem:[#allocation15 + $0x98] sm:$0xf]
    %v3461 = vld [vmem:[#allocation15 + $0x9c] sm:$0xf]
    %v3462 = vld [vmem:[#allocation15 + $0xa0] sm:$0xf]
    %v3463 = vld [vmem:[#allocation15 + $0xa4] sm:$0xf]
    %v3464 = vld [vmem:[#allocation15 + $0xa8] sm:$0xf]
    %v3465 = vld [vmem:[#allocation15 + $0xac] sm:$0xf]
    %v3466 = vld [vmem:[#allocation15 + $0xb0] sm:$0xf]
    %v3467 = vld [vmem:[#allocation15 + $0xb4] sm:$0xf]
    %v3468 = vld [vmem:[#allocation15 + $0xb8] sm:$0xf]
    %v3469 = vld [vmem:[#allocation15 + $0xbc] sm:$0xf]
    %v3470 = vld [vmem:[#allocation15 + $0xc0] sm:$0xf]
    %v3471 = vld [vmem:[#allocation15 + $0xc4] sm:$0xf]
    %v3472 = vld [vmem:[#allocation15 + $0xc8] sm:$0xf]
    %v3473 = vld [vmem:[#allocation15 + $0xcc] sm:$0xf]
    %v3474 = vld [vmem:[#allocation15 + $0xd0] sm:$0xf]
    %v3475 = vld [vmem:[#allocation15 + $0xd4] sm:$0xf]
    %v3476 = vld [vmem:[#allocation15 + $0xd8] sm:$0xf]
    %v3477 = vld [vmem:[#allocation15 + $0xdc] sm:$0xf]
    %v3478 = vld [vmem:[#allocation15 + $0xe0] sm:$0xf]
    %v3479 = vld [vmem:[#allocation15 + $0xe4] sm:$0xf]
    %v3480 = vld [vmem:[#allocation15 + $0xe8] sm:$0xf]
    %v3481 = vld [vmem:[#allocation15 + $0xec] sm:$0xf]
    %v3482 = vld [vmem:[#allocation15 + $0xf0] sm:$0xf]
    %v3483 = vld [vmem:[#allocation15 + $0xf4] sm:$0xf]
    %v3484 = vld [vmem:[#allocation15 + $0xf8] sm:$0xf]
    %v3485 = vld [vmem:[#allocation15 + $0xfc] sm:$0xf]
    %v3486 = vld [vmem:[#allocation15 + $0x100] sm:$0xf]
    %v3487 = vld [vmem:[#allocation15 + $0x104] sm:$0xf]
    %v3488 = vld [vmem:[#allocation15 + $0x108] sm:$0xf]
    %v3489 = vld [vmem:[#allocation15 + $0x10c] sm:$0xf]
    %v3490 = vld [vmem:[#allocation15 + $0x110] sm:$0xf]
    %v3491 = vld [vmem:[#allocation15 + $0x114] sm:$0xf]
    %v3492 = vld [vmem:[#allocation15 + $0x118] sm:$0xf]
    %v3493 = vld [vmem:[#allocation15 + $0x11c] sm:$0xf]
    %v3494 = vld [vmem:[#allocation15 + $0x120] sm:$0xf]
    %v3495 = vld [vmem:[#allocation15 + $0x124] sm:$0xf]
    %v3496 = vld [vmem:[#allocation15 + $0x128] sm:$0xf]
    %v3497 = vld [vmem:[#allocation15 + $0x12c] sm:$0xf]
    %v3498 = vld [vmem:[#allocation15 + $0x130] sm:$0xf]
    %v3499 = vld [vmem:[#allocation15 + $0x134] sm:$0xf]
    %v3500 = vld [vmem:[#allocation15 + $0x138] sm:$0xf]
    %v3501 = vld [vmem:[#allocation15 + $0x13c] sm:$0xf]
    %v3502 = vld [vmem:[#allocation15 + $0x140] sm:$0xf]
    %v3503 = vld [vmem:[#allocation15 + $0x144] sm:$0xf]
    %v3504 = vld [vmem:[#allocation15 + $0x148] sm:$0xf]
    %v3505 = vld [vmem:[#allocation15 + $0x14c] sm:$0xf]
    %v3506 = vld [vmem:[#allocation15 + $0x150] sm:$0xf]
    %v3507 = vld [vmem:[#allocation15 + $0x154] sm:$0xf]
    %v3508 = vld [vmem:[#allocation15 + $0x158] sm:$0xf]
    %v3509 = vld [vmem:[#allocation15 + $0x15c] sm:$0xf]
    %v3510 = vld [vmem:[#allocation15 + $0x160] sm:$0xf]
    %v3511 = vld [vmem:[#allocation15 + $0x164] sm:$0xf]
    %v3512 = vld [vmem:[#allocation15 + $0x168] sm:$0xf]
    %v3513 = vld [vmem:[#allocation15 + $0x16c] sm:$0xf]
    %v3514 = vld [vmem:[#allocation15 + $0x170] sm:$0xf]
    %v3515 = vld [vmem:[#allocation15 + $0x174] sm:$0xf]
    %v3516 = vld [vmem:[#allocation15 + $0x178] sm:$0xf]
    %v3517 = vld [vmem:[#allocation15 + $0x17c] sm:$0xf]
    %v3518 = vld [vmem:[#allocation15 + $0x180] sm:$0xf]
    %v3519 = vld [vmem:[#allocation15 + $0x184] sm:$0xf]
    %v3520 = vld [vmem:[#allocation15 + $0x188] sm:$0xf]
    %v3521 = vld [vmem:[#allocation15 + $0x18c] sm:$0xf]
    %v3522 = vld [vmem:[#allocation15 + $0x190] sm:$0xf]
    %v3523 = vld [vmem:[#allocation15 + $0x194] sm:$0xf]
    %v3524 = vld [vmem:[#allocation15 + $0x198] sm:$0xf]
    %v3525 = vld [vmem:[#allocation15 + $0x19c] sm:$0xf]
    %v3526 = vld [vmem:[#allocation15 + $0x1a0] sm:$0xf]
    %v3527 = vld [vmem:[#allocation15 + $0x1a4] sm:$0xf]
    %v3528 = vld [vmem:[#allocation15 + $0x1a8] sm:$0xf]
    %v3529 = vld [vmem:[#allocation15 + $0x1ac] sm:$0xf]
    %v3530 = vld [vmem:[#allocation15 + $0x1b0] sm:$0xf]
    %v3531 = vld [vmem:[#allocation15 + $0x1b4] sm:$0xf]
    %v3532 = vld [vmem:[#allocation15 + $0x1b8] sm:$0xf]
    %v3533 = vld [vmem:[#allocation15 + $0x1bc] sm:$0xf]
    %v3534 = vld [vmem:[#allocation15 + $0x1c0] sm:$0xf]
    %v3535 = vld [vmem:[#allocation15 + $0x1c4] sm:$0xf]
    %v3536 = vld [vmem:[#allocation15 + $0x1c8] sm:$0xf]
    %v3537 = vld [vmem:[#allocation15 + $0x1cc] sm:$0xf]
    %v3538 = vld [vmem:[#allocation15 + $0x1d0] sm:$0xf]
    %v3539 = vld [vmem:[#allocation15 + $0x1d4] sm:$0xf]
    %v3540 = vld [vmem:[#allocation15 + $0x1d8] sm:$0xf]
    %v3541 = vld [vmem:[#allocation15 + $0x1dc] sm:$0xf]
    %v3542 = vld [vmem:[#allocation15 + $0x1e0] sm:$0xf]
    %v3543 = vld [vmem:[#allocation15 + $0x1e4] sm:$0xf]
    %v3544 = vld [vmem:[#allocation15 + $0x1e8] sm:$0xf]
    %v3545 = vld [vmem:[#allocation15 + $0x1ec] sm:$0xf]
    %v3546 = vld [vmem:[#allocation15 + $0x1f0] sm:$0xf]
    %v3547 = vld [vmem:[#allocation15 + $0x1f4] sm:$0xf]
    %v3548 = vld [vmem:[#allocation15 + $0x1f8] sm:$0xf]
    %v3549 = vld [vmem:[#allocation15 + $0x1fc] sm:$0xf]
    %v3550 = vld [vmem:[#allocation16] sm:$0x1]
    %v3552 = vlaneseq
    %v3553 = vshrl.u32 %v3552, 7
    %v3554 = vsub.s32 0, %v3553
    %v3555 = vrot.slane %v3550, %v3554
    %v3685 = vunpack.c.l.b16 %v3422
    %v3686 = vunpack.c.l.b16 %v3423
    %v3687 = vunpack.c.l.b16 %v3424
    %v3688 = vunpack.c.l.b16 %v3425
    %v3689 = vunpack.c.l.b16 %v3426
    %v3690 = vunpack.c.l.b16 %v3427
    %v3691 = vunpack.c.l.b16 %v3428
    %v3692 = vunpack.c.l.b16 %v3429
    %v3693 = vunpack.c.l.b16 %v3430
    %v3694 = vunpack.c.l.b16 %v3431
    %v3695 = vunpack.c.l.b16 %v3432
    %v3696 = vunpack.c.l.b16 %v3433
    %v3697 = vunpack.c.l.b16 %v3434
    %v3698 = vunpack.c.l.b16 %v3435
    %v3699 = vunpack.c.l.b16 %v3436
    %v3700 = vunpack.c.l.b16 %v3437
    %v3701 = vunpack.c.l.b16 %v3438
    %v3702 = vunpack.c.l.b16 %v3439
    %v3703 = vunpack.c.l.b16 %v3440
    %v3704 = vunpack.c.l.b16 %v3441
    %v3705 = vunpack.c.l.b16 %v3442
    %v3706 = vunpack.c.l.b16 %v3443
    %v3707 = vunpack.c.l.b16 %v3444
    %v3708 = vunpack.c.l.b16 %v3445
    %v3709 = vunpack.c.l.b16 %v3446
    %v3710 = vunpack.c.l.b16 %v3447
    %v3711 = vunpack.c.l.b16 %v3448
    %v3712 = vunpack.c.l.b16 %v3449
    %v3713 = vunpack.c.l.b16 %v3450
    %v3714 = vunpack.c.l.b16 %v3451
    %v3715 = vunpack.c.l.b16 %v3452
    %v3716 = vunpack.c.l.b16 %v3453
    %v3717 = vunpack.c.l.b16 %v3454
    %v3718 = vunpack.c.l.b16 %v3455
    %v3719 = vunpack.c.l.b16 %v3456
    %v3720 = vunpack.c.l.b16 %v3457
    %v3721 = vunpack.c.l.b16 %v3458
    %v3722 = vunpack.c.l.b16 %v3459
    %v3723 = vunpack.c.l.b16 %v3460
    %v3724 = vunpack.c.l.b16 %v3461
    %v3725 = vunpack.c.l.b16 %v3462
    %v3726 = vunpack.c.l.b16 %v3463
    %v3727 = vunpack.c.l.b16 %v3464
    %v3728 = vunpack.c.l.b16 %v3465
    %v3729 = vunpack.c.l.b16 %v3466
    %v3730 = vunpack.c.l.b16 %v3467
    %v3731 = vunpack.c.l.b16 %v3468
    %v3732 = vunpack.c.l.b16 %v3469
    %v3733 = vunpack.c.l.b16 %v3470
    %v3734 = vunpack.c.l.b16 %v3471
    %v3735 = vunpack.c.l.b16 %v3472
    %v3736 = vunpack.c.l.b16 %v3473
    %v3737 = vunpack.c.l.b16 %v3474
    %v3738 = vunpack.c.l.b16 %v3475
    %v3739 = vunpack.c.l.b16 %v3476
    %v3740 = vunpack.c.l.b16 %v3477
    %v3741 = vunpack.c.l.b16 %v3478
    %v3742 = vunpack.c.l.b16 %v3479
    %v3743 = vunpack.c.l.b16 %v3480
    %v3744 = vunpack.c.l.b16 %v3481
    %v3745 = vunpack.c.l.b16 %v3482
    %v3746 = vunpack.c.l.b16 %v3483
    %v3747 = vunpack.c.l.b16 %v3484
    %v3748 = vunpack.c.l.b16 %v3485
    %v3749 = vunpack.c.l.b16 %v3486
    %v3750 = vunpack.c.l.b16 %v3487
    %v3751 = vunpack.c.l.b16 %v3488
    %v3752 = vunpack.c.l.b16 %v3489
    %v3753 = vunpack.c.l.b16 %v3490
    %v3754 = vunpack.c.l.b16 %v3491
    %v3755 = vunpack.c.l.b16 %v3492
    %v3756 = vunpack.c.l.b16 %v3493
    %v3757 = vunpack.c.l.b16 %v3494
    %v3758 = vunpack.c.l.b16 %v3495
    %v3759 = vunpack.c.l.b16 %v3496
    %v3760 = vunpack.c.l.b16 %v3497
    %v3761 = vunpack.c.l.b16 %v3498
    %v3762 = vunpack.c.l.b16 %v3499
    %v3763 = vunpack.c.l.b16 %v3500
    %v3764 = vunpack.c.l.b16 %v3501
    %v3765 = vunpack.c.l.b16 %v3502
    %v3766 = vunpack.c.l.b16 %v3503
    %v3767 = vunpack.c.l.b16 %v3504
    %v3768 = vunpack.c.l.b16 %v3505
    %v3769 = vunpack.c.l.b16 %v3506
    %v3770 = vunpack.c.l.b16 %v3507
    %v3771 = vunpack.c.l.b16 %v3508
    %v3772 = vunpack.c.l.b16 %v3509
    %v3773 = vunpack.c.l.b16 %v3510
    %v3774 = vunpack.c.l.b16 %v3511
    %v3775 = vunpack.c.l.b16 %v3512
    %v3776 = vunpack.c.l.b16 %v3513
    %v3777 = vunpack.c.l.b16 %v3514
    %v3778 = vunpack.c.l.b16 %v3515
    %v3779 = vunpack.c.l.b16 %v3516
    %v3780 = vunpack.c.l.b16 %v3517
    %v3781 = vunpack.c.l.b16 %v3518
    %v3782 = vunpack.c.l.b16 %v3519
    %v3783 = vunpack.c.l.b16 %v3520
    %v3784 = vunpack.c.l.b16 %v3521
    %v3785 = vunpack.c.l.b16 %v3522
    %v3786 = vunpack.c.l.b16 %v3523
    %v3787 = vunpack.c.l.b16 %v3524
    %v3788 = vunpack.c.l.b16 %v3525
    %v3789 = vunpack.c.l.b16 %v3526
    %v3790 = vunpack.c.l.b16 %v3527
    %v3791 = vunpack.c.l.b16 %v3528
    %v3792 = vunpack.c.l.b16 %v3529
    %v3793 = vunpack.c.l.b16 %v3530
    %v3794 = vunpack.c.l.b16 %v3531
    %v3795 = vunpack.c.l.b16 %v3532
    %v3796 = vunpack.c.l.b16 %v3533
    %v3797 = vunpack.c.l.b16 %v3534
    %v3798 = vunpack.c.l.b16 %v3535
    %v3799 = vunpack.c.l.b16 %v3536
    %v3800 = vunpack.c.l.b16 %v3537
    %v3801 = vunpack.c.l.b16 %v3538
    %v3802 = vunpack.c.l.b16 %v3539
    %v3803 = vunpack.c.l.b16 %v3540
    %v3804 = vunpack.c.l.b16 %v3541
    %v3805 = vunpack.c.l.b16 %v3542
    %v3806 = vunpack.c.l.b16 %v3543
    %v3807 = vunpack.c.l.b16 %v3544
    %v3808 = vunpack.c.l.b16 %v3545
    %v3809 = vunpack.c.l.b16 %v3546
    %v3810 = vunpack.c.l.b16 %v3547
    %v3811 = vunpack.c.l.b16 %v3548
    %v3812 = vunpack.c.l.b16 %v3549
    %v3813 = vpack.c.b16 %v3686, %v3685
    %v3814 = vpack.c.b16 %v3688, %v3687
    %v3815 = vpack.c.b16 %v3690, %v3689
    %v3816 = vpack.c.b16 %v3692, %v3691
    %v3817 = vpack.c.b16 %v3694, %v3693
    %v3818 = vpack.c.b16 %v3696, %v3695
    %v3819 = vpack.c.b16 %v3698, %v3697
    %v3820 = vpack.c.b16 %v3700, %v3699
    %v3821 = vpack.c.b16 %v3702, %v3701
    %v3822 = vpack.c.b16 %v3704, %v3703
    %v3823 = vpack.c.b16 %v3706, %v3705
    %v3824 = vpack.c.b16 %v3708, %v3707
    %v3825 = vpack.c.b16 %v3710, %v3709
    %v3826 = vpack.c.b16 %v3712, %v3711
    %v3827 = vpack.c.b16 %v3714, %v3713
    %v3828 = vpack.c.b16 %v3716, %v3715
    %v3829 = vpack.c.b16 %v3718, %v3717
    %v3830 = vpack.c.b16 %v3720, %v3719
    %v3831 = vpack.c.b16 %v3722, %v3721
    %v3832 = vpack.c.b16 %v3724, %v3723
    %v3833 = vpack.c.b16 %v3726, %v3725
    %v3834 = vpack.c.b16 %v3728, %v3727
    %v3835 = vpack.c.b16 %v3730, %v3729
    %v3836 = vpack.c.b16 %v3732, %v3731
    %v3837 = vpack.c.b16 %v3734, %v3733
    %v3838 = vpack.c.b16 %v3736, %v3735
    %v3839 = vpack.c.b16 %v3738, %v3737
    %v3840 = vpack.c.b16 %v3740, %v3739
    %v3841 = vpack.c.b16 %v3742, %v3741
    %v3842 = vpack.c.b16 %v3744, %v3743
    %v3843 = vpack.c.b16 %v3746, %v3745
    %v3844 = vpack.c.b16 %v3748, %v3747
    %v3845 = vpack.c.b16 %v3750, %v3749
    %v3846 = vpack.c.b16 %v3752, %v3751
    %v3847 = vpack.c.b16 %v3754, %v3753
    %v3848 = vpack.c.b16 %v3756, %v3755
    %v3849 = vpack.c.b16 %v3758, %v3757
    %v3850 = vpack.c.b16 %v3760, %v3759
    %v3851 = vpack.c.b16 %v3762, %v3761
    %v3852 = vpack.c.b16 %v3764, %v3763
    %v3853 = vpack.c.b16 %v3766, %v3765
    %v3854 = vpack.c.b16 %v3768, %v3767
    %v3855 = vpack.c.b16 %v3770, %v3769
    %v3856 = vpack.c.b16 %v3772, %v3771
    %v3857 = vpack.c.b16 %v3774, %v3773
    %v3858 = vpack.c.b16 %v3776, %v3775
    %v3859 = vpack.c.b16 %v3778, %v3777
    %v3860 = vpack.c.b16 %v3780, %v3779
    %v3861 = vpack.c.b16 %v3782, %v3781
    %v3862 = vpack.c.b16 %v3784, %v3783
    %v3863 = vpack.c.b16 %v3786, %v3785
    %v3864 = vpack.c.b16 %v3788, %v3787
    %v3865 = vpack.c.b16 %v3790, %v3789
    %v3866 = vpack.c.b16 %v3792, %v3791
    %v3867 = vpack.c.b16 %v3794, %v3793
    %v3868 = vpack.c.b16 %v3796, %v3795
    %v3869 = vpack.c.b16 %v3798, %v3797
    %v3870 = vpack.c.b16 %v3800, %v3799
    %v3871 = vpack.c.b16 %v3802, %v3801
    %v3872 = vpack.c.b16 %v3804, %v3803
    %v3873 = vpack.c.b16 %v3806, %v3805
    %v3874 = vpack.c.b16 %v3808, %v3807
    %v3875 = vpack.c.b16 %v3810, %v3809
    %v3876 = vpack.c.b16 %v3812, %v3811
    %3941 = vmatprep.subr.bf16.mxu0 0
    %3942 = vmatpush1.bf16.msra.mxu0 %v3813
    %3943 = vmatprep.subr.bf16.mxu0 0
    %3944 = vmatpush1.bf16.msra.mxu0 %v3814
    %3945 = vmatprep.subr.bf16.mxu0 0
    %3946 = vmatpush1.bf16.msra.mxu0 %v3815
    %3947 = vmatprep.subr.bf16.mxu0 0
    %3948 = vmatpush1.bf16.msra.mxu0 %v3816
    %3949 = vmatprep.subr.bf16.mxu0 0
    %3950 = vmatpush1.bf16.msra.mxu0 %v3817
    %3951 = vmatprep.subr.bf16.mxu0 0
    %3952 = vmatpush1.bf16.msra.mxu0 %v3818
    %3953 = vmatprep.subr.bf16.mxu0 0
    %3954 = vmatpush1.bf16.msra.mxu0 %v3819
    %3955 = vmatprep.subr.bf16.mxu0 0
    %3956 = vmatpush1.bf16.msra.mxu0 %v3820
    %3957 = vmatprep.subr.bf16.mxu0 0
    %3958 = vmatpush1.bf16.msra.mxu0 %v3821
    %3959 = vmatprep.subr.bf16.mxu0 0
    %3960 = vmatpush1.bf16.msra.mxu0 %v3822
    %3961 = vmatprep.subr.bf16.mxu0 0
    %3962 = vmatpush1.bf16.msra.mxu0 %v3823
    %3963 = vmatprep.subr.bf16.mxu0 0
    %3964 = vmatpush1.bf16.msra.mxu0 %v3824
    %3965 = vmatprep.subr.bf16.mxu0 0
    %3966 = vmatpush1.bf16.msra.mxu0 %v3825
    %3967 = vmatprep.subr.bf16.mxu0 0
    %3968 = vmatpush1.bf16.msra.mxu0 %v3826
    %3969 = vmatprep.subr.bf16.mxu0 0
    %3970 = vmatpush1.bf16.msra.mxu0 %v3827
    %3971 = vmatprep.subr.bf16.mxu0 0
    %3972 = vmatpush1.bf16.msra.mxu0 %v3828
    %3973 = vmatprep.mubr.bf16.mxu0 %v3415
    %3974 = vmatmul.mubr.bf16.gmra.mrb[0].mxu0 %v3414
    %v3975 = vpop.f32.mrb[0].mxu0
    %v3976 = vadd.f32 %v3555, %v3975
    %v3977 = vpop.f32.mrb[0].mxu0
    %v3978 = vpop.f32.mrb[0].mxu0
    %v3979 = vpop.f32.mrb[0].mxu0
    %3980 = vdwg.mxu0
    %3981 = vmatprep.subr.bf16.mxu0 0
    %3982 = vmatpush1.bf16.msra.mxu0 %v3829
    %3983 = vmatprep.subr.bf16.mxu0 0
    %3984 = vmatpush1.bf16.msra.mxu0 %v3830
    %3985 = vmatprep.subr.bf16.mxu0 0
    %3986 = vmatpush1.bf16.msra.mxu0 %v3831
    %3987 = vmatprep.subr.bf16.mxu0 0
    %3988 = vmatpush1.bf16.msra.mxu0 %v3832
    %3989 = vmatprep.subr.bf16.mxu0 0
    %3990 = vmatpush1.bf16.msra.mxu0 %v3833
    %3991 = vmatprep.subr.bf16.mxu0 0
    %3992 = vmatpush1.bf16.msra.mxu0 %v3834
    %3993 = vmatprep.subr.bf16.mxu0 0
    %3994 = vmatpush1.bf16.msra.mxu0 %v3835
    %3995 = vmatprep.subr.bf16.mxu0 0
    %3996 = vmatpush1.bf16.msra.mxu0 %v3836
    %3997 = vmatprep.subr.bf16.mxu0 0
    %3998 = vmatpush1.bf16.msra.mxu0 %v3837
    %3999 = vmatprep.subr.bf16.mxu0 0
    %4000 = vmatpush1.bf16.msra.mxu0 %v3838
    %4001 = vmatprep.subr.bf16.mxu0 0
    %4002 = vmatpush1.bf16.msra.mxu0 %v3839
    %4003 = vmatprep.subr.bf16.mxu0 0
    %4004 = vmatpush1.bf16.msra.mxu0 %v3840
    %4005 = vmatprep.subr.bf16.mxu0 0
    %4006 = vmatpush1.bf16.msra.mxu0 %v3841
    %4007 = vmatprep.subr.bf16.mxu0 0
    %4008 = vmatpush1.bf16.msra.mxu0 %v3842
    %4009 = vmatprep.subr.bf16.mxu0 0
    %4010 = vmatpush1.bf16.msra.mxu0 %v3843
    %4011 = vmatprep.subr.bf16.mxu0 0
    %4012 = vmatpush1.bf16.msra.mxu0 %v3844
    %4013 = vmatprep.mubr.bf16.mxu0 %v3417
    %4014 = vmatmul.mubr.bf16.gmra.mrb[0].mxu0 %v3416
    %v4015 = vpop.f32.mrb[0].mxu0
    %v4016 = vadd.f32 %v3976, %v4015
    %v4017 = vpop.f32.mrb[0].mxu0
    %v4018 = vpop.f32.mrb[0].mxu0
    %v4019 = vpop.f32.mrb[0].mxu0
    %4020 = vdwg.mxu0
    %4021 = vmatprep.subr.bf16.mxu0 0
    %4022 = vmatpush1.bf16.msra.mxu0 %v3845
    %4023 = vmatprep.subr.bf16.mxu0 0
    %4024 = vmatpush1.bf16.msra.mxu0 %v3846
    %4025 = vmatprep.subr.bf16.mxu0 0
    %4026 = vmatpush1.bf16.msra.mxu0 %v3847
    %4027 = vmatprep.subr.bf16.mxu0 0
    %4028 = vmatpush1.bf16.msra.mxu0 %v3848
    %4029 = vmatprep.subr.bf16.mxu0 0
    %4030 = vmatpush1.bf16.msra.mxu0 %v3849
    %4031 = vmatprep.subr.bf16.mxu0 0
    %4032 = vmatpush1.bf16.msra.mxu0 %v3850
    %4033 = vmatprep.subr.bf16.mxu0 0
    %4034 = vmatpush1.bf16.msra.mxu0 %v3851
    %4035 = vmatprep.subr.bf16.mxu0 0
    %4036 = vmatpush1.bf16.msra.mxu0 %v3852
    %4037 = vmatprep.subr.bf16.mxu0 0
    %4038 = vmatpush1.bf16.msra.mxu0 %v3853
    %4039 = vmatprep.subr.bf16.mxu0 0
    %4040 = vmatpush1.bf16.msra.mxu0 %v3854
    %4041 = vmatprep.subr.bf16.mxu0 0
    %4042 = vmatpush1.bf16.msra.mxu0 %v3855
    %4043 = vmatprep.subr.bf16.mxu0 0
    %4044 = vmatpush1.bf16.msra.mxu0 %v3856
    %4045 = vmatprep.subr.bf16.mxu0 0
    %4046 = vmatpush1.bf16.msra.mxu0 %v3857
    %4047 = vmatprep.subr.bf16.mxu0 0
    %4048 = vmatpush1.bf16.msra.mxu0 %v3858
    %4049 = vmatprep.subr.bf16.mxu0 0
    %4050 = vmatpush1.bf16.msra.mxu0 %v3859
    %4051 = vmatprep.subr.bf16.mxu0 0
    %4052 = vmatpush1.bf16.msra.mxu0 %v3860
    %4053 = vmatprep.mubr.bf16.mxu0 %v3419
    %4054 = vmatmul.mubr.bf16.gmra.mrb[0].mxu0 %v3418
    %v4055 = vpop.f32.mrb[0].mxu0
    %v4056 = vadd.f32 %v4016, %v4055
    %v4057 = vpop.f32.mrb[0].mxu0
    %v4058 = vpop.f32.mrb[0].mxu0
    %v4059 = vpop.f32.mrb[0].mxu0
    %4060 = vdwg.mxu0
    %4061 = vmatprep.subr.bf16.mxu0 0
    %4062 = vmatpush1.bf16.msra.mxu0 %v3861
    %4063 = vmatprep.subr.bf16.mxu0 0
    %4064 = vmatpush1.bf16.msra.mxu0 %v3862
    %4065 = vmatprep.subr.bf16.mxu0 0
    %4066 = vmatpush1.bf16.msra.mxu0 %v3863
    %4067 = vmatprep.subr.bf16.mxu0 0
    %4068 = vmatpush1.bf16.msra.mxu0 %v3864
    %4069 = vmatprep.subr.bf16.mxu0 0
    %4070 = vmatpush1.bf16.msra.mxu0 %v3865
    %4071 = vmatprep.subr.bf16.mxu0 0
    %4072 = vmatpush1.bf16.msra.mxu0 %v3866
    %4073 = vmatprep.subr.bf16.mxu0 0
    %4074 = vmatpush1.bf16.msra.mxu0 %v3867
    %4075 = vmatprep.subr.bf16.mxu0 0
    %4076 = vmatpush1.bf16.msra.mxu0 %v3868
    %4077 = vmatprep.subr.bf16.mxu0 0
    %4078 = vmatpush1.bf16.msra.mxu0 %v3869
    %4079 = vmatprep.subr.bf16.mxu0 0
    %4080 = vmatpush1.bf16.msra.mxu0 %v3870
    %4081 = vmatprep.subr.bf16.mxu0 0
    %4082 = vmatpush1.bf16.msra.mxu0 %v3871
    %4083 = vmatprep.subr.bf16.mxu0 0
    %4084 = vmatpush1.bf16.msra.mxu0 %v3872
    %4085 = vmatprep.subr.bf16.mxu0 0
    %4086 = vmatpush1.bf16.msra.mxu0 %v3873
    %4087 = vmatprep.subr.bf16.mxu0 0
    %4088 = vmatpush1.bf16.msra.mxu0 %v3874
    %4089 = vmatprep.subr.bf16.mxu0 0
    %4090 = vmatpush1.bf16.msra.mxu0 %v3875
    %4091 = vmatprep.subr.bf16.mxu0 0
    %4092 = vmatpush1.bf16.msra.mxu0 %v3876
    %4093 = vmatprep.mubr.bf16.mxu0 %v3421
    %4094 = vmatmul.mubr.bf16.gmra.mrb[0].mxu0 %v3420
    %v4095 = vpop.f32.mrb[0].mxu0
    %v4096 = vadd.f32 %v4056, %v4095
    %v4097 = vpop.f32.mrb[0].mxu0
    %v4098 = vpop.f32.mrb[0].mxu0
    %v4099 = vpop.f32.mrb[0].mxu0
    %4100 = vdwg.mxu0
    %v4101 = vtanh.pop %v4096
    %4102 = vst [vmem:[%s14] sm:$0xff] %v4101
    // Predicated region
    $region98: #{generator_forward.1} parent=1 // pred_check
      _
    $region99: #{generator_forward.1} parent=1 // pred_check_branch
      %4104 = sbr.rel (0) target = $region101
    $region100: #{generator_forward.1} parent=1 // pred_region
      _
    $region101: #{generator_forward.1} parent=1 // pred_fallthru
      _
    // Predicated region
    $region102: #{generator_forward.1} parent=1 // pred_check
      _
    $region103: #{generator_forward.1} parent=1 // pred_check_branch
      %4106 = sbr.rel (0) target = $region105
    $region104: #{generator_forward.1} parent=1 // pred_region
      _
    $region105: #{generator_forward.1} parent=1 // pred_fallthru
      _
    %4107 = vsyncpa [#allocation3], 1
    %4108 = vsyncpa [#allocation5], 1
    %4109 = vsyncpa [#allocation8], 1
    %4110 = vsyncpa [#allocation11], 1
    %4111 = vsyncpa [#allocation14], 1
    %4112 = vsyncpa [#allocation17], 1

</llo_original>
